<compile_context>
chip_gen: v7x
topology: tpu7x:2x2x1
jax: 0.10.0
libtpu: 0.0.40
codegen_flags: <defaults>
</compile_context>

<pallas_src>
import functools

import jax
import jax.numpy as jnp
from jax.experimental import pallas as pl
from jax.experimental.pallas import tpu as pltpu


def _disc_kernel(x_ref, w1_ref, b1_ref, w2_ref, b2_ref, w3_ref, b3_ref,
                 w5_ref, b5_ref, o_ref):
    F = w3_ref.shape[0]

    # ---- layer1: Conv2d(1,F,(1,features)) + ReLU, all H rows via block-diag weight ----
    x = x_ref[...]                                                     # (TB, H*features) bf16
    a1 = jnp.dot(x, w1_ref[...], preferred_element_type=jnp.float32) + b1_ref[...]
    a1 = jnp.maximum(a1, 0.0)                                          # (TB, H*F) f32

    # ---- layer2: Conv2d(F,F,(3,1)) + ReLU, 3-tap conv folded into one banded matmul ----
    a2 = jnp.dot(a1.astype(jnp.bfloat16), w2_ref[...],
                 preferred_element_type=jnp.float32) + b2_ref[...]
    a2 = jnp.maximum(a2, 0.0)                                          # (TB, Hm2*F) f32

    # ---- layer3: MaxPool2d((2,1)) = lane-slice max (VPU), then 1x1 conv + ReLU ----
    pooled = jnp.maximum(a2[:, 0:F], a2[:, F:2 * F])                   # (TB, F)
    a3 = jnp.dot(pooled.astype(jnp.bfloat16), w3_ref[...],
                 preferred_element_type=jnp.float32) + b3_ref[...]
    a3 = jnp.maximum(a3, 0.0)                                          # (TB, F)

    # ---- layer4: MaxPool2d((1,1)) identity; per-sample Flatten; Dropout eval identity ----
    # TODO(synk): training-mode stochastic dropout not implemented (eval semantics).

    # ---- layer5: Linear(F,1) + Sigmoid ----
    logit = jnp.dot(a3.astype(jnp.bfloat16), w5_ref[...],
                    preferred_element_type=jnp.float32) + b5_ref[...]
    o_ref[...] = jax.nn.sigmoid(logit)                                 # (TB, 1)


def init_params(key, features, filter_num):
    """Deterministic synthetic parameters in PyTorch-native layouts."""
    F = filter_num
    ks = jax.random.split(key, 8)
    w1 = jax.random.normal(ks[0], (F, 1, 1, features), jnp.float32) * 0.1   # Conv2d(1,F,(1,feat))
    b1 = jax.random.normal(ks[1], (F,), jnp.float32) * 0.1
    w2 = jax.random.normal(ks[2], (F, F, 3, 1), jnp.float32) * 0.1          # Conv2d(F,F,(3,1))
    b2 = jax.random.normal(ks[3], (F,), jnp.float32) * 0.1
    w3 = jax.random.normal(ks[4], (F, F, 1, 1), jnp.float32) * 0.1          # Conv2d(F,F,(1,1))
    b3 = jax.random.normal(ks[5], (F,), jnp.float32) * 0.1
    w5 = jax.random.normal(ks[6], (1, F), jnp.float32) * 0.1                # Linear(F,1)
    b5 = jax.random.normal(ks[7], (1,), jnp.float32) * 0.1
    return (w1, b1, w2, b2, w3, b3, w5, b5)


def fuse_params(torch_params, H, matmul_dtype=jnp.bfloat16):
    """Fold the conv structure into block-structured matmul weights (kernel layout)."""
    w1, b1, w2, b2, w3, b3, w5, b5 = torch_params
    F = w1.shape[0]
    features = w1.shape[-1]
    Hm2 = H - 2

    # layer1: block-diagonal (H*features, H*F); a1_row[b, h*F+f] = sum_w x[b,h,w] * w1[f,w]
    w1_mat = w1.reshape(F, features).T                                 # (features, F)
    w1blk = jnp.zeros((H * features, H * F), jnp.float32)
    for h in range(H):
        w1blk = w1blk.at[h * features:(h + 1) * features, h * F:(h + 1) * F].set(w1_mat)
    b1blk = jnp.tile(b1, H).reshape(1, H * F)

    # layer2: banded block-Toeplitz (H*F, Hm2*F); fuses the 3 height taps into one matmul
    w2_dh = jnp.transpose(w2[..., 0], (2, 1, 0))                       # (3, F_in, F_out)
    w2big = jnp.zeros((H * F, Hm2 * F), jnp.float32)
    for r in range(Hm2):
        for dh in range(3):
            h = r + dh
            w2big = w2big.at[h * F:(h + 1) * F, r * F:(r + 1) * F].set(w2_dh[dh])
    b2blk = jnp.tile(b2, Hm2).reshape(1, Hm2 * F)

    w3_mat = w3[:, :, 0, 0].T                                          # (F_in, F_out)
    w5_mat = w5.T                                                      # (F, 1)

    return (w1blk.astype(matmul_dtype), b1blk,
            w2big.astype(matmul_dtype), b2blk,
            w3_mat.astype(matmul_dtype), b3.reshape(1, F),
            w5_mat.astype(matmul_dtype), b5.reshape(1, 1))


def _pick_tile_b(batch, max_tile_b):
    """Largest batch tile <= max_tile_b that divides `batch` (so no host jnp.pad copy),
    preferring multiples of 512 (bf16 sublane packing / MXU granularity / even 2-way
    split) and >= 2 tiles so v7x's two TensorCores both get work."""
    cap = max(16, min(max_tile_b, batch))
    for gran, min_tiles in ((512, 2), (128, 2), (16, 2), (512, 1), (128, 1), (16, 1)):
        tb = cap - cap % gran
        while tb >= gran:
            if batch % tb == 0 and batch // tb >= min_tiles:
                return tb
            tb -= gran
    if batch <= max_tile_b:
        return batch                      # single full-extent tile (always legal)
    # Ragged large batch: use a fixed tile; Pallas handles the partial last block
    # (OOB rows read padding and their writes are dropped; rows are independent).
    return min(max_tile_b, batch)


@functools.partial(jax.jit, static_argnames=("tile_b",))
def discriminator_forward(x, fused_params, *, tile_b=2048):
    """x: (B, 1, H, features) NCHW. Returns (B,) sigmoid scores (one per sample)."""
    B, C, H, W = x.shape
    assert C == 1
    F = fused_params[4].shape[0]
    Hm2 = H - 2
    assert Hm2 // 2 == 1, "PyTorch Flatten(0)+Linear(F,1) requires (H-2)//2 == 1 (H in {4,5})"

    # Free reshape (sample-per-row) + bf16 cast: halves the dominant HBM read.
    x2d = x.reshape(B, H * W).astype(jnp.bfloat16)

    TB = _pick_tile_b(B, tile_b)
    n_tiles = pl.cdiv(B, TB)

    # Weights/biases: full-array blocks with constant index maps -> stay resident in VMEM.
    w_specs = [pl.BlockSpec(p.shape, lambda i: (0, 0)) for p in fused_params]

    weight_bytes = sum(int(p.size) * p.dtype.itemsize for p in fused_params)
    cost = pl.CostEstimate(
        flops=2 * B * (H * W * H * F + H * F * Hm2 * F + F * F + F),
        transcendentals=B,                                          # one sigmoid per sample
        bytes_accessed=B * H * W * 2 + weight_bytes + B * 4)

    out = pl.pallas_call(
        _disc_kernel,
        out_shape=jax.ShapeDtypeStruct((B, 1), jnp.float32),
        grid=(n_tiles,),
        in_specs=[pl.BlockSpec((TB, H * W), lambda i: (i, 0))] + w_specs,
        out_specs=pl.BlockSpec((TB, 1), lambda i: (i, 0)),
        compiler_params=pltpu.CompilerParams(dimension_semantics=("parallel",)),
        cost_estimate=cost,
    )(x2d, *fused_params)
    return out[:, 0]


def reference_forward(x, torch_params):
    """Plain-JAX f32 reference with PyTorch-native weights (per-sample semantics)."""
    w1, b1, w2, b2, w3, b3, w5, b5 = torch_params
    B, _, H, W = x.shape
    F = w1.shape[0]
    xs = x[:, 0].astype(jnp.float32)                                  # (B, H, W)
    a1 = jnp.maximum(jnp.einsum("bhw,fw->bhf", xs, w1.reshape(F, W)) + b1, 0.0)
    w2m = jnp.transpose(w2[..., 0], (2, 1, 0))                        # (3, Fin, Fout)
    Hm2 = H - 2
    rows = [sum(a1[:, r + dh] @ w2m[dh] for dh in range(3)) for r in range(Hm2)]
    a2 = jnp.maximum(jnp.stack(rows, axis=1) + b2, 0.0)               # (B, Hm2, F)
    pooled = jnp.maximum(a2[:, 0], a2[:, 1])                          # (B, F) (Hp == 1)
    a3 = jnp.maximum(pooled @ w3[:, :, 0, 0].T + b3, 0.0)
    logit = a3 @ w5.T + b5
    return jax.nn.sigmoid(logit)[:, 0]


if __name__ == "__main__":
    features, filter_num, H, B = 16, 8, 4, 2048   # (H-2)//2 == 1 so Flatten->Linear is valid
    key = jax.random.PRNGKey(0)
    kx, kp = jax.random.split(key)
    x = jax.random.normal(kx, (B, 1, H, features), jnp.float32)

    torch_params = init_params(kp, features, filter_num)
    fused = fuse_params(torch_params, H)

    out = discriminator_forward(x, fused, tile_b=1024)   # -> 2 tiles of 1024 (2-TC friendly)
    jax.block_until_ready(out)
    assert out.shape == (B,) and out.dtype == jnp.float32

    ref = reference_forward(x, torch_params)
    assert float(jnp.max(jnp.abs(out - ref))) < 2e-2, "kernel output mismatch vs f32 reference"
    print("KERNEL_OK")
</pallas_src>

<mosaic_0001>
module attributes {stable_mosaic.version = 11 : i64} {
  func.func @_disc_kernel(%arg0: i32, %arg1: memref<1024x64xbf16, #tpu.memory_space<vmem>>, %arg2: memref<64x32xbf16, #tpu.memory_space<vmem>>, %arg3: memref<1x32xf32, #tpu.memory_space<vmem>>, %arg4: memref<32x16xbf16, #tpu.memory_space<vmem>>, %arg5: memref<1x16xf32, #tpu.memory_space<vmem>>, %arg6: memref<8x8xbf16, #tpu.memory_space<vmem>>, %arg7: memref<1x8xf32, #tpu.memory_space<vmem>>, %arg8: memref<8x1xbf16, #tpu.memory_space<vmem>>, %arg9: memref<1x1xf32, #tpu.memory_space<vmem>>, %arg10: memref<1024x1xf32, #tpu.memory_space<vmem>>) attributes {dimension_semantics = [#tpu.dimension_semantics<parallel>], iteration_bounds = array<i64: 2>, scalar_prefetch = 0 : i64, scratch_operands = 0 : i64, tpu.core_type = #tpu.core_type<tc>, window_params = [{transform_indices = @transform_0, window_bounds = array<i64: 1024, 64>}, {pipeline_mode = #tpu.pipeline_mode<synchronous>, transform_indices = @transform_1, window_bounds = array<i64: 64, 32>}, {pipeline_mode = #tpu.pipeline_mode<synchronous>, transform_indices = @transform_2, window_bounds = array<i64: 1, 32>}, {pipeline_mode = #tpu.pipeline_mode<synchronous>, transform_indices = @transform_3, window_bounds = array<i64: 32, 16>}, {pipeline_mode = #tpu.pipeline_mode<synchronous>, transform_indices = @transform_4, window_bounds = array<i64: 1, 16>}, {pipeline_mode = #tpu.pipeline_mode<synchronous>, transform_indices = @transform_5, window_bounds = array<i64: 8, 8>}, {pipeline_mode = #tpu.pipeline_mode<synchronous>, transform_indices = @transform_6, window_bounds = array<i64: 1, 8>}, {pipeline_mode = #tpu.pipeline_mode<synchronous>, transform_indices = @transform_7, window_bounds = array<i64: 8, 1>}, {pipeline_mode = #tpu.pipeline_mode<synchronous>, transform_indices = @transform_8, window_bounds = array<i64: 1, 1>}, {transform_indices = @transform_9, window_bounds = array<i64: 1024, 1>}]} {
    %c0 = arith.constant 0 : index
    %c0_0 = arith.constant 0 : index
    %0 = vector.load %arg1[%c0, %c0_0] : memref<1024x64xbf16, #tpu.memory_space<vmem>>, vector<1024x64xbf16>
    %c0_1 = arith.constant 0 : index
    %c0_2 = arith.constant 0 : index
    %1 = vector.load %arg2[%c0_1, %c0_2] : memref<64x32xbf16, #tpu.memory_space<vmem>>, vector<64x32xbf16>
    %cst = arith.constant dense<0.000000e+00> : vector<1024x32xf32>
    %2 = tpu.matmul %0, %1, %cst {dimension_numbers = #tpu.dot_dimension_numbers<[1], [0], [0], [1], [0, 0, 1, 1], [], []>} : vector<1024x64xbf16>, vector<64x32xbf16>, vector<1024x32xf32> -> vector<1024x32xf32>
    %c0_3 = arith.constant 0 : index
    %c0_4 = arith.constant 0 : index
    %3 = vector.load %arg3[%c0_3, %c0_4] : memref<1x32xf32, #tpu.memory_space<vmem>>, vector<1x32xf32>
    %4 = vector.broadcast %3 : vector<1x32xf32> to vector<1024x32xf32>
    %5 = arith.addf %2, %4 : vector<1024x32xf32>
    %cst_5 = arith.constant 0.000000e+00 : f32
    %6 = vector.broadcast %cst_5 : f32 to vector<1024x32xf32>
    %7 = arith.maximumf %5, %6 : vector<1024x32xf32>
    %8 = arith.truncf %7 : vector<1024x32xf32> to vector<1024x32xbf16>
    %c0_6 = arith.constant 0 : index
    %c0_7 = arith.constant 0 : index
    %9 = vector.load %arg4[%c0_6, %c0_7] : memref<32x16xbf16, #tpu.memory_space<vmem>>, vector<32x16xbf16>
    %cst_8 = arith.constant dense<0.000000e+00> : vector<1024x16xf32>
    %10 = tpu.matmul %8, %9, %cst_8 {dimension_numbers = #tpu.dot_dimension_numbers<[1], [0], [0], [1], [0, 0, 1, 1], [], []>} : vector<1024x32xbf16>, vector<32x16xbf16>, vector<1024x16xf32> -> vector<1024x16xf32>
    %c0_9 = arith.constant 0 : index
    %c0_10 = arith.constant 0 : index
    %11 = vector.load %arg5[%c0_9, %c0_10] : memref<1x16xf32, #tpu.memory_space<vmem>>, vector<1x16xf32>
    %12 = vector.broadcast %11 : vector<1x16xf32> to vector<1024x16xf32>
    %13 = arith.addf %10, %12 : vector<1024x16xf32>
    %cst_11 = arith.constant 0.000000e+00 : f32
    %14 = vector.broadcast %cst_11 : f32 to vector<1024x16xf32>
    %15 = arith.maximumf %13, %14 : vector<1024x16xf32>
    %16 = vector.extract_strided_slice %15 {offsets = [0, 0], sizes = [1024, 8], strides = [1, 1]} : vector<1024x16xf32> to vector<1024x8xf32>
    %17 = vector.extract_strided_slice %15 {offsets = [0, 8], sizes = [1024, 8], strides = [1, 1]} : vector<1024x16xf32> to vector<1024x8xf32>
    %18 = arith.maximumf %16, %17 : vector<1024x8xf32>
    %19 = arith.truncf %18 : vector<1024x8xf32> to vector<1024x8xbf16>
    %c0_12 = arith.constant 0 : index
    %c0_13 = arith.constant 0 : index
    %20 = vector.load %arg6[%c0_12, %c0_13] : memref<8x8xbf16, #tpu.memory_space<vmem>>, vector<8x8xbf16>
    %cst_14 = arith.constant dense<0.000000e+00> : vector<1024x8xf32>
    %21 = tpu.matmul %19, %20, %cst_14 {dimension_numbers = #tpu.dot_dimension_numbers<[1], [0], [0], [1], [0, 0, 1, 1], [], []>} : vector<1024x8xbf16>, vector<8x8xbf16>, vector<1024x8xf32> -> vector<1024x8xf32>
    %c0_15 = arith.constant 0 : index
    %c0_16 = arith.constant 0 : index
    %22 = vector.load %arg7[%c0_15, %c0_16] : memref<1x8xf32, #tpu.memory_space<vmem>>, vector<1x8xf32>
    %23 = vector.broadcast %22 : vector<1x8xf32> to vector<1024x8xf32>
    %24 = arith.addf %21, %23 : vector<1024x8xf32>
    %cst_17 = arith.constant 0.000000e+00 : f32
    %25 = vector.broadcast %cst_17 : f32 to vector<1024x8xf32>
    %26 = arith.maximumf %24, %25 : vector<1024x8xf32>
    %27 = arith.truncf %26 : vector<1024x8xf32> to vector<1024x8xbf16>
    %c0_18 = arith.constant 0 : index
    %c0_19 = arith.constant 0 : index
    %28 = vector.load %arg8[%c0_18, %c0_19] : memref<8x1xbf16, #tpu.memory_space<vmem>>, vector<8x1xbf16>
    %cst_20 = arith.constant dense<0.000000e+00> : vector<1024x1xf32>
    %29 = tpu.matmul %27, %28, %cst_20 {dimension_numbers = #tpu.dot_dimension_numbers<[1], [0], [0], [1], [0, 0, 1, 1], [], []>} : vector<1024x8xbf16>, vector<8x1xbf16>, vector<1024x1xf32> -> vector<1024x1xf32>
    %c0_21 = arith.constant 0 : index
    %c0_22 = arith.constant 0 : index
    %30 = vector.load %arg9[%c0_21, %c0_22] : memref<1x1xf32, #tpu.memory_space<vmem>>, vector<1x1xf32>
    %31 = vector.broadcast %30 : vector<1x1xf32> to vector<1024x1xf32>
    %32 = arith.addf %29, %31 : vector<1024x1xf32>
    %33 = arith.negf %32 : vector<1024x1xf32>
    %34 = math.exp %33 : vector<1024x1xf32>
    %cst_23 = arith.constant 1.000000e+00 : f32
    %35 = vector.broadcast %cst_23 : f32 to vector<1024x1xf32>
    %36 = arith.addf %35, %34 : vector<1024x1xf32>
    %37 = arith.divf %35, %36 : vector<1024x1xf32>
    %c0_24 = arith.constant 0 : index
    %c0_25 = arith.constant 0 : index
    %38 = vector.load %arg10[%c0_24, %c0_25] : memref<1024x1xf32, #tpu.memory_space<vmem>>, vector<1024x1xf32>
    tpu.vector_store %arg10[%c0_24, %c0_25], %37 {strides = array<i32>} : memref<1024x1xf32, #tpu.memory_space<vmem>>, vector<1024x1xf32>,
    return
  }
  func.func @transform_0(%arg0: i32) -> (i32, i32) {
    %c0_i32 = arith.constant 0 : i32
    %c0_i32_0 = arith.constant 0 : i32
    return %arg0, %c0_i32 : i32, i32
  }
  func.func @transform_1(%arg0: i32) -> (i32, i32) {
    %c0_i32 = arith.constant 0 : i32
    %c0_i32_0 = arith.constant 0 : i32
    %c0_i32_1 = arith.constant 0 : i32
    return %c0_i32, %c0_i32_0 : i32, i32
  }
  func.func @transform_2(%arg0: i32) -> (i32, i32) {
    %c0_i32 = arith.constant 0 : i32
    %c0_i32_0 = arith.constant 0 : i32
    %c0_i32_1 = arith.constant 0 : i32
    return %c0_i32, %c0_i32_0 : i32, i32
  }
  func.func @transform_3(%arg0: i32) -> (i32, i32) {
    %c0_i32 = arith.constant 0 : i32
    %c0_i32_0 = arith.constant 0 : i32
    %c0_i32_1 = arith.constant 0 : i32
    return %c0_i32, %c0_i32_0 : i32, i32
  }
  func.func @transform_4(%arg0: i32) -> (i32, i32) {
    %c0_i32 = arith.constant 0 : i32
    %c0_i32_0 = arith.constant 0 : i32
    %c0_i32_1 = arith.constant 0 : i32
    return %c0_i32, %c0_i32_0 : i32, i32
  }
  func.func @transform_5(%arg0: i32) -> (i32, i32) {
    %c0_i32 = arith.constant 0 : i32
    %c0_i32_0 = arith.constant 0 : i32
    %c0_i32_1 = arith.constant 0 : i32
    return %c0_i32, %c0_i32_0 : i32, i32
  }
  func.func @transform_6(%arg0: i32) -> (i32, i32) {
    %c0_i32 = arith.constant 0 : i32
    %c0_i32_0 = arith.constant 0 : i32
    %c0_i32_1 = arith.constant 0 : i32
    return %c0_i32, %c0_i32_0 : i32, i32
  }
  func.func @transform_7(%arg0: i32) -> (i32, i32) {
    %c0_i32 = arith.constant 0 : i32
    %c0_i32_0 = arith.constant 0 : i32
    %c0_i32_1 = arith.constant 0 : i32
    return %c0_i32, %c0_i32_0 : i32, i32
  }
  func.func @transform_8(%arg0: i32) -> (i32, i32) {
    %c0_i32 = arith.constant 0 : i32
    %c0_i32_0 = arith.constant 0 : i32
    %c0_i32_1 = arith.constant 0 : i32
    return %c0_i32, %c0_i32_0 : i32, i32
  }
  func.func @transform_9(%arg0: i32) -> (i32, i32) {
    %c0_i32 = arith.constant 0 : i32
    %c0_i32_0 = arith.constant 0 : i32
    return %arg0, %c0_i32 : i32, i32
  }
}

</mosaic_0001>

<llo_original>
// kernel: discriminator_forward.1
$region0: #{discriminator_forward.1}
  #allocation0 [shape = 'u32[]', space=smem, size = 0x4, offset = 0x4, fixed_abs, tag = 'smem constant byte address 0x4 - core index']
  #allocation1 [shape = 'u32[144,128]{1,0:T(1,128)}', space=vmem, size = 0x12000, scoped, tag = 'internal scratch']
  #allocation2 [shape = 'f32[1,1]{1,0:T(1,128)S(1)}', space=vmem, size = 0x200, scoped, tag = 'scoped memory for discriminator_forward.1']
  %s0 = inlined_call_operand.vmem [shape: bf16[2048,64], index: 0, kind: input, shape index: {}]
  %s1 = inlined_call_operand.vmem [shape: bf16[64,32], index: 1, kind: input, shape index: {}]
  %s2 = inlined_call_operand.vmem [shape: f32[1,32], index: 2, kind: input, shape index: {}]
  %s3 = inlined_call_operand.vmem [shape: bf16[32,16], index: 3, kind: input, shape index: {}]
  %s4 = inlined_call_operand.vmem [shape: f32[1,16], index: 4, kind: input, shape index: {}]
  %s5 = inlined_call_operand.vmem [shape: bf16[8,8], index: 5, kind: input, shape index: {}]
  %s6 = inlined_call_operand.vmem [shape: f32[1,8], index: 6, kind: input, shape index: {}]
  %s7 = inlined_call_operand.vmem [shape: bf16[8,1], index: 7, kind: input, shape index: {}]
  %s8 = inlined_call_operand.<no memory space> [shape: f32[1,1], index: 8, kind: input, shape index: {}]
  %s9 = inlined_call_operand.vmem [shape: f32[2048,1], index: 9, kind: output, shape index: {}]
  %s10 = sld [smem:[#allocation0]]
  $region69: #{discriminator_forward.1} parent=0
    _
  %s12 = ssub.s32 1, %s10
  %s13 = scalar_select 0, %s12, %s10
  %v14 = vstv %s8
  %15 = vst [vmem:[#allocation2] sm:$0x1] %v14
  loop: start=0, step=1, limit=4
  $region2: #{discriminator_forward.1} parent=0 // loop_pre_header
    _
  $region3: #{discriminator_forward.1} parent=0 // loop_header
    %s17 = sphi 0, %s21
    %p18 = scmp.ge.s32.totalorder %s17, 4
    %s27 = sphi 0, %s29
    %s30 = sphi 0, %s27
    %s31 = sphi 0, %s30
    %s47 = sphi 0, %s31
    %s51 = sphi 0, %s51
    %s53 = sphi 0, %s51
    %s54 = sphi 0, %s53
    %s68 = sphi 0, %s54
    %s72 = sphi 0, %s72
    %s74 = sphi 0, %s72
    %s75 = sphi 0, %s74
    %s89 = sphi 0, %s75
    %s93 = sphi 0, %s93
    %s95 = sphi 0, %s93
    %s96 = sphi 0, %s95
    %s110 = sphi 0, %s96
    %s114 = sphi 0, %s114
    %s116 = sphi 0, %s114
    %s117 = sphi 0, %s116
    %s131 = sphi 0, %s117
    %s135 = sphi 0, %s135
    %s137 = sphi 0, %s135
    %s138 = sphi 0, %s137
    %s152 = sphi 0, %s138
    %s156 = sphi 0, %s156
    %s158 = sphi 0, %s156
    %s159 = sphi 0, %s158
    %s173 = sphi 0, %s159
    %s177 = sphi 0, %s177
    %s179 = sphi 0, %s177
    %s180 = sphi 0, %s179
    %s194 = sphi 0, %s180
    %s198 = sphi 0, %s198
    %s200 = sphi 0, %s198
    %s201 = sphi 0, %s200
    %s215 = sphi 0, %s201
    %s221 = sphi 0, %s223
    %s224 = sphi 0, %s221
    %s225 = sphi 0, %s224
    %s241 = sphi 0, %s225
  $region4: #{discriminator_forward.1} parent=0 // loop_header_branch
    %20 = sbr.rel (%p18) target = $region8
  $region5: #{discriminator_forward.1} parent=0 // loop_body
    %s22 = ssub.s32 %s17, 1
    %s23 = ssub.s32 %s17, 2
    %s24 = sadd.s32 %s17, 1
    %s25 = ssub.s32 %s17, %s24
    %p26 = scmp.eq.s32.totalorder %s25, 0
    %s28 = sadd.s32 %s27, 1
    %s29 = scalar_select %p26, %s27, %s28
    %p32 = pneg %p26
    %p33 = scmp.eq.s32.totalorder %s17, 1
    %p34 = por %p32, %p33
    %p35 = scmp.ne.s32.totalorder %s27, %s30
    %p36 = scmp.eq.s32.totalorder %s17, 0
    %p37 = por %p35, %p36
    %p38 = scmp.ne.s32.totalorder %s27, %s30
    %p39 = scmp.eq.s32.totalorder %s22, 1
    %p40 = por %p38, %p39
    %p41 = scmp.ne.s32.totalorder %s30, %s31
    %p42 = scmp.eq.s32.totalorder %s22, 0
    %p43 = por %p41, %p42
    %p44 = scmp.ne.s32.totalorder %s30, %s31
    %p45 = scmp.eq.s32.totalorder %s23, 1
    %p46 = por %p44, %p45
    %p48 = scmp.ne.s32.totalorder %s31, %s47
    %p49 = scmp.eq.s32.totalorder %s23, 0
    %p50 = por %p48, %p49
    %s52 = sadd.s32 %s51, 1
    %p55 = scmp.eq.s32.totalorder %s17, 1
    %p56 = scmp.ne.s32.totalorder %s51, %s53
    %p57 = scmp.eq.s32.totalorder %s17, 0
    %p58 = por %p56, %p57
    %p59 = scmp.ne.s32.totalorder %s51, %s53
    %p60 = scmp.eq.s32.totalorder %s22, 1
    %p61 = por %p59, %p60
    %p62 = scmp.ne.s32.totalorder %s53, %s54
    %p63 = scmp.eq.s32.totalorder %s22, 0
    %p64 = por %p62, %p63
    %p65 = scmp.ne.s32.totalorder %s53, %s54
    %p66 = scmp.eq.s32.totalorder %s23, 1
    %p67 = por %p65, %p66
    %p69 = scmp.ne.s32.totalorder %s54, %s68
    %p70 = scmp.eq.s32.totalorder %s23, 0
    %p71 = por %p69, %p70
    %s73 = sadd.s32 %s72, 1
    %p76 = scmp.eq.s32.totalorder %s17, 1
    %p77 = scmp.ne.s32.totalorder %s72, %s74
    %p78 = scmp.eq.s32.totalorder %s17, 0
    %p79 = por %p77, %p78
    %p80 = scmp.ne.s32.totalorder %s72, %s74
    %p81 = scmp.eq.s32.totalorder %s22, 1
    %p82 = por %p80, %p81
    %p83 = scmp.ne.s32.totalorder %s74, %s75
    %p84 = scmp.eq.s32.totalorder %s22, 0
    %p85 = por %p83, %p84
    %p86 = scmp.ne.s32.totalorder %s74, %s75
    %p87 = scmp.eq.s32.totalorder %s23, 1
    %p88 = por %p86, %p87
    %p90 = scmp.ne.s32.totalorder %s75, %s89
    %p91 = scmp.eq.s32.totalorder %s23, 0
    %p92 = por %p90, %p91
    %s94 = sadd.s32 %s93, 1
    %p97 = scmp.eq.s32.totalorder %s17, 1
    %p98 = scmp.ne.s32.totalorder %s93, %s95
    %p99 = scmp.eq.s32.totalorder %s17, 0
    %p100 = por %p98, %p99
    %p101 = scmp.ne.s32.totalorder %s93, %s95
    %p102 = scmp.eq.s32.totalorder %s22, 1
    %p103 = por %p101, %p102
    %p104 = scmp.ne.s32.totalorder %s95, %s96
    %p105 = scmp.eq.s32.totalorder %s22, 0
    %p106 = por %p104, %p105
    %p107 = scmp.ne.s32.totalorder %s95, %s96
    %p108 = scmp.eq.s32.totalorder %s23, 1
    %p109 = por %p107, %p108
    %p111 = scmp.ne.s32.totalorder %s96, %s110
    %p112 = scmp.eq.s32.totalorder %s23, 0
    %p113 = por %p111, %p112
    %s115 = sadd.s32 %s114, 1
    %p118 = scmp.eq.s32.totalorder %s17, 1
    %p119 = scmp.ne.s32.totalorder %s114, %s116
    %p120 = scmp.eq.s32.totalorder %s17, 0
    %p121 = por %p119, %p120
    %p122 = scmp.ne.s32.totalorder %s114, %s116
    %p123 = scmp.eq.s32.totalorder %s22, 1
    %p124 = por %p122, %p123
    %p125 = scmp.ne.s32.totalorder %s116, %s117
    %p126 = scmp.eq.s32.totalorder %s22, 0
    %p127 = por %p125, %p126
    %p128 = scmp.ne.s32.totalorder %s116, %s117
    %p129 = scmp.eq.s32.totalorder %s23, 1
    %p130 = por %p128, %p129
    %p132 = scmp.ne.s32.totalorder %s117, %s131
    %p133 = scmp.eq.s32.totalorder %s23, 0
    %p134 = por %p132, %p133
    %s136 = sadd.s32 %s135, 1
    %p139 = scmp.eq.s32.totalorder %s17, 1
    %p140 = scmp.ne.s32.totalorder %s135, %s137
    %p141 = scmp.eq.s32.totalorder %s17, 0
    %p142 = por %p140, %p141
    %p143 = scmp.ne.s32.totalorder %s135, %s137
    %p144 = scmp.eq.s32.totalorder %s22, 1
    %p145 = por %p143, %p144
    %p146 = scmp.ne.s32.totalorder %s137, %s138
    %p147 = scmp.eq.s32.totalorder %s22, 0
    %p148 = por %p146, %p147
    %p149 = scmp.ne.s32.totalorder %s137, %s138
    %p150 = scmp.eq.s32.totalorder %s23, 1
    %p151 = por %p149, %p150
    %p153 = scmp.ne.s32.totalorder %s138, %s152
    %p154 = scmp.eq.s32.totalorder %s23, 0
    %p155 = por %p153, %p154
    %s157 = sadd.s32 %s156, 1
    %p160 = scmp.eq.s32.totalorder %s17, 1
    %p161 = scmp.ne.s32.totalorder %s156, %s158
    %p162 = scmp.eq.s32.totalorder %s17, 0
    %p163 = por %p161, %p162
    %p164 = scmp.ne.s32.totalorder %s156, %s158
    %p165 = scmp.eq.s32.totalorder %s22, 1
    %p166 = por %p164, %p165
    %p167 = scmp.ne.s32.totalorder %s158, %s159
    %p168 = scmp.eq.s32.totalorder %s22, 0
    %p169 = por %p167, %p168
    %p170 = scmp.ne.s32.totalorder %s158, %s159
    %p171 = scmp.eq.s32.totalorder %s23, 1
    %p172 = por %p170, %p171
    %p174 = scmp.ne.s32.totalorder %s159, %s173
    %p175 = scmp.eq.s32.totalorder %s23, 0
    %p176 = por %p174, %p175
    %s178 = sadd.s32 %s177, 1
    %p181 = scmp.eq.s32.totalorder %s17, 1
    %p182 = scmp.ne.s32.totalorder %s177, %s179
    %p183 = scmp.eq.s32.totalorder %s17, 0
    %p184 = por %p182, %p183
    %p185 = scmp.ne.s32.totalorder %s177, %s179
    %p186 = scmp.eq.s32.totalorder %s22, 1
    %p187 = por %p185, %p186
    %p188 = scmp.ne.s32.totalorder %s179, %s180
    %p189 = scmp.eq.s32.totalorder %s22, 0
    %p190 = por %p188, %p189
    %p191 = scmp.ne.s32.totalorder %s179, %s180
    %p192 = scmp.eq.s32.totalorder %s23, 1
    %p193 = por %p191, %p192
    %p195 = scmp.ne.s32.totalorder %s180, %s194
    %p196 = scmp.eq.s32.totalorder %s23, 0
    %p197 = por %p195, %p196
    %s199 = sadd.s32 %s198, 1
    %p202 = scmp.eq.s32.totalorder %s17, 1
    %p203 = scmp.ne.s32.totalorder %s198, %s200
    %p204 = scmp.eq.s32.totalorder %s17, 0
    %p205 = por %p203, %p204
    %p206 = scmp.ne.s32.totalorder %s198, %s200
    %p207 = scmp.eq.s32.totalorder %s22, 1
    %p208 = por %p206, %p207
    %p209 = scmp.ne.s32.totalorder %s200, %s201
    %p210 = scmp.eq.s32.totalorder %s22, 0
    %p211 = por %p209, %p210
    %p212 = scmp.ne.s32.totalorder %s200, %s201
    %p213 = scmp.eq.s32.totalorder %s23, 1
    %p214 = por %p212, %p213
    %p216 = scmp.ne.s32.totalorder %s201, %s215
    %p217 = scmp.eq.s32.totalorder %s23, 0
    %p218 = por %p216, %p217
    %s219 = ssub.s32 %s17, %s24
    %p220 = scmp.eq.s32.totalorder %s219, 0
    %s222 = sadd.s32 %s221, 1
    %s223 = scalar_select %p220, %s221, %s222
    %p226 = pneg %p220
    %p227 = scmp.eq.s32.totalorder %s17, 1
    %p228 = por %p226, %p227
    %p229 = scmp.ne.s32.totalorder %s221, %s224
    %p230 = scmp.eq.s32.totalorder %s17, 0
    %p231 = por %p229, %p230
    %p232 = scmp.ne.s32.totalorder %s221, %s224
    %p233 = scmp.eq.s32.totalorder %s22, 1
    %p234 = por %p232, %p233
    %p235 = scmp.ne.s32.totalorder %s224, %s225
    %p236 = scmp.eq.s32.totalorder %s22, 0
    %p237 = por %p235, %p236
    %p238 = scmp.ne.s32.totalorder %s224, %s225
    %p239 = scmp.eq.s32.totalorder %s23, 1
    %p240 = por %p238, %p239
    %p242 = scmp.ne.s32.totalorder %s225, %s241
    %p243 = scmp.eq.s32.totalorder %s23, 0
    %p244 = por %p242, %p243
    %p245 = scmp.le.s32.totalorder 1, %s17
    %p246 = scmp.lt.s32.totalorder %s17, 3
    %p247 = pnand %p245, %p246
    %p248 = pneg %p247
    // Predicated region
    $region9: #{discriminator_forward.1} parent=5 // pred_check
      _
    $region10: #{discriminator_forward.1} parent=5 // pred_check_branch
      %250 = sbr.rel (%p247) target = $region12
    $region11: #{discriminator_forward.1} parent=5 // pred_region
      %s251 = ssub.s32 %s17, 1
      // Predicated region
      $region13: #{discriminator_forward.1} parent=11 // pred_check
        %p252 = pneg %p64
      $region14: #{discriminator_forward.1} parent=11 // pred_check_branch
        %254 = sbr.rel (%p252) target = $region16
      $region15: #{discriminator_forward.1} parent=11 // pred_region
        _
      $region16: #{discriminator_forward.1} parent=11 // pred_fallthru
        _
      // Predicated region
      $region17: #{discriminator_forward.1} parent=11 // pred_check
        %p255 = pneg %p85
      $region18: #{discriminator_forward.1} parent=11 // pred_check_branch
        %257 = sbr.rel (%p255) target = $region20
      $region19: #{discriminator_forward.1} parent=11 // pred_region
        _
      $region20: #{discriminator_forward.1} parent=11 // pred_fallthru
        _
      // Predicated region
      $region21: #{discriminator_forward.1} parent=11 // pred_check
        %p258 = pneg %p106
      $region22: #{discriminator_forward.1} parent=11 // pred_check_branch
        %260 = sbr.rel (%p258) target = $region24
      $region23: #{discriminator_forward.1} parent=11 // pred_region
        _
      $region24: #{discriminator_forward.1} parent=11 // pred_fallthru
        _
      // Predicated region
      $region25: #{discriminator_forward.1} parent=11 // pred_check
        %p261 = pneg %p127
      $region26: #{discriminator_forward.1} parent=11 // pred_check_branch
        %263 = sbr.rel (%p261) target = $region28
      $region27: #{discriminator_forward.1} parent=11 // pred_region
        _
      $region28: #{discriminator_forward.1} parent=11 // pred_fallthru
        _
      // Predicated region
      $region29: #{discriminator_forward.1} parent=11 // pred_check
        %p264 = pneg %p148
      $region30: #{discriminator_forward.1} parent=11 // pred_check_branch
        %266 = sbr.rel (%p264) target = $region32
      $region31: #{discriminator_forward.1} parent=11 // pred_region
        _
      $region32: #{discriminator_forward.1} parent=11 // pred_fallthru
        _
      // Predicated region
      $region33: #{discriminator_forward.1} parent=11 // pred_check
        %p267 = pneg %p169
      $region34: #{discriminator_forward.1} parent=11 // pred_check_branch
        %269 = sbr.rel (%p267) target = $region36
      $region35: #{discriminator_forward.1} parent=11 // pred_region
        _
      $region36: #{discriminator_forward.1} parent=11 // pred_fallthru
        _
      // Predicated region
      $region37: #{discriminator_forward.1} parent=11 // pred_check
        %p270 = pneg %p190
      $region38: #{discriminator_forward.1} parent=11 // pred_check_branch
        %272 = sbr.rel (%p270) target = $region40
      $region39: #{discriminator_forward.1} parent=11 // pred_region
        _
      $region40: #{discriminator_forward.1} parent=11 // pred_fallthru
        _
      // Predicated region
      $region41: #{discriminator_forward.1} parent=11 // pred_check
        %p273 = pneg %p211
      $region42: #{discriminator_forward.1} parent=11 // pred_check_branch
        %275 = sbr.rel (%p273) target = $region44
      $region43: #{discriminator_forward.1} parent=11 // pred_region
        _
      $region44: #{discriminator_forward.1} parent=11 // pred_fallthru
        _
    $region12: #{discriminator_forward.1} parent=5 // pred_fallthru
      _
    %p276 = scmp.lt.s32.totalorder %s17, 2
    // Predicated region
    $region45: #{discriminator_forward.1} parent=5 // pred_check
      %p277 = pneg %p276
    $region46: #{discriminator_forward.1} parent=5 // pred_check_branch
      %279 = sbr.rel (%p277) target = $region48
    $region47: #{discriminator_forward.1} parent=5 // pred_region
      // Predicated region
      $region49: #{discriminator_forward.1} parent=47 // pred_check
        %p280 = pneg %p37
      $region50: #{discriminator_forward.1} parent=47 // pred_check_branch
        %282 = sbr.rel (%p280) target = $region52
      $region51: #{discriminator_forward.1} parent=47 // pred_region
        %s283 = smul.u32 128, %s17
        %p284 = scmp.lt.s32.totalorder %s283, 255
        %s285 = scalar_select %p284, %s283, 255
        %s286 = smul.addr %s285, 4
        %s287 = scalar_lea.vmem %s0, %s286
        %s288 = smul.u32 128, %s17
      $region52: #{discriminator_forward.1} parent=47 // pred_fallthru
        _
    $region48: #{discriminator_forward.1} parent=5 // pred_fallthru
      _
    %p289 = scmp.le.s32.totalorder 1, %s17
    %p290 = scmp.lt.s32.totalorder %s17, 3
    %p291 = pnand %p289, %p290
    %p292 = pneg %p291
    // Predicated region
    $region53: #{discriminator_forward.1} parent=5 // pred_check
      _
    $region54: #{discriminator_forward.1} parent=5 // pred_check_branch
      %294 = sbr.rel (%p291) target = $region56
    $region55: #{discriminator_forward.1} parent=5 // pred_region
      %s295 = ssub.s32 %s17, 1
      %s296 = smul.u32 128, %s22
      %p297 = scmp.lt.s32.totalorder %s296, 255
      %s298 = scalar_select %p297, %s296, 255
      %s299 = smul.addr %s298, 4
      %s300 = scalar_lea.vmem %s0, %s299
      %p301 = pneg %p43
      %p302 = pneg %p40
      %p303 = pneg %p64
      %p304 = pneg %p61
      %p305 = pneg %p85
      %p306 = pneg %p82
      %p307 = pneg %p106
      %p308 = pneg %p103
      %p309 = pneg %p127
      %p310 = pneg %p124
      %p311 = pneg %p148
      %p312 = pneg %p145
      %p313 = pneg %p169
      %p314 = pneg %p166
      %p315 = pneg %p190
      %p316 = pneg %p187
      %p317 = pneg %p211
      %p318 = pneg %p208
      %p319 = pneg %p237
      %p320 = pneg %p234
      %s321 = smul.u32 128, %s22
      %p322 = scmp.lt.s32.totalorder %s321, 255
      %s323 = scalar_select %p322, %s321, 255
      %s324 = smul.addr %s323, 8
      %s325 = scalar_lea.vmem %s9, %s324
      %s326 = smul.u32 128, %s22
      %p327 = scmp.lt.s32.totalorder %s326, 255
      %s328 = scalar_select %p327, %s326, 255
      %s329 = smul.addr %s328, 4
      %s330 = scalar_lea.vmem %s0, %s329
      %s331 = smul.u32 128, %s22
      %s332 = smul.u32 128, %s22
      %p333 = scmp.lt.s32.totalorder %s332, 255
      %s334 = scalar_select %p333, %s332, 255
      %s335 = smul.addr %s334, 8
      %s336 = scalar_lea.vmem %s9, %s335
      %s337 = smul.u32 128, %s22
      %v339 = vld [vmem:[%s330] sm:$0xf]
      %v340 = vld [vmem:[%s330 + $0x4] sm:$0xf]
      %v341 = vld [vmem:[%s330 + $0x8] sm:$0xf]
      %v342 = vld [vmem:[%s330 + $0xc] sm:$0xf]
      %v343 = vld [vmem:[%s330 + $0x10] sm:$0xf]
      %v344 = vld [vmem:[%s330 + $0x14] sm:$0xf]
      %v345 = vld [vmem:[%s330 + $0x18] sm:$0xf]
      %v346 = vld [vmem:[%s330 + $0x1c] sm:$0xf]
      %v347 = vld [vmem:[%s330 + $0x20] sm:$0xf]
      %v348 = vld [vmem:[%s330 + $0x24] sm:$0xf]
      %v349 = vld [vmem:[%s330 + $0x28] sm:$0xf]
      %v350 = vld [vmem:[%s330 + $0x2c] sm:$0xf]
      %v351 = vld [vmem:[%s330 + $0x30] sm:$0xf]
      %v352 = vld [vmem:[%s330 + $0x34] sm:$0xf]
      %v353 = vld [vmem:[%s330 + $0x38] sm:$0xf]
      %v354 = vld [vmem:[%s330 + $0x3c] sm:$0xf]
      %v355 = vld [vmem:[%s330 + $0x40] sm:$0xf]
      %v356 = vld [vmem:[%s330 + $0x44] sm:$0xf]
      %v357 = vld [vmem:[%s330 + $0x48] sm:$0xf]
      %v358 = vld [vmem:[%s330 + $0x4c] sm:$0xf]
      %v359 = vld [vmem:[%s330 + $0x50] sm:$0xf]
      %v360 = vld [vmem:[%s330 + $0x54] sm:$0xf]
      %v361 = vld [vmem:[%s330 + $0x58] sm:$0xf]
      %v362 = vld [vmem:[%s330 + $0x5c] sm:$0xf]
      %v363 = vld [vmem:[%s330 + $0x60] sm:$0xf]
      %v364 = vld [vmem:[%s330 + $0x64] sm:$0xf]
      %v365 = vld [vmem:[%s330 + $0x68] sm:$0xf]
      %v366 = vld [vmem:[%s330 + $0x6c] sm:$0xf]
      %v367 = vld [vmem:[%s330 + $0x70] sm:$0xf]
      %v368 = vld [vmem:[%s330 + $0x74] sm:$0xf]
      %v369 = vld [vmem:[%s330 + $0x78] sm:$0xf]
      %v370 = vld [vmem:[%s330 + $0x7c] sm:$0xf]
      %v371 = vld [vmem:[%s330 + $0x80] sm:$0xf]
      %v372 = vld [vmem:[%s330 + $0x84] sm:$0xf]
      %v373 = vld [vmem:[%s330 + $0x88] sm:$0xf]
      %v374 = vld [vmem:[%s330 + $0x8c] sm:$0xf]
      %v375 = vld [vmem:[%s330 + $0x90] sm:$0xf]
      %v376 = vld [vmem:[%s330 + $0x94] sm:$0xf]
      %v377 = vld [vmem:[%s330 + $0x98] sm:$0xf]
      %v378 = vld [vmem:[%s330 + $0x9c] sm:$0xf]
      %v379 = vld [vmem:[%s330 + $0xa0] sm:$0xf]
      %v380 = vld [vmem:[%s330 + $0xa4] sm:$0xf]
      %v381 = vld [vmem:[%s330 + $0xa8] sm:$0xf]
      %v382 = vld [vmem:[%s330 + $0xac] sm:$0xf]
      %v383 = vld [vmem:[%s330 + $0xb0] sm:$0xf]
      %v384 = vld [vmem:[%s330 + $0xb4] sm:$0xf]
      %v385 = vld [vmem:[%s330 + $0xb8] sm:$0xf]
      %v386 = vld [vmem:[%s330 + $0xbc] sm:$0xf]
      %v387 = vld [vmem:[%s330 + $0xc0] sm:$0xf]
      %v388 = vld [vmem:[%s330 + $0xc4] sm:$0xf]
      %v389 = vld [vmem:[%s330 + $0xc8] sm:$0xf]
      %v390 = vld [vmem:[%s330 + $0xcc] sm:$0xf]
      %v391 = vld [vmem:[%s330 + $0xd0] sm:$0xf]
      %v392 = vld [vmem:[%s330 + $0xd4] sm:$0xf]
      %v393 = vld [vmem:[%s330 + $0xd8] sm:$0xf]
      %v394 = vld [vmem:[%s330 + $0xdc] sm:$0xf]
      %v395 = vld [vmem:[%s330 + $0xe0] sm:$0xf]
      %v396 = vld [vmem:[%s330 + $0xe4] sm:$0xf]
      %v397 = vld [vmem:[%s330 + $0xe8] sm:$0xf]
      %v398 = vld [vmem:[%s330 + $0xec] sm:$0xf]
      %v399 = vld [vmem:[%s330 + $0xf0] sm:$0xf]
      %v400 = vld [vmem:[%s330 + $0xf4] sm:$0xf]
      %v401 = vld [vmem:[%s330 + $0xf8] sm:$0xf]
      %v402 = vld [vmem:[%s330 + $0xfc] sm:$0xf]
      %v403 = vld [vmem:[%s330 + $0x100] sm:$0xf]
      %v404 = vld [vmem:[%s330 + $0x104] sm:$0xf]
      %v405 = vld [vmem:[%s330 + $0x108] sm:$0xf]
      %v406 = vld [vmem:[%s330 + $0x10c] sm:$0xf]
      %v407 = vld [vmem:[%s330 + $0x110] sm:$0xf]
      %v408 = vld [vmem:[%s330 + $0x114] sm:$0xf]
      %v409 = vld [vmem:[%s330 + $0x118] sm:$0xf]
      %v410 = vld [vmem:[%s330 + $0x11c] sm:$0xf]
      %v411 = vld [vmem:[%s330 + $0x120] sm:$0xf]
      %v412 = vld [vmem:[%s330 + $0x124] sm:$0xf]
      %v413 = vld [vmem:[%s330 + $0x128] sm:$0xf]
      %v414 = vld [vmem:[%s330 + $0x12c] sm:$0xf]
      %v415 = vld [vmem:[%s330 + $0x130] sm:$0xf]
      %v416 = vld [vmem:[%s330 + $0x134] sm:$0xf]
      %v417 = vld [vmem:[%s330 + $0x138] sm:$0xf]
      %v418 = vld [vmem:[%s330 + $0x13c] sm:$0xf]
      %v419 = vld [vmem:[%s330 + $0x140] sm:$0xf]
      %v420 = vld [vmem:[%s330 + $0x144] sm:$0xf]
      %v421 = vld [vmem:[%s330 + $0x148] sm:$0xf]
      %v422 = vld [vmem:[%s330 + $0x14c] sm:$0xf]
      %v423 = vld [vmem:[%s330 + $0x150] sm:$0xf]
      %v424 = vld [vmem:[%s330 + $0x154] sm:$0xf]
      %v425 = vld [vmem:[%s330 + $0x158] sm:$0xf]
      %v426 = vld [vmem:[%s330 + $0x15c] sm:$0xf]
      %v427 = vld [vmem:[%s330 + $0x160] sm:$0xf]
      %v428 = vld [vmem:[%s330 + $0x164] sm:$0xf]
      %v429 = vld [vmem:[%s330 + $0x168] sm:$0xf]
      %v430 = vld [vmem:[%s330 + $0x16c] sm:$0xf]
      %v431 = vld [vmem:[%s330 + $0x170] sm:$0xf]
      %v432 = vld [vmem:[%s330 + $0x174] sm:$0xf]
      %v433 = vld [vmem:[%s330 + $0x178] sm:$0xf]
      %v434 = vld [vmem:[%s330 + $0x17c] sm:$0xf]
      %v435 = vld [vmem:[%s330 + $0x180] sm:$0xf]
      %v436 = vld [vmem:[%s330 + $0x184] sm:$0xf]
      %v437 = vld [vmem:[%s330 + $0x188] sm:$0xf]
      %v438 = vld [vmem:[%s330 + $0x18c] sm:$0xf]
      %v439 = vld [vmem:[%s330 + $0x190] sm:$0xf]
      %v440 = vld [vmem:[%s330 + $0x194] sm:$0xf]
      %v441 = vld [vmem:[%s330 + $0x198] sm:$0xf]
      %v442 = vld [vmem:[%s330 + $0x19c] sm:$0xf]
      %v443 = vld [vmem:[%s330 + $0x1a0] sm:$0xf]
      %v444 = vld [vmem:[%s330 + $0x1a4] sm:$0xf]
      %v445 = vld [vmem:[%s330 + $0x1a8] sm:$0xf]
      %v446 = vld [vmem:[%s330 + $0x1ac] sm:$0xf]
      %v447 = vld [vmem:[%s330 + $0x1b0] sm:$0xf]
      %v448 = vld [vmem:[%s330 + $0x1b4] sm:$0xf]
      %v449 = vld [vmem:[%s330 + $0x1b8] sm:$0xf]
      %v450 = vld [vmem:[%s330 + $0x1bc] sm:$0xf]
      %v451 = vld [vmem:[%s330 + $0x1c0] sm:$0xf]
      %v452 = vld [vmem:[%s330 + $0x1c4] sm:$0xf]
      %v453 = vld [vmem:[%s330 + $0x1c8] sm:$0xf]
      %v454 = vld [vmem:[%s330 + $0x1cc] sm:$0xf]
      %v455 = vld [vmem:[%s330 + $0x1d0] sm:$0xf]
      %v456 = vld [vmem:[%s330 + $0x1d4] sm:$0xf]
      %v457 = vld [vmem:[%s330 + $0x1d8] sm:$0xf]
      %v458 = vld [vmem:[%s330 + $0x1dc] sm:$0xf]
      %v459 = vld [vmem:[%s330 + $0x1e0] sm:$0xf]
      %v460 = vld [vmem:[%s330 + $0x1e4] sm:$0xf]
      %v461 = vld [vmem:[%s330 + $0x1e8] sm:$0xf]
      %v462 = vld [vmem:[%s330 + $0x1ec] sm:$0xf]
      %v463 = vld [vmem:[%s330 + $0x1f0] sm:$0xf]
      %v464 = vld [vmem:[%s330 + $0x1f4] sm:$0xf]
      %v465 = vld [vmem:[%s330 + $0x1f8] sm:$0xf]
      %v466 = vld [vmem:[%s330 + $0x1fc] sm:$0xf]
      %v467 = vld [vmem:[%s1] sm:$0xf]
      %v468 = vld [vmem:[%s1 + $0x4] sm:$0xf]
      %v469 = vld [vmem:[%s1 + $0x8] sm:$0xf]
      %v470 = vld [vmem:[%s1 + $0xc] sm:$0xf]
      %v471 = vld [vmem:[%s1 + $0x10] sm:$0xf]
      %v472 = vld [vmem:[%s1 + $0x14] sm:$0xf]
      %v473 = vld [vmem:[%s1 + $0x18] sm:$0xf]
      %v474 = vld [vmem:[%s1 + $0x1c] sm:$0xf]
      %v475 = vld [vmem:[%s2] sm:$0x1]
      %v477 = vlaneseq
      %v478 = vshrl.u32 %v477, 7
      %v479 = vsub.s32 0, %v478
      %v480 = vrot.slane %v475, %v479
      %v610 = vunpack.c.l.b16 %v339
      %v611 = vunpack.c.l.b16 %v340
      %v612 = vunpack.c.l.b16 %v341
      %v613 = vunpack.c.l.b16 %v342
      %v614 = vunpack.c.l.b16 %v343
      %v615 = vunpack.c.l.b16 %v344
      %v616 = vunpack.c.l.b16 %v345
      %v617 = vunpack.c.l.b16 %v346
      %v618 = vunpack.c.l.b16 %v347
      %v619 = vunpack.c.l.b16 %v348
      %v620 = vunpack.c.l.b16 %v349
      %v621 = vunpack.c.l.b16 %v350
      %v622 = vunpack.c.l.b16 %v351
      %v623 = vunpack.c.l.b16 %v352
      %v624 = vunpack.c.l.b16 %v353
      %v625 = vunpack.c.l.b16 %v354
      %v626 = vunpack.c.l.b16 %v355
      %v627 = vunpack.c.l.b16 %v356
      %v628 = vunpack.c.l.b16 %v357
      %v629 = vunpack.c.l.b16 %v358
      %v630 = vunpack.c.l.b16 %v359
      %v631 = vunpack.c.l.b16 %v360
      %v632 = vunpack.c.l.b16 %v361
      %v633 = vunpack.c.l.b16 %v362
      %v634 = vunpack.c.l.b16 %v363
      %v635 = vunpack.c.l.b16 %v364
      %v636 = vunpack.c.l.b16 %v365
      %v637 = vunpack.c.l.b16 %v366
      %v638 = vunpack.c.l.b16 %v367
      %v639 = vunpack.c.l.b16 %v368
      %v640 = vunpack.c.l.b16 %v369
      %v641 = vunpack.c.l.b16 %v370
      %v642 = vunpack.c.l.b16 %v371
      %v643 = vunpack.c.l.b16 %v372
      %v644 = vunpack.c.l.b16 %v373
      %v645 = vunpack.c.l.b16 %v374
      %v646 = vunpack.c.l.b16 %v375
      %v647 = vunpack.c.l.b16 %v376
      %v648 = vunpack.c.l.b16 %v377
      %v649 = vunpack.c.l.b16 %v378
      %v650 = vunpack.c.l.b16 %v379
      %v651 = vunpack.c.l.b16 %v380
      %v652 = vunpack.c.l.b16 %v381
      %v653 = vunpack.c.l.b16 %v382
      %v654 = vunpack.c.l.b16 %v383
      %v655 = vunpack.c.l.b16 %v384
      %v656 = vunpack.c.l.b16 %v385
      %v657 = vunpack.c.l.b16 %v386
      %v658 = vunpack.c.l.b16 %v387
      %v659 = vunpack.c.l.b16 %v388
      %v660 = vunpack.c.l.b16 %v389
      %v661 = vunpack.c.l.b16 %v390
      %v662 = vunpack.c.l.b16 %v391
      %v663 = vunpack.c.l.b16 %v392
      %v664 = vunpack.c.l.b16 %v393
      %v665 = vunpack.c.l.b16 %v394
      %v666 = vunpack.c.l.b16 %v395
      %v667 = vunpack.c.l.b16 %v396
      %v668 = vunpack.c.l.b16 %v397
      %v669 = vunpack.c.l.b16 %v398
      %v670 = vunpack.c.l.b16 %v399
      %v671 = vunpack.c.l.b16 %v400
      %v672 = vunpack.c.l.b16 %v401
      %v673 = vunpack.c.l.b16 %v402
      %v674 = vunpack.c.l.b16 %v403
      %v675 = vunpack.c.l.b16 %v404
      %v676 = vunpack.c.l.b16 %v405
      %v677 = vunpack.c.l.b16 %v406
      %v678 = vunpack.c.l.b16 %v407
      %v679 = vunpack.c.l.b16 %v408
      %v680 = vunpack.c.l.b16 %v409
      %v681 = vunpack.c.l.b16 %v410
      %v682 = vunpack.c.l.b16 %v411
      %v683 = vunpack.c.l.b16 %v412
      %v684 = vunpack.c.l.b16 %v413
      %v685 = vunpack.c.l.b16 %v414
      %v686 = vunpack.c.l.b16 %v415
      %v687 = vunpack.c.l.b16 %v416
      %v688 = vunpack.c.l.b16 %v417
      %v689 = vunpack.c.l.b16 %v418
      %v690 = vunpack.c.l.b16 %v419
      %v691 = vunpack.c.l.b16 %v420
      %v692 = vunpack.c.l.b16 %v421
      %v693 = vunpack.c.l.b16 %v422
      %v694 = vunpack.c.l.b16 %v423
      %v695 = vunpack.c.l.b16 %v424
      %v696 = vunpack.c.l.b16 %v425
      %v697 = vunpack.c.l.b16 %v426
      %v698 = vunpack.c.l.b16 %v427
      %v699 = vunpack.c.l.b16 %v428
      %v700 = vunpack.c.l.b16 %v429
      %v701 = vunpack.c.l.b16 %v430
      %v702 = vunpack.c.l.b16 %v431
      %v703 = vunpack.c.l.b16 %v432
      %v704 = vunpack.c.l.b16 %v433
      %v705 = vunpack.c.l.b16 %v434
      %v706 = vunpack.c.l.b16 %v435
      %v707 = vunpack.c.l.b16 %v436
      %v708 = vunpack.c.l.b16 %v437
      %v709 = vunpack.c.l.b16 %v438
      %v710 = vunpack.c.l.b16 %v439
      %v711 = vunpack.c.l.b16 %v440
      %v712 = vunpack.c.l.b16 %v441
      %v713 = vunpack.c.l.b16 %v442
      %v714 = vunpack.c.l.b16 %v443
      %v715 = vunpack.c.l.b16 %v444
      %v716 = vunpack.c.l.b16 %v445
      %v717 = vunpack.c.l.b16 %v446
      %v718 = vunpack.c.l.b16 %v447
      %v719 = vunpack.c.l.b16 %v448
      %v720 = vunpack.c.l.b16 %v449
      %v721 = vunpack.c.l.b16 %v450
      %v722 = vunpack.c.l.b16 %v451
      %v723 = vunpack.c.l.b16 %v452
      %v724 = vunpack.c.l.b16 %v453
      %v725 = vunpack.c.l.b16 %v454
      %v726 = vunpack.c.l.b16 %v455
      %v727 = vunpack.c.l.b16 %v456
      %v728 = vunpack.c.l.b16 %v457
      %v729 = vunpack.c.l.b16 %v458
      %v730 = vunpack.c.l.b16 %v459
      %v731 = vunpack.c.l.b16 %v460
      %v732 = vunpack.c.l.b16 %v461
      %v733 = vunpack.c.l.b16 %v462
      %v734 = vunpack.c.l.b16 %v463
      %v735 = vunpack.c.l.b16 %v464
      %v736 = vunpack.c.l.b16 %v465
      %v737 = vunpack.c.l.b16 %v466
      %v738 = vpack.c.b16 %v611, %v610
      %v739 = vpack.c.b16 %v613, %v612
      %v740 = vpack.c.b16 %v615, %v614
      %v741 = vpack.c.b16 %v617, %v616
      %v742 = vpack.c.b16 %v619, %v618
      %v743 = vpack.c.b16 %v621, %v620
      %v744 = vpack.c.b16 %v623, %v622
      %v745 = vpack.c.b16 %v625, %v624
      %v746 = vpack.c.b16 %v627, %v626
      %v747 = vpack.c.b16 %v629, %v628
      %v748 = vpack.c.b16 %v631, %v630
      %v749 = vpack.c.b16 %v633, %v632
      %v750 = vpack.c.b16 %v635, %v634
      %v751 = vpack.c.b16 %v637, %v636
      %v752 = vpack.c.b16 %v639, %v638
      %v753 = vpack.c.b16 %v641, %v640
      %v754 = vpack.c.b16 %v643, %v642
      %v755 = vpack.c.b16 %v645, %v644
      %v756 = vpack.c.b16 %v647, %v646
      %v757 = vpack.c.b16 %v649, %v648
      %v758 = vpack.c.b16 %v651, %v650
      %v759 = vpack.c.b16 %v653, %v652
      %v760 = vpack.c.b16 %v655, %v654
      %v761 = vpack.c.b16 %v657, %v656
      %v762 = vpack.c.b16 %v659, %v658
      %v763 = vpack.c.b16 %v661, %v660
      %v764 = vpack.c.b16 %v663, %v662
      %v765 = vpack.c.b16 %v665, %v664
      %v766 = vpack.c.b16 %v667, %v666
      %v767 = vpack.c.b16 %v669, %v668
      %v768 = vpack.c.b16 %v671, %v670
      %v769 = vpack.c.b16 %v673, %v672
      %v770 = vpack.c.b16 %v675, %v674
      %v771 = vpack.c.b16 %v677, %v676
      %v772 = vpack.c.b16 %v679, %v678
      %v773 = vpack.c.b16 %v681, %v680
      %v774 = vpack.c.b16 %v683, %v682
      %v775 = vpack.c.b16 %v685, %v684
      %v776 = vpack.c.b16 %v687, %v686
      %v777 = vpack.c.b16 %v689, %v688
      %v778 = vpack.c.b16 %v691, %v690
      %v779 = vpack.c.b16 %v693, %v692
      %v780 = vpack.c.b16 %v695, %v694
      %v781 = vpack.c.b16 %v697, %v696
      %v782 = vpack.c.b16 %v699, %v698
      %v783 = vpack.c.b16 %v701, %v700
      %v784 = vpack.c.b16 %v703, %v702
      %v785 = vpack.c.b16 %v705, %v704
      %v786 = vpack.c.b16 %v707, %v706
      %v787 = vpack.c.b16 %v709, %v708
      %v788 = vpack.c.b16 %v711, %v710
      %v789 = vpack.c.b16 %v713, %v712
      %v790 = vpack.c.b16 %v715, %v714
      %v791 = vpack.c.b16 %v717, %v716
      %v792 = vpack.c.b16 %v719, %v718
      %v793 = vpack.c.b16 %v721, %v720
      %v794 = vpack.c.b16 %v723, %v722
      %v795 = vpack.c.b16 %v725, %v724
      %v796 = vpack.c.b16 %v727, %v726
      %v797 = vpack.c.b16 %v729, %v728
      %v798 = vpack.c.b16 %v731, %v730
      %v799 = vpack.c.b16 %v733, %v732
      %v800 = vpack.c.b16 %v735, %v734
      %v801 = vpack.c.b16 %v737, %v736
      %v810 = vunpack.c.l.b16 %v467
      %v811 = vunpack.c.l.b16 %v468
      %v812 = vunpack.c.l.b16 %v469
      %v813 = vunpack.c.l.b16 %v470
      %v814 = vunpack.c.l.b16 %v471
      %v815 = vunpack.c.l.b16 %v472
      %v816 = vunpack.c.l.b16 %v473
      %v817 = vunpack.c.l.b16 %v474
      %v818 = vpack.c.b16 %v811, %v810
      %v819 = vpack.c.b16 %v813, %v812
      %v820 = vpack.c.b16 %v815, %v814
      %v821 = vpack.c.b16 %v817, %v816
      %vm826 = vcmask 523264
      %v828 = vsel %vm826, %v738, 0
      %v831 = vsel %vm826, %v739, 0
      %v834 = vsel %vm826, %v740, 0
      %v837 = vsel %vm826, %v741, 0
      %v840 = vsel %vm826, %v742, 0
      %v843 = vsel %vm826, %v743, 0
      %v846 = vsel %vm826, %v744, 0
      %v849 = vsel %vm826, %v745, 0
      %v852 = vsel %vm826, %v746, 0
      %v855 = vsel %vm826, %v747, 0
      %v858 = vsel %vm826, %v748, 0
      %v861 = vsel %vm826, %v749, 0
      %v864 = vsel %vm826, %v750, 0
      %v867 = vsel %vm826, %v751, 0
      %v870 = vsel %vm826, %v752, 0
      %v873 = vsel %vm826, %v753, 0
      %v876 = vsel %vm826, %v754, 0
      %v879 = vsel %vm826, %v755, 0
      %v882 = vsel %vm826, %v756, 0
      %v885 = vsel %vm826, %v757, 0
      %v888 = vsel %vm826, %v758, 0
      %v891 = vsel %vm826, %v759, 0
      %v894 = vsel %vm826, %v760, 0
      %v897 = vsel %vm826, %v761, 0
      %v900 = vsel %vm826, %v762, 0
      %v903 = vsel %vm826, %v763, 0
      %v906 = vsel %vm826, %v764, 0
      %v909 = vsel %vm826, %v765, 0
      %v912 = vsel %vm826, %v766, 0
      %v915 = vsel %vm826, %v767, 0
      %v918 = vsel %vm826, %v768, 0
      %v921 = vsel %vm826, %v769, 0
      %v924 = vsel %vm826, %v770, 0
      %v927 = vsel %vm826, %v771, 0
      %v930 = vsel %vm826, %v772, 0
      %v933 = vsel %vm826, %v773, 0
      %v936 = vsel %vm826, %v774, 0
      %v939 = vsel %vm826, %v775, 0
      %v942 = vsel %vm826, %v776, 0
      %v945 = vsel %vm826, %v777, 0
      %v948 = vsel %vm826, %v778, 0
      %v951 = vsel %vm826, %v779, 0
      %v954 = vsel %vm826, %v780, 0
      %v957 = vsel %vm826, %v781, 0
      %v960 = vsel %vm826, %v782, 0
      %v963 = vsel %vm826, %v783, 0
      %v966 = vsel %vm826, %v784, 0
      %v969 = vsel %vm826, %v785, 0
      %v972 = vsel %vm826, %v786, 0
      %v975 = vsel %vm826, %v787, 0
      %v978 = vsel %vm826, %v788, 0
      %v981 = vsel %vm826, %v789, 0
      %v984 = vsel %vm826, %v790, 0
      %v987 = vsel %vm826, %v791, 0
      %v990 = vsel %vm826, %v792, 0
      %v993 = vsel %vm826, %v793, 0
      %v996 = vsel %vm826, %v794, 0
      %v999 = vsel %vm826, %v795, 0
      %v1002 = vsel %vm826, %v796, 0
      %v1005 = vsel %vm826, %v797, 0
      %v1008 = vsel %vm826, %v798, 0
      %v1011 = vsel %vm826, %v799, 0
      %v1014 = vsel %vm826, %v800, 0
      %v1017 = vsel %vm826, %v801, 0
      %1019 = vmatprep.subr.bf16.mxu0 0
      %1020 = vmatpush1.bf16.msra.mxu0 %v818
      %1021 = vmatprep.subr.bf16.mxu0 0
      %1022 = vmatpush1.bf16.msra.mxu0 %v819
      %1023 = vmatprep.subr.bf16.mxu0 0
      %1024 = vmatpush1.bf16.msra.mxu0 %v820
      %1025 = vmatprep.subr.bf16.mxu0 0
      %1026 = vmatpush1.bf16.msra.mxu0 %v821
      %1027 = vmatprep.subr.bf16.mxu0 0
      %1028 = vmatpush1.bf16.msra.mxu0 0
      %1029 = vmatprep.subr.bf16.mxu0 0
      %1030 = vmatpush1.bf16.msra.mxu0 0
      %1031 = vmatprep.subr.bf16.mxu0 0
      %1032 = vmatpush1.bf16.msra.mxu0 0
      %1033 = vmatprep.subr.bf16.mxu0 0
      %1034 = vmatpush1.bf16.msra.mxu0 0
      %1035 = vmatprep.subr.bf16.mxu0 0
      %1036 = vmatpush1.bf16.msra.mxu0 0
      %1037 = vmatprep.subr.bf16.mxu0 0
      %1038 = vmatpush1.bf16.msra.mxu0 0
      %1039 = vmatprep.subr.bf16.mxu0 0
      %1040 = vmatpush1.bf16.msra.mxu0 0
      %1041 = vmatprep.subr.bf16.mxu0 0
      %1042 = vmatpush1.bf16.msra.mxu0 0
      %1043 = vmatprep.subr.bf16.mxu0 0
      %1044 = vmatpush1.bf16.msra.mxu0 0
      %1045 = vmatprep.subr.bf16.mxu0 0
      %1046 = vmatpush1.bf16.msra.mxu0 0
      %1047 = vmatprep.subr.bf16.mxu0 0
      %1048 = vmatpush1.bf16.msra.mxu0 0
      %1049 = vmatprep.subr.bf16.mxu0 0
      %1050 = vmatpush1.bf16.msra.mxu0 0
      %1051 = vmatprep.mubr.bf16.mxu0 0
      %1052 = vmatmul.mubr.bf16.gmra.mrb[0].mxu0 %v828
      %v1053 = vpop.f32.mrb[0].mxu0
      %v1054 = vadd.f32 %v480, %v1053
      %v1055 = vpop.f32.mrb[0].mxu0
      %v1056 = vpop.f32.mrb[0].mxu0
      %v1057 = vadd.f32 %v480, %v1056
      %v1058 = vpop.f32.mrb[0].mxu0
      %1059 = vmatprep.mubr.bf16.mxu0 0
      %1060 = vmatmul.mubr.bf16.gmra.mrb[0].mxu0 %v831
      %v1061 = vpop.f32.mrb[0].mxu0
      %v1062 = vadd.f32 %v480, %v1061
      %v1063 = vpop.f32.mrb[0].mxu0
      %v1064 = vpop.f32.mrb[0].mxu0
      %v1065 = vadd.f32 %v480, %v1064
      %v1066 = vpop.f32.mrb[0].mxu0
      %1067 = vmatprep.mubr.bf16.mxu0 0
      %1068 = vmatmul.mubr.bf16.gmra.mrb[0].mxu0 %v834
      %v1069 = vpop.f32.mrb[0].mxu0
      %v1070 = vadd.f32 %v480, %v1069
      %v1071 = vpop.f32.mrb[0].mxu0
      %v1072 = vpop.f32.mrb[0].mxu0
      %v1073 = vadd.f32 %v480, %v1072
      %v1074 = vpop.f32.mrb[0].mxu0
      %1075 = vmatprep.mubr.bf16.mxu0 0
      %1076 = vmatmul.mubr.bf16.gmra.mrb[0].mxu0 %v837
      %v1077 = vpop.f32.mrb[0].mxu0
      %v1078 = vadd.f32 %v480, %v1077
      %v1079 = vpop.f32.mrb[0].mxu0
      %v1080 = vpop.f32.mrb[0].mxu0
      %v1081 = vadd.f32 %v480, %v1080
      %v1082 = vpop.f32.mrb[0].mxu0
      %1083 = vmatprep.mubr.bf16.mxu0 0
      %1084 = vmatmul.mubr.bf16.gmra.mrb[0].mxu0 %v840
      %v1085 = vpop.f32.mrb[0].mxu0
      %v1086 = vadd.f32 %v480, %v1085
      %v1087 = vpop.f32.mrb[0].mxu0
      %v1088 = vpop.f32.mrb[0].mxu0
      %v1089 = vadd.f32 %v480, %v1088
      %v1090 = vpop.f32.mrb[0].mxu0
      %1091 = vmatprep.mubr.bf16.mxu0 0
      %1092 = vmatmul.mubr.bf16.gmra.mrb[0].mxu0 %v843
      %v1093 = vpop.f32.mrb[0].mxu0
      %v1094 = vadd.f32 %v480, %v1093
      %v1095 = vpop.f32.mrb[0].mxu0
      %v1096 = vpop.f32.mrb[0].mxu0
      %v1097 = vadd.f32 %v480, %v1096
      %v1098 = vpop.f32.mrb[0].mxu0
      %1099 = vmatprep.mubr.bf16.mxu0 0
      %1100 = vmatmul.mubr.bf16.gmra.mrb[0].mxu0 %v846
      %v1101 = vpop.f32.mrb[0].mxu0
      %v1102 = vadd.f32 %v480, %v1101
      %v1103 = vpop.f32.mrb[0].mxu0
      %v1104 = vpop.f32.mrb[0].mxu0
      %v1105 = vadd.f32 %v480, %v1104
      %v1106 = vpop.f32.mrb[0].mxu0
      %1107 = vmatprep.mubr.bf16.mxu0 0
      %1108 = vmatmul.mubr.bf16.gmra.mrb[0].mxu0 %v849
      %v1109 = vpop.f32.mrb[0].mxu0
      %v1110 = vadd.f32 %v480, %v1109
      %v1111 = vpop.f32.mrb[0].mxu0
      %v1112 = vpop.f32.mrb[0].mxu0
      %v1113 = vadd.f32 %v480, %v1112
      %v1114 = vpop.f32.mrb[0].mxu0
      %1115 = vmatprep.mubr.bf16.mxu0 0
      %1116 = vmatmul.mubr.bf16.gmra.mrb[0].mxu0 %v852
      %v1117 = vpop.f32.mrb[0].mxu0
      %v1118 = vadd.f32 %v480, %v1117
      %v1119 = vpop.f32.mrb[0].mxu0
      %v1120 = vpop.f32.mrb[0].mxu0
      %v1121 = vadd.f32 %v480, %v1120
      %v1122 = vpop.f32.mrb[0].mxu0
      %1123 = vmatprep.mubr.bf16.mxu0 0
      %1124 = vmatmul.mubr.bf16.gmra.mrb[0].mxu0 %v855
      %v1125 = vpop.f32.mrb[0].mxu0
      %v1126 = vadd.f32 %v480, %v1125
      %v1127 = vpop.f32.mrb[0].mxu0
      %v1128 = vpop.f32.mrb[0].mxu0
      %v1129 = vadd.f32 %v480, %v1128
      %v1130 = vpop.f32.mrb[0].mxu0
      %1131 = vmatprep.mubr.bf16.mxu0 0
      %1132 = vmatmul.mubr.bf16.gmra.mrb[0].mxu0 %v858
      %v1133 = vpop.f32.mrb[0].mxu0
      %v1134 = vadd.f32 %v480, %v1133
      %v1135 = vpop.f32.mrb[0].mxu0
      %v1136 = vpop.f32.mrb[0].mxu0
      %v1137 = vadd.f32 %v480, %v1136
      %v1138 = vpop.f32.mrb[0].mxu0
      %1139 = vmatprep.mubr.bf16.mxu0 0
      %1140 = vmatmul.mubr.bf16.gmra.mrb[0].mxu0 %v861
      %v1141 = vpop.f32.mrb[0].mxu0
      %v1142 = vadd.f32 %v480, %v1141
      %v1143 = vpop.f32.mrb[0].mxu0
      %v1144 = vpop.f32.mrb[0].mxu0
      %v1145 = vadd.f32 %v480, %v1144
      %v1146 = vpop.f32.mrb[0].mxu0
      %1147 = vmatprep.mubr.bf16.mxu0 0
      %1148 = vmatmul.mubr.bf16.gmra.mrb[0].mxu0 %v864
      %v1149 = vpop.f32.mrb[0].mxu0
      %v1150 = vadd.f32 %v480, %v1149
      %v1151 = vpop.f32.mrb[0].mxu0
      %v1152 = vpop.f32.mrb[0].mxu0
      %v1153 = vadd.f32 %v480, %v1152
      %v1154 = vpop.f32.mrb[0].mxu0
      %1155 = vmatprep.mubr.bf16.mxu0 0
      %1156 = vmatmul.mubr.bf16.gmra.mrb[0].mxu0 %v867
      %v1157 = vpop.f32.mrb[0].mxu0
      %v1158 = vadd.f32 %v480, %v1157
      %v1159 = vpop.f32.mrb[0].mxu0
      %v1160 = vpop.f32.mrb[0].mxu0
      %v1161 = vadd.f32 %v480, %v1160
      %v1162 = vpop.f32.mrb[0].mxu0
      %1163 = vmatprep.mubr.bf16.mxu0 0
      %1164 = vmatmul.mubr.bf16.gmra.mrb[0].mxu0 %v870
      %v1165 = vpop.f32.mrb[0].mxu0
      %v1166 = vadd.f32 %v480, %v1165
      %v1167 = vpop.f32.mrb[0].mxu0
      %v1168 = vpop.f32.mrb[0].mxu0
      %v1169 = vadd.f32 %v480, %v1168
      %v1170 = vpop.f32.mrb[0].mxu0
      %1171 = vmatprep.mubr.bf16.mxu0 0
      %1172 = vmatmul.mubr.bf16.gmra.mrb[0].mxu0 %v873
      %v1173 = vpop.f32.mrb[0].mxu0
      %v1174 = vadd.f32 %v480, %v1173
      %v1175 = vpop.f32.mrb[0].mxu0
      %v1176 = vpop.f32.mrb[0].mxu0
      %v1177 = vadd.f32 %v480, %v1176
      %v1178 = vpop.f32.mrb[0].mxu0
      %1179 = vmatprep.mubr.bf16.mxu0 0
      %1180 = vmatmul.mubr.bf16.gmra.mrb[0].mxu0 %v876
      %v1181 = vpop.f32.mrb[0].mxu0
      %v1182 = vadd.f32 %v480, %v1181
      %v1183 = vpop.f32.mrb[0].mxu0
      %v1184 = vpop.f32.mrb[0].mxu0
      %v1185 = vadd.f32 %v480, %v1184
      %v1186 = vpop.f32.mrb[0].mxu0
      %1187 = vmatprep.mubr.bf16.mxu0 0
      %1188 = vmatmul.mubr.bf16.gmra.mrb[0].mxu0 %v879
      %v1189 = vpop.f32.mrb[0].mxu0
      %v1190 = vadd.f32 %v480, %v1189
      %v1191 = vpop.f32.mrb[0].mxu0
      %v1192 = vpop.f32.mrb[0].mxu0
      %v1193 = vadd.f32 %v480, %v1192
      %v1194 = vpop.f32.mrb[0].mxu0
      %1195 = vmatprep.mubr.bf16.mxu0 0
      %1196 = vmatmul.mubr.bf16.gmra.mrb[0].mxu0 %v882
      %v1197 = vpop.f32.mrb[0].mxu0
      %v1198 = vadd.f32 %v480, %v1197
      %v1199 = vpop.f32.mrb[0].mxu0
      %v1200 = vpop.f32.mrb[0].mxu0
      %v1201 = vadd.f32 %v480, %v1200
      %v1202 = vpop.f32.mrb[0].mxu0
      %1203 = vmatprep.mubr.bf16.mxu0 0
      %1204 = vmatmul.mubr.bf16.gmra.mrb[0].mxu0 %v885
      %v1205 = vpop.f32.mrb[0].mxu0
      %v1206 = vadd.f32 %v480, %v1205
      %v1207 = vpop.f32.mrb[0].mxu0
      %v1208 = vpop.f32.mrb[0].mxu0
      %v1209 = vadd.f32 %v480, %v1208
      %v1210 = vpop.f32.mrb[0].mxu0
      %1211 = vmatprep.mubr.bf16.mxu0 0
      %1212 = vmatmul.mubr.bf16.gmra.mrb[0].mxu0 %v888
      %v1213 = vpop.f32.mrb[0].mxu0
      %v1214 = vadd.f32 %v480, %v1213
      %v1215 = vpop.f32.mrb[0].mxu0
      %v1216 = vpop.f32.mrb[0].mxu0
      %v1217 = vadd.f32 %v480, %v1216
      %v1218 = vpop.f32.mrb[0].mxu0
      %1219 = vmatprep.mubr.bf16.mxu0 0
      %1220 = vmatmul.mubr.bf16.gmra.mrb[0].mxu0 %v891
      %v1221 = vpop.f32.mrb[0].mxu0
      %v1222 = vadd.f32 %v480, %v1221
      %v1223 = vpop.f32.mrb[0].mxu0
      %v1224 = vpop.f32.mrb[0].mxu0
      %v1225 = vadd.f32 %v480, %v1224
      %v1226 = vpop.f32.mrb[0].mxu0
      %1227 = vmatprep.mubr.bf16.mxu0 0
      %1228 = vmatmul.mubr.bf16.gmra.mrb[0].mxu0 %v894
      %v1229 = vpop.f32.mrb[0].mxu0
      %v1230 = vadd.f32 %v480, %v1229
      %v1231 = vpop.f32.mrb[0].mxu0
      %v1232 = vpop.f32.mrb[0].mxu0
      %v1233 = vadd.f32 %v480, %v1232
      %v1234 = vpop.f32.mrb[0].mxu0
      %1235 = vmatprep.mubr.bf16.mxu0 0
      %1236 = vmatmul.mubr.bf16.gmra.mrb[0].mxu0 %v897
      %v1237 = vpop.f32.mrb[0].mxu0
      %v1238 = vadd.f32 %v480, %v1237
      %v1239 = vpop.f32.mrb[0].mxu0
      %v1240 = vpop.f32.mrb[0].mxu0
      %v1241 = vadd.f32 %v480, %v1240
      %v1242 = vpop.f32.mrb[0].mxu0
      %1243 = vmatprep.mubr.bf16.mxu0 0
      %1244 = vmatmul.mubr.bf16.gmra.mrb[0].mxu0 %v900
      %v1245 = vpop.f32.mrb[0].mxu0
      %v1246 = vadd.f32 %v480, %v1245
      %v1247 = vpop.f32.mrb[0].mxu0
      %v1248 = vpop.f32.mrb[0].mxu0
      %v1249 = vadd.f32 %v480, %v1248
      %v1250 = vpop.f32.mrb[0].mxu0
      %1251 = vmatprep.mubr.bf16.mxu0 0
      %1252 = vmatmul.mubr.bf16.gmra.mrb[0].mxu0 %v903
      %v1253 = vpop.f32.mrb[0].mxu0
      %v1254 = vadd.f32 %v480, %v1253
      %v1255 = vpop.f32.mrb[0].mxu0
      %v1256 = vpop.f32.mrb[0].mxu0
      %v1257 = vadd.f32 %v480, %v1256
      %v1258 = vpop.f32.mrb[0].mxu0
      %1259 = vmatprep.mubr.bf16.mxu0 0
      %1260 = vmatmul.mubr.bf16.gmra.mrb[0].mxu0 %v906
      %v1261 = vpop.f32.mrb[0].mxu0
      %v1262 = vadd.f32 %v480, %v1261
      %v1263 = vpop.f32.mrb[0].mxu0
      %v1264 = vpop.f32.mrb[0].mxu0
      %v1265 = vadd.f32 %v480, %v1264
      %v1266 = vpop.f32.mrb[0].mxu0
      %1267 = vmatprep.mubr.bf16.mxu0 0
      %1268 = vmatmul.mubr.bf16.gmra.mrb[0].mxu0 %v909
      %v1269 = vpop.f32.mrb[0].mxu0
      %v1270 = vadd.f32 %v480, %v1269
      %v1271 = vpop.f32.mrb[0].mxu0
      %v1272 = vpop.f32.mrb[0].mxu0
      %v1273 = vadd.f32 %v480, %v1272
      %v1274 = vpop.f32.mrb[0].mxu0
      %1275 = vmatprep.mubr.bf16.mxu0 0
      %1276 = vmatmul.mubr.bf16.gmra.mrb[0].mxu0 %v912
      %v1277 = vpop.f32.mrb[0].mxu0
      %v1278 = vadd.f32 %v480, %v1277
      %v1279 = vpop.f32.mrb[0].mxu0
      %v1280 = vpop.f32.mrb[0].mxu0
      %v1281 = vadd.f32 %v480, %v1280
      %v1282 = vpop.f32.mrb[0].mxu0
      %1283 = vmatprep.mubr.bf16.mxu0 0
      %1284 = vmatmul.mubr.bf16.gmra.mrb[0].mxu0 %v915
      %v1285 = vpop.f32.mrb[0].mxu0
      %v1286 = vadd.f32 %v480, %v1285
      %v1287 = vpop.f32.mrb[0].mxu0
      %v1288 = vpop.f32.mrb[0].mxu0
      %v1289 = vadd.f32 %v480, %v1288
      %v1290 = vpop.f32.mrb[0].mxu0
      %1291 = vmatprep.mubr.bf16.mxu0 0
      %1292 = vmatmul.mubr.bf16.gmra.mrb[0].mxu0 %v918
      %v1293 = vpop.f32.mrb[0].mxu0
      %v1294 = vadd.f32 %v480, %v1293
      %v1295 = vpop.f32.mrb[0].mxu0
      %v1296 = vpop.f32.mrb[0].mxu0
      %v1297 = vadd.f32 %v480, %v1296
      %v1298 = vpop.f32.mrb[0].mxu0
      %1299 = vmatprep.mubr.bf16.mxu0 0
      %1300 = vmatmul.mubr.bf16.gmra.mrb[0].mxu0 %v921
      %v1301 = vpop.f32.mrb[0].mxu0
      %v1302 = vadd.f32 %v480, %v1301
      %v1303 = vpop.f32.mrb[0].mxu0
      %v1304 = vpop.f32.mrb[0].mxu0
      %v1305 = vadd.f32 %v480, %v1304
      %v1306 = vpop.f32.mrb[0].mxu0
      %1307 = vmatprep.mubr.bf16.mxu0 0
      %1308 = vmatmul.mubr.bf16.gmra.mrb[0].mxu0 %v924
      %v1309 = vpop.f32.mrb[0].mxu0
      %v1310 = vadd.f32 %v480, %v1309
      %v1311 = vpop.f32.mrb[0].mxu0
      %v1312 = vpop.f32.mrb[0].mxu0
      %v1313 = vadd.f32 %v480, %v1312
      %v1314 = vpop.f32.mrb[0].mxu0
      %1315 = vmatprep.mubr.bf16.mxu0 0
      %1316 = vmatmul.mubr.bf16.gmra.mrb[0].mxu0 %v927
      %v1317 = vpop.f32.mrb[0].mxu0
      %v1318 = vadd.f32 %v480, %v1317
      %v1319 = vpop.f32.mrb[0].mxu0
      %v1320 = vpop.f32.mrb[0].mxu0
      %v1321 = vadd.f32 %v480, %v1320
      %v1322 = vpop.f32.mrb[0].mxu0
      %1323 = vmatprep.mubr.bf16.mxu0 0
      %1324 = vmatmul.mubr.bf16.gmra.mrb[0].mxu0 %v930
      %v1325 = vpop.f32.mrb[0].mxu0
      %v1326 = vadd.f32 %v480, %v1325
      %v1327 = vpop.f32.mrb[0].mxu0
      %v1328 = vpop.f32.mrb[0].mxu0
      %v1329 = vadd.f32 %v480, %v1328
      %v1330 = vpop.f32.mrb[0].mxu0
      %1331 = vmatprep.mubr.bf16.mxu0 0
      %1332 = vmatmul.mubr.bf16.gmra.mrb[0].mxu0 %v933
      %v1333 = vpop.f32.mrb[0].mxu0
      %v1334 = vadd.f32 %v480, %v1333
      %v1335 = vpop.f32.mrb[0].mxu0
      %v1336 = vpop.f32.mrb[0].mxu0
      %v1337 = vadd.f32 %v480, %v1336
      %v1338 = vpop.f32.mrb[0].mxu0
      %1339 = vmatprep.mubr.bf16.mxu0 0
      %1340 = vmatmul.mubr.bf16.gmra.mrb[0].mxu0 %v936
      %v1341 = vpop.f32.mrb[0].mxu0
      %v1342 = vadd.f32 %v480, %v1341
      %v1343 = vpop.f32.mrb[0].mxu0
      %v1344 = vpop.f32.mrb[0].mxu0
      %v1345 = vadd.f32 %v480, %v1344
      %v1346 = vpop.f32.mrb[0].mxu0
      %1347 = vmatprep.mubr.bf16.mxu0 0
      %1348 = vmatmul.mubr.bf16.gmra.mrb[0].mxu0 %v939
      %v1349 = vpop.f32.mrb[0].mxu0
      %v1350 = vadd.f32 %v480, %v1349
      %v1351 = vpop.f32.mrb[0].mxu0
      %v1352 = vpop.f32.mrb[0].mxu0
      %v1353 = vadd.f32 %v480, %v1352
      %v1354 = vpop.f32.mrb[0].mxu0
      %1355 = vmatprep.mubr.bf16.mxu0 0
      %1356 = vmatmul.mubr.bf16.gmra.mrb[0].mxu0 %v942
      %v1357 = vpop.f32.mrb[0].mxu0
      %v1358 = vadd.f32 %v480, %v1357
      %v1359 = vpop.f32.mrb[0].mxu0
      %v1360 = vpop.f32.mrb[0].mxu0
      %v1361 = vadd.f32 %v480, %v1360
      %v1362 = vpop.f32.mrb[0].mxu0
      %1363 = vmatprep.mubr.bf16.mxu0 0
      %1364 = vmatmul.mubr.bf16.gmra.mrb[0].mxu0 %v945
      %v1365 = vpop.f32.mrb[0].mxu0
      %v1366 = vadd.f32 %v480, %v1365
      %v1367 = vpop.f32.mrb[0].mxu0
      %v1368 = vpop.f32.mrb[0].mxu0
      %v1369 = vadd.f32 %v480, %v1368
      %v1370 = vpop.f32.mrb[0].mxu0
      %1371 = vmatprep.mubr.bf16.mxu0 0
      %1372 = vmatmul.mubr.bf16.gmra.mrb[0].mxu0 %v948
      %v1373 = vpop.f32.mrb[0].mxu0
      %v1374 = vadd.f32 %v480, %v1373
      %v1375 = vpop.f32.mrb[0].mxu0
      %v1376 = vpop.f32.mrb[0].mxu0
      %v1377 = vadd.f32 %v480, %v1376
      %v1378 = vpop.f32.mrb[0].mxu0
      %1379 = vmatprep.mubr.bf16.mxu0 0
      %1380 = vmatmul.mubr.bf16.gmra.mrb[0].mxu0 %v951
      %v1381 = vpop.f32.mrb[0].mxu0
      %v1382 = vadd.f32 %v480, %v1381
      %v1383 = vpop.f32.mrb[0].mxu0
      %v1384 = vpop.f32.mrb[0].mxu0
      %v1385 = vadd.f32 %v480, %v1384
      %v1386 = vpop.f32.mrb[0].mxu0
      %1387 = vmatprep.mubr.bf16.mxu0 0
      %1388 = vmatmul.mubr.bf16.gmra.mrb[0].mxu0 %v954
      %v1389 = vpop.f32.mrb[0].mxu0
      %v1390 = vadd.f32 %v480, %v1389
      %v1391 = vpop.f32.mrb[0].mxu0
      %v1392 = vpop.f32.mrb[0].mxu0
      %v1393 = vadd.f32 %v480, %v1392
      %v1394 = vpop.f32.mrb[0].mxu0
      %1395 = vmatprep.mubr.bf16.mxu0 0
      %1396 = vmatmul.mubr.bf16.gmra.mrb[0].mxu0 %v957
      %v1397 = vpop.f32.mrb[0].mxu0
      %v1398 = vadd.f32 %v480, %v1397
      %v1399 = vpop.f32.mrb[0].mxu0
      %v1400 = vpop.f32.mrb[0].mxu0
      %v1401 = vadd.f32 %v480, %v1400
      %v1402 = vpop.f32.mrb[0].mxu0
      %1403 = vmatprep.mubr.bf16.mxu0 0
      %1404 = vmatmul.mubr.bf16.gmra.mrb[0].mxu0 %v960
      %v1405 = vpop.f32.mrb[0].mxu0
      %v1406 = vadd.f32 %v480, %v1405
      %v1407 = vpop.f32.mrb[0].mxu0
      %v1408 = vpop.f32.mrb[0].mxu0
      %v1409 = vadd.f32 %v480, %v1408
      %v1410 = vpop.f32.mrb[0].mxu0
      %1411 = vmatprep.mubr.bf16.mxu0 0
      %1412 = vmatmul.mubr.bf16.gmra.mrb[0].mxu0 %v963
      %v1413 = vpop.f32.mrb[0].mxu0
      %v1414 = vadd.f32 %v480, %v1413
      %v1415 = vpop.f32.mrb[0].mxu0
      %v1416 = vpop.f32.mrb[0].mxu0
      %v1417 = vadd.f32 %v480, %v1416
      %v1418 = vpop.f32.mrb[0].mxu0
      %1419 = vmatprep.mubr.bf16.mxu0 0
      %1420 = vmatmul.mubr.bf16.gmra.mrb[0].mxu0 %v966
      %v1421 = vpop.f32.mrb[0].mxu0
      %v1422 = vadd.f32 %v480, %v1421
      %v1423 = vpop.f32.mrb[0].mxu0
      %v1424 = vpop.f32.mrb[0].mxu0
      %v1425 = vadd.f32 %v480, %v1424
      %v1426 = vpop.f32.mrb[0].mxu0
      %1427 = vmatprep.mubr.bf16.mxu0 0
      %1428 = vmatmul.mubr.bf16.gmra.mrb[0].mxu0 %v969
      %v1429 = vpop.f32.mrb[0].mxu0
      %v1430 = vadd.f32 %v480, %v1429
      %v1431 = vpop.f32.mrb[0].mxu0
      %v1432 = vpop.f32.mrb[0].mxu0
      %v1433 = vadd.f32 %v480, %v1432
      %v1434 = vpop.f32.mrb[0].mxu0
      %1435 = vmatprep.mubr.bf16.mxu0 0
      %1436 = vmatmul.mubr.bf16.gmra.mrb[0].mxu0 %v972
      %v1437 = vpop.f32.mrb[0].mxu0
      %v1438 = vadd.f32 %v480, %v1437
      %v1439 = vpop.f32.mrb[0].mxu0
      %v1440 = vpop.f32.mrb[0].mxu0
      %v1441 = vadd.f32 %v480, %v1440
      %v1442 = vpop.f32.mrb[0].mxu0
      %1443 = vmatprep.mubr.bf16.mxu0 0
      %1444 = vmatmul.mubr.bf16.gmra.mrb[0].mxu0 %v975
      %v1445 = vpop.f32.mrb[0].mxu0
      %v1446 = vadd.f32 %v480, %v1445
      %v1447 = vpop.f32.mrb[0].mxu0
      %v1448 = vpop.f32.mrb[0].mxu0
      %v1449 = vadd.f32 %v480, %v1448
      %v1450 = vpop.f32.mrb[0].mxu0
      %1451 = vmatprep.mubr.bf16.mxu0 0
      %1452 = vmatmul.mubr.bf16.gmra.mrb[0].mxu0 %v978
      %v1453 = vpop.f32.mrb[0].mxu0
      %v1454 = vadd.f32 %v480, %v1453
      %v1455 = vpop.f32.mrb[0].mxu0
      %v1456 = vpop.f32.mrb[0].mxu0
      %v1457 = vadd.f32 %v480, %v1456
      %v1458 = vpop.f32.mrb[0].mxu0
      %1459 = vmatprep.mubr.bf16.mxu0 0
      %1460 = vmatmul.mubr.bf16.gmra.mrb[0].mxu0 %v981
      %v1461 = vpop.f32.mrb[0].mxu0
      %v1462 = vadd.f32 %v480, %v1461
      %v1463 = vpop.f32.mrb[0].mxu0
      %v1464 = vpop.f32.mrb[0].mxu0
      %v1465 = vadd.f32 %v480, %v1464
      %v1466 = vpop.f32.mrb[0].mxu0
      %1467 = vmatprep.mubr.bf16.mxu0 0
      %1468 = vmatmul.mubr.bf16.gmra.mrb[0].mxu0 %v984
      %v1469 = vpop.f32.mrb[0].mxu0
      %v1470 = vadd.f32 %v480, %v1469
      %v1471 = vpop.f32.mrb[0].mxu0
      %v1472 = vpop.f32.mrb[0].mxu0
      %v1473 = vadd.f32 %v480, %v1472
      %v1474 = vpop.f32.mrb[0].mxu0
      %1475 = vmatprep.mubr.bf16.mxu0 0
      %1476 = vmatmul.mubr.bf16.gmra.mrb[0].mxu0 %v987
      %v1477 = vpop.f32.mrb[0].mxu0
      %v1478 = vadd.f32 %v480, %v1477
      %v1479 = vpop.f32.mrb[0].mxu0
      %v1480 = vpop.f32.mrb[0].mxu0
      %v1481 = vadd.f32 %v480, %v1480
      %v1482 = vpop.f32.mrb[0].mxu0
      %1483 = vmatprep.mubr.bf16.mxu0 0
      %1484 = vmatmul.mubr.bf16.gmra.mrb[0].mxu0 %v990
      %v1485 = vpop.f32.mrb[0].mxu0
      %v1486 = vadd.f32 %v480, %v1485
      %v1487 = vpop.f32.mrb[0].mxu0
      %v1488 = vpop.f32.mrb[0].mxu0
      %v1489 = vadd.f32 %v480, %v1488
      %v1490 = vpop.f32.mrb[0].mxu0
      %1491 = vmatprep.mubr.bf16.mxu0 0
      %1492 = vmatmul.mubr.bf16.gmra.mrb[0].mxu0 %v993
      %v1493 = vpop.f32.mrb[0].mxu0
      %v1494 = vadd.f32 %v480, %v1493
      %v1495 = vpop.f32.mrb[0].mxu0
      %v1496 = vpop.f32.mrb[0].mxu0
      %v1497 = vadd.f32 %v480, %v1496
      %v1498 = vpop.f32.mrb[0].mxu0
      %1499 = vmatprep.mubr.bf16.mxu0 0
      %1500 = vmatmul.mubr.bf16.gmra.mrb[0].mxu0 %v996
      %v1501 = vpop.f32.mrb[0].mxu0
      %v1502 = vadd.f32 %v480, %v1501
      %v1503 = vpop.f32.mrb[0].mxu0
      %v1504 = vpop.f32.mrb[0].mxu0
      %v1505 = vadd.f32 %v480, %v1504
      %v1506 = vpop.f32.mrb[0].mxu0
      %1507 = vmatprep.mubr.bf16.mxu0 0
      %1508 = vmatmul.mubr.bf16.gmra.mrb[0].mxu0 %v999
      %v1509 = vpop.f32.mrb[0].mxu0
      %v1510 = vadd.f32 %v480, %v1509
      %v1511 = vpop.f32.mrb[0].mxu0
      %v1512 = vpop.f32.mrb[0].mxu0
      %v1513 = vadd.f32 %v480, %v1512
      %v1514 = vpop.f32.mrb[0].mxu0
      %1515 = vmatprep.mubr.bf16.mxu0 0
      %1516 = vmatmul.mubr.bf16.gmra.mrb[0].mxu0 %v1002
      %v1517 = vpop.f32.mrb[0].mxu0
      %v1518 = vadd.f32 %v480, %v1517
      %v1519 = vpop.f32.mrb[0].mxu0
      %v1520 = vpop.f32.mrb[0].mxu0
      %v1521 = vadd.f32 %v480, %v1520
      %v1522 = vpop.f32.mrb[0].mxu0
      %1523 = vmatprep.mubr.bf16.mxu0 0
      %1524 = vmatmul.mubr.bf16.gmra.mrb[0].mxu0 %v1005
      %v1525 = vpop.f32.mrb[0].mxu0
      %v1526 = vadd.f32 %v480, %v1525
      %v1527 = vpop.f32.mrb[0].mxu0
      %v1528 = vpop.f32.mrb[0].mxu0
      %v1529 = vadd.f32 %v480, %v1528
      %v1530 = vpop.f32.mrb[0].mxu0
      %1531 = vmatprep.mubr.bf16.mxu0 0
      %1532 = vmatmul.mubr.bf16.gmra.mrb[0].mxu0 %v1008
      %v1533 = vpop.f32.mrb[0].mxu0
      %v1534 = vadd.f32 %v480, %v1533
      %v1535 = vpop.f32.mrb[0].mxu0
      %v1536 = vpop.f32.mrb[0].mxu0
      %v1537 = vadd.f32 %v480, %v1536
      %v1538 = vpop.f32.mrb[0].mxu0
      %1539 = vmatprep.mubr.bf16.mxu0 0
      %1540 = vmatmul.mubr.bf16.gmra.mrb[0].mxu0 %v1011
      %v1541 = vpop.f32.mrb[0].mxu0
      %v1542 = vadd.f32 %v480, %v1541
      %v1543 = vpop.f32.mrb[0].mxu0
      %v1544 = vpop.f32.mrb[0].mxu0
      %v1545 = vadd.f32 %v480, %v1544
      %v1546 = vpop.f32.mrb[0].mxu0
      %1547 = vmatprep.mubr.bf16.mxu0 0
      %1548 = vmatmul.mubr.bf16.gmra.mrb[0].mxu0 %v1014
      %v1549 = vpop.f32.mrb[0].mxu0
      %v1550 = vadd.f32 %v480, %v1549
      %v1551 = vpop.f32.mrb[0].mxu0
      %v1552 = vpop.f32.mrb[0].mxu0
      %v1553 = vadd.f32 %v480, %v1552
      %v1554 = vpop.f32.mrb[0].mxu0
      %1555 = vmatprep.mubr.bf16.mxu0 0
      %1556 = vmatmul.mubr.bf16.gmra.mrb[0].mxu0 %v1017
      %v1557 = vpop.f32.mrb[0].mxu0
      %v1558 = vadd.f32 %v480, %v1557
      %v1559 = vpop.f32.mrb[0].mxu0
      %v1560 = vpop.f32.mrb[0].mxu0
      %v1561 = vadd.f32 %v480, %v1560
      %v1562 = vpop.f32.mrb[0].mxu0
      %1563 = vdwg.mxu0
      %v1564 = vmax.f32 %v1054, 0.0
      %v1565 = vmax.f32 %v1057, 0.0
      %v1566 = vmax.f32 %v1062, 0.0
      %v1567 = vmax.f32 %v1065, 0.0
      %v1568 = vmax.f32 %v1070, 0.0
      %v1569 = vmax.f32 %v1073, 0.0
      %v1570 = vmax.f32 %v1078, 0.0
      %v1571 = vmax.f32 %v1081, 0.0
      %v1572 = vmax.f32 %v1086, 0.0
      %v1573 = vmax.f32 %v1089, 0.0
      %v1574 = vmax.f32 %v1094, 0.0
      %v1575 = vmax.f32 %v1097, 0.0
      %v1576 = vmax.f32 %v1102, 0.0
      %v1577 = vmax.f32 %v1105, 0.0
      %v1578 = vmax.f32 %v1110, 0.0
      %v1579 = vmax.f32 %v1113, 0.0
      %v1580 = vmax.f32 %v1118, 0.0
      %v1581 = vmax.f32 %v1121, 0.0
      %v1582 = vmax.f32 %v1126, 0.0
      %v1583 = vmax.f32 %v1129, 0.0
      %v1584 = vmax.f32 %v1134, 0.0
      %v1585 = vmax.f32 %v1137, 0.0
      %v1586 = vmax.f32 %v1142, 0.0
      %v1587 = vmax.f32 %v1145, 0.0
      %v1588 = vmax.f32 %v1150, 0.0
      %v1589 = vmax.f32 %v1153, 0.0
      %v1590 = vmax.f32 %v1158, 0.0
      %v1591 = vmax.f32 %v1161, 0.0
      %v1592 = vmax.f32 %v1166, 0.0
      %v1593 = vmax.f32 %v1169, 0.0
      %v1594 = vmax.f32 %v1174, 0.0
      %v1595 = vmax.f32 %v1177, 0.0
      %v1596 = vmax.f32 %v1182, 0.0
      %v1597 = vmax.f32 %v1185, 0.0
      %v1598 = vmax.f32 %v1190, 0.0
      %v1599 = vmax.f32 %v1193, 0.0
      %v1600 = vmax.f32 %v1198, 0.0
      %v1601 = vmax.f32 %v1201, 0.0
      %v1602 = vmax.f32 %v1206, 0.0
      %v1603 = vmax.f32 %v1209, 0.0
      %v1604 = vmax.f32 %v1214, 0.0
      %v1605 = vmax.f32 %v1217, 0.0
      %v1606 = vmax.f32 %v1222, 0.0
      %v1607 = vmax.f32 %v1225, 0.0
      %v1608 = vmax.f32 %v1230, 0.0
      %v1609 = vmax.f32 %v1233, 0.0
      %v1610 = vmax.f32 %v1238, 0.0
      %v1611 = vmax.f32 %v1241, 0.0
      %v1612 = vmax.f32 %v1246, 0.0
      %v1613 = vmax.f32 %v1249, 0.0
      %v1614 = vmax.f32 %v1254, 0.0
      %v1615 = vmax.f32 %v1257, 0.0
      %v1616 = vmax.f32 %v1262, 0.0
      %v1617 = vmax.f32 %v1265, 0.0
      %v1618 = vmax.f32 %v1270, 0.0
      %v1619 = vmax.f32 %v1273, 0.0
      %v1620 = vmax.f32 %v1278, 0.0
      %v1621 = vmax.f32 %v1281, 0.0
      %v1622 = vmax.f32 %v1286, 0.0
      %v1623 = vmax.f32 %v1289, 0.0
      %v1624 = vmax.f32 %v1294, 0.0
      %v1625 = vmax.f32 %v1297, 0.0
      %v1626 = vmax.f32 %v1302, 0.0
      %v1627 = vmax.f32 %v1305, 0.0
      %v1628 = vmax.f32 %v1310, 0.0
      %v1629 = vmax.f32 %v1313, 0.0
      %v1630 = vmax.f32 %v1318, 0.0
      %v1631 = vmax.f32 %v1321, 0.0
      %v1632 = vmax.f32 %v1326, 0.0
      %v1633 = vmax.f32 %v1329, 0.0
      %v1634 = vmax.f32 %v1334, 0.0
      %v1635 = vmax.f32 %v1337, 0.0
      %v1636 = vmax.f32 %v1342, 0.0
      %v1637 = vmax.f32 %v1345, 0.0
      %v1638 = vmax.f32 %v1350, 0.0
      %v1639 = vmax.f32 %v1353, 0.0
      %v1640 = vmax.f32 %v1358, 0.0
      %v1641 = vmax.f32 %v1361, 0.0
      %v1642 = vmax.f32 %v1366, 0.0
      %v1643 = vmax.f32 %v1369, 0.0
      %v1644 = vmax.f32 %v1374, 0.0
      %v1645 = vmax.f32 %v1377, 0.0
      %v1646 = vmax.f32 %v1382, 0.0
      %v1647 = vmax.f32 %v1385, 0.0
      %v1648 = vmax.f32 %v1390, 0.0
      %v1649 = vmax.f32 %v1393, 0.0
      %v1650 = vmax.f32 %v1398, 0.0
      %v1651 = vmax.f32 %v1401, 0.0
      %v1652 = vmax.f32 %v1406, 0.0
      %v1653 = vmax.f32 %v1409, 0.0
      %v1654 = vmax.f32 %v1414, 0.0
      %v1655 = vmax.f32 %v1417, 0.0
      %v1656 = vmax.f32 %v1422, 0.0
      %v1657 = vmax.f32 %v1425, 0.0
      %v1658 = vmax.f32 %v1430, 0.0
      %v1659 = vmax.f32 %v1433, 0.0
      %v1660 = vmax.f32 %v1438, 0.0
      %v1661 = vmax.f32 %v1441, 0.0
      %v1662 = vmax.f32 %v1446, 0.0
      %v1663 = vmax.f32 %v1449, 0.0
      %v1664 = vmax.f32 %v1454, 0.0
      %v1665 = vmax.f32 %v1457, 0.0
      %v1666 = vmax.f32 %v1462, 0.0
      %v1667 = vmax.f32 %v1465, 0.0
      %v1668 = vmax.f32 %v1470, 0.0
      %v1669 = vmax.f32 %v1473, 0.0
      %v1670 = vmax.f32 %v1478, 0.0
      %v1671 = vmax.f32 %v1481, 0.0
      %v1672 = vmax.f32 %v1486, 0.0
      %v1673 = vmax.f32 %v1489, 0.0
      %v1674 = vmax.f32 %v1494, 0.0
      %v1675 = vmax.f32 %v1497, 0.0
      %v1676 = vmax.f32 %v1502, 0.0
      %v1677 = vmax.f32 %v1505, 0.0
      %v1678 = vmax.f32 %v1510, 0.0
      %v1679 = vmax.f32 %v1513, 0.0
      %v1680 = vmax.f32 %v1518, 0.0
      %v1681 = vmax.f32 %v1521, 0.0
      %v1682 = vmax.f32 %v1526, 0.0
      %v1683 = vmax.f32 %v1529, 0.0
      %v1684 = vmax.f32 %v1534, 0.0
      %v1685 = vmax.f32 %v1537, 0.0
      %v1686 = vmax.f32 %v1542, 0.0
      %v1687 = vmax.f32 %v1545, 0.0
      %v1688 = vmax.f32 %v1550, 0.0
      %v1689 = vmax.f32 %v1553, 0.0
      %v1690 = vmax.f32 %v1558, 0.0
      %v1691 = vmax.f32 %v1561, 0.0
      %v1692 = vpack.c.bf16 %v1565, %v1564
      %v1693 = vpack.c.bf16 %v1567, %v1566
      %v1694 = vpack.c.bf16 %v1569, %v1568
      %v1695 = vpack.c.bf16 %v1571, %v1570
      %v1696 = vpack.c.bf16 %v1573, %v1572
      %v1697 = vpack.c.bf16 %v1575, %v1574
      %v1698 = vpack.c.bf16 %v1577, %v1576
      %v1699 = vpack.c.bf16 %v1579, %v1578
      %v1700 = vpack.c.bf16 %v1581, %v1580
      %v1701 = vpack.c.bf16 %v1583, %v1582
      %v1702 = vpack.c.bf16 %v1585, %v1584
      %v1703 = vpack.c.bf16 %v1587, %v1586
      %v1704 = vpack.c.bf16 %v1589, %v1588
      %v1705 = vpack.c.bf16 %v1591, %v1590
      %v1706 = vpack.c.bf16 %v1593, %v1592
      %v1707 = vpack.c.bf16 %v1595, %v1594
      %v1708 = vpack.c.bf16 %v1597, %v1596
      %v1709 = vpack.c.bf16 %v1599, %v1598
      %v1710 = vpack.c.bf16 %v1601, %v1600
      %v1711 = vpack.c.bf16 %v1603, %v1602
      %v1712 = vpack.c.bf16 %v1605, %v1604
      %v1713 = vpack.c.bf16 %v1607, %v1606
      %v1714 = vpack.c.bf16 %v1609, %v1608
      %v1715 = vpack.c.bf16 %v1611, %v1610
      %v1716 = vpack.c.bf16 %v1613, %v1612
      %v1717 = vpack.c.bf16 %v1615, %v1614
      %v1718 = vpack.c.bf16 %v1617, %v1616
      %v1719 = vpack.c.bf16 %v1619, %v1618
      %v1720 = vpack.c.bf16 %v1621, %v1620
      %v1721 = vpack.c.bf16 %v1623, %v1622
      %v1722 = vpack.c.bf16 %v1625, %v1624
      %v1723 = vpack.c.bf16 %v1627, %v1626
      %v1724 = vpack.c.bf16 %v1629, %v1628
      %v1725 = vpack.c.bf16 %v1631, %v1630
      %v1726 = vpack.c.bf16 %v1633, %v1632
      %v1727 = vpack.c.bf16 %v1635, %v1634
      %v1728 = vpack.c.bf16 %v1637, %v1636
      %v1729 = vpack.c.bf16 %v1639, %v1638
      %v1730 = vpack.c.bf16 %v1641, %v1640
      %v1731 = vpack.c.bf16 %v1643, %v1642
      %v1732 = vpack.c.bf16 %v1645, %v1644
      %v1733 = vpack.c.bf16 %v1647, %v1646
      %v1734 = vpack.c.bf16 %v1649, %v1648
      %v1735 = vpack.c.bf16 %v1651, %v1650
      %v1736 = vpack.c.bf16 %v1653, %v1652
      %v1737 = vpack.c.bf16 %v1655, %v1654
      %v1738 = vpack.c.bf16 %v1657, %v1656
      %v1739 = vpack.c.bf16 %v1659, %v1658
      %v1740 = vpack.c.bf16 %v1661, %v1660
      %v1741 = vpack.c.bf16 %v1663, %v1662
      %v1742 = vpack.c.bf16 %v1665, %v1664
      %v1743 = vpack.c.bf16 %v1667, %v1666
      %v1744 = vpack.c.bf16 %v1669, %v1668
      %v1745 = vpack.c.bf16 %v1671, %v1670
      %v1746 = vpack.c.bf16 %v1673, %v1672
      %v1747 = vpack.c.bf16 %v1675, %v1674
      %v1748 = vpack.c.bf16 %v1677, %v1676
      %v1749 = vpack.c.bf16 %v1679, %v1678
      %v1750 = vpack.c.bf16 %v1681, %v1680
      %v1751 = vpack.c.bf16 %v1683, %v1682
      %v1752 = vpack.c.bf16 %v1685, %v1684
      %v1753 = vpack.c.bf16 %v1687, %v1686
      %v1754 = vpack.c.bf16 %v1689, %v1688
      %v1755 = vpack.c.bf16 %v1691, %v1690
      %v1756 = vld [vmem:[%s3] sm:$0xf]
      %v1757 = vld [vmem:[%s3 + $0x4] sm:$0xf]
      %v1758 = vld [vmem:[%s3 + $0x8] sm:$0xf]
      %v1759 = vld [vmem:[%s3 + $0xc] sm:$0xf]
      %v1760 = vld [vmem:[%s4] sm:$0x1]
      %v1762 = vlaneseq
      %v1763 = vshrl.u32 %v1762, 7
      %v1764 = vsub.s32 0, %v1763
      %v1765 = vrot.slane %v1760, %v1764
      %v1771 = vunpack.c.l.b16 %v1756
      %v1772 = vunpack.c.l.b16 %v1757
      %v1773 = vunpack.c.l.b16 %v1758
      %v1774 = vunpack.c.l.b16 %v1759
      %v1775 = vpack.c.b16 %v1772, %v1771
      %v1776 = vpack.c.b16 %v1774, %v1773
      %vm1779 = vcmask 261120
      %v1781 = vsel %vm1779, %v1692, 0
      %v1784 = vsel %vm1779, %v1693, 0
      %v1787 = vsel %vm1779, %v1694, 0
      %v1790 = vsel %vm1779, %v1695, 0
      %v1793 = vsel %vm1779, %v1696, 0
      %v1796 = vsel %vm1779, %v1697, 0
      %v1799 = vsel %vm1779, %v1698, 0
      %v1802 = vsel %vm1779, %v1699, 0
      %v1805 = vsel %vm1779, %v1700, 0
      %v1808 = vsel %vm1779, %v1701, 0
      %v1811 = vsel %vm1779, %v1702, 0
      %v1814 = vsel %vm1779, %v1703, 0
      %v1817 = vsel %vm1779, %v1704, 0
      %v1820 = vsel %vm1779, %v1705, 0
      %v1823 = vsel %vm1779, %v1706, 0
      %v1826 = vsel %vm1779, %v1707, 0
      %v1829 = vsel %vm1779, %v1708, 0
      %v1832 = vsel %vm1779, %v1709, 0
      %v1835 = vsel %vm1779, %v1710, 0
      %v1838 = vsel %vm1779, %v1711, 0
      %v1841 = vsel %vm1779, %v1712, 0
      %v1844 = vsel %vm1779, %v1713, 0
      %v1847 = vsel %vm1779, %v1714, 0
      %v1850 = vsel %vm1779, %v1715, 0
      %v1853 = vsel %vm1779, %v1716, 0
      %v1856 = vsel %vm1779, %v1717, 0
      %v1859 = vsel %vm1779, %v1718, 0
      %v1862 = vsel %vm1779, %v1719, 0
      %v1865 = vsel %vm1779, %v1720, 0
      %v1868 = vsel %vm1779, %v1721, 0
      %v1871 = vsel %vm1779, %v1722, 0
      %v1874 = vsel %vm1779, %v1723, 0
      %v1877 = vsel %vm1779, %v1724, 0
      %v1880 = vsel %vm1779, %v1725, 0
      %v1883 = vsel %vm1779, %v1726, 0
      %v1886 = vsel %vm1779, %v1727, 0
      %v1889 = vsel %vm1779, %v1728, 0
      %v1892 = vsel %vm1779, %v1729, 0
      %v1895 = vsel %vm1779, %v1730, 0
      %v1898 = vsel %vm1779, %v1731, 0
      %v1901 = vsel %vm1779, %v1732, 0
      %v1904 = vsel %vm1779, %v1733, 0
      %v1907 = vsel %vm1779, %v1734, 0
      %v1910 = vsel %vm1779, %v1735, 0
      %v1913 = vsel %vm1779, %v1736, 0
      %v1916 = vsel %vm1779, %v1737, 0
      %v1919 = vsel %vm1779, %v1738, 0
      %v1922 = vsel %vm1779, %v1739, 0
      %v1925 = vsel %vm1779, %v1740, 0
      %v1928 = vsel %vm1779, %v1741, 0
      %v1931 = vsel %vm1779, %v1742, 0
      %v1934 = vsel %vm1779, %v1743, 0
      %v1937 = vsel %vm1779, %v1744, 0
      %v1940 = vsel %vm1779, %v1745, 0
      %v1943 = vsel %vm1779, %v1746, 0
      %v1946 = vsel %vm1779, %v1747, 0
      %v1949 = vsel %vm1779, %v1748, 0
      %v1952 = vsel %vm1779, %v1749, 0
      %v1955 = vsel %vm1779, %v1750, 0
      %v1958 = vsel %vm1779, %v1751, 0
      %v1961 = vsel %vm1779, %v1752, 0
      %v1964 = vsel %vm1779, %v1753, 0
      %v1967 = vsel %vm1779, %v1754, 0
      %v1970 = vsel %vm1779, %v1755, 0
      %1972 = vmatprep.subr.bf16.mxu0 0
      %1973 = vmatpush1.bf16.msra.mxu0 %v1775
      %1974 = vmatprep.subr.bf16.mxu0 0
      %1975 = vmatpush1.bf16.msra.mxu0 %v1776
      %1976 = vmatprep.subr.bf16.mxu0 0
      %1977 = vmatpush1.bf16.msra.mxu0 0
      %1978 = vmatprep.subr.bf16.mxu0 0
      %1979 = vmatpush1.bf16.msra.mxu0 0
      %1980 = vmatprep.subr.bf16.mxu0 0
      %1981 = vmatpush1.bf16.msra.mxu0 0
      %1982 = vmatprep.subr.bf16.mxu0 0
      %1983 = vmatpush1.bf16.msra.mxu0 0
      %1984 = vmatprep.subr.bf16.mxu0 0
      %1985 = vmatpush1.bf16.msra.mxu0 0
      %1986 = vmatprep.subr.bf16.mxu0 0
      %1987 = vmatpush1.bf16.msra.mxu0 0
      %1988 = vmatprep.subr.bf16.mxu0 0
      %1989 = vmatpush1.bf16.msra.mxu0 0
      %1990 = vmatprep.subr.bf16.mxu0 0
      %1991 = vmatpush1.bf16.msra.mxu0 0
      %1992 = vmatprep.subr.bf16.mxu0 0
      %1993 = vmatpush1.bf16.msra.mxu0 0
      %1994 = vmatprep.subr.bf16.mxu0 0
      %1995 = vmatpush1.bf16.msra.mxu0 0
      %1996 = vmatprep.subr.bf16.mxu0 0
      %1997 = vmatpush1.bf16.msra.mxu0 0
      %1998 = vmatprep.subr.bf16.mxu0 0
      %1999 = vmatpush1.bf16.msra.mxu0 0
      %2000 = vmatprep.subr.bf16.mxu0 0
      %2001 = vmatpush1.bf16.msra.mxu0 0
      %2002 = vmatprep.subr.bf16.mxu0 0
      %2003 = vmatpush1.bf16.msra.mxu0 0
      %2004 = vmatprep.mubr.bf16.mxu0 0
      %2005 = vmatmul.mubr.bf16.gmra.mrb[0].mxu0 %v1781
      %v2006 = vpop.f32.mrb[0].mxu0
      %v2007 = vadd.f32 %v1765, %v2006
      %v2008 = vpop.f32.mrb[0].mxu0
      %v2009 = vpop.f32.mrb[0].mxu0
      %v2010 = vadd.f32 %v1765, %v2009
      %v2011 = vpop.f32.mrb[0].mxu0
      %2012 = vmatprep.mubr.bf16.mxu0 0
      %2013 = vmatmul.mubr.bf16.gmra.mrb[0].mxu0 %v1784
      %v2014 = vpop.f32.mrb[0].mxu0
      %v2015 = vadd.f32 %v1765, %v2014
      %v2016 = vpop.f32.mrb[0].mxu0
      %v2017 = vpop.f32.mrb[0].mxu0
      %v2018 = vadd.f32 %v1765, %v2017
      %v2019 = vpop.f32.mrb[0].mxu0
      %2020 = vmatprep.mubr.bf16.mxu0 0
      %2021 = vmatmul.mubr.bf16.gmra.mrb[0].mxu0 %v1787
      %v2022 = vpop.f32.mrb[0].mxu0
      %v2023 = vadd.f32 %v1765, %v2022
      %v2024 = vpop.f32.mrb[0].mxu0
      %v2025 = vpop.f32.mrb[0].mxu0
      %v2026 = vadd.f32 %v1765, %v2025
      %v2027 = vpop.f32.mrb[0].mxu0
      %2028 = vmatprep.mubr.bf16.mxu0 0
      %2029 = vmatmul.mubr.bf16.gmra.mrb[0].mxu0 %v1790
      %v2030 = vpop.f32.mrb[0].mxu0
      %v2031 = vadd.f32 %v1765, %v2030
      %v2032 = vpop.f32.mrb[0].mxu0
      %v2033 = vpop.f32.mrb[0].mxu0
      %v2034 = vadd.f32 %v1765, %v2033
      %v2035 = vpop.f32.mrb[0].mxu0
      %2036 = vmatprep.mubr.bf16.mxu0 0
      %2037 = vmatmul.mubr.bf16.gmra.mrb[0].mxu0 %v1793
      %v2038 = vpop.f32.mrb[0].mxu0
      %v2039 = vadd.f32 %v1765, %v2038
      %v2040 = vpop.f32.mrb[0].mxu0
      %v2041 = vpop.f32.mrb[0].mxu0
      %v2042 = vadd.f32 %v1765, %v2041
      %v2043 = vpop.f32.mrb[0].mxu0
      %2044 = vmatprep.mubr.bf16.mxu0 0
      %2045 = vmatmul.mubr.bf16.gmra.mrb[0].mxu0 %v1796
      %v2046 = vpop.f32.mrb[0].mxu0
      %v2047 = vadd.f32 %v1765, %v2046
      %v2048 = vpop.f32.mrb[0].mxu0
      %v2049 = vpop.f32.mrb[0].mxu0
      %v2050 = vadd.f32 %v1765, %v2049
      %v2051 = vpop.f32.mrb[0].mxu0
      %2052 = vmatprep.mubr.bf16.mxu0 0
      %2053 = vmatmul.mubr.bf16.gmra.mrb[0].mxu0 %v1799
      %v2054 = vpop.f32.mrb[0].mxu0
      %v2055 = vadd.f32 %v1765, %v2054
      %v2056 = vpop.f32.mrb[0].mxu0
      %v2057 = vpop.f32.mrb[0].mxu0
      %v2058 = vadd.f32 %v1765, %v2057
      %v2059 = vpop.f32.mrb[0].mxu0
      %2060 = vmatprep.mubr.bf16.mxu0 0
      %2061 = vmatmul.mubr.bf16.gmra.mrb[0].mxu0 %v1802
      %v2062 = vpop.f32.mrb[0].mxu0
      %v2063 = vadd.f32 %v1765, %v2062
      %v2064 = vpop.f32.mrb[0].mxu0
      %v2065 = vpop.f32.mrb[0].mxu0
      %v2066 = vadd.f32 %v1765, %v2065
      %v2067 = vpop.f32.mrb[0].mxu0
      %2068 = vmatprep.mubr.bf16.mxu0 0
      %2069 = vmatmul.mubr.bf16.gmra.mrb[0].mxu0 %v1805
      %v2070 = vpop.f32.mrb[0].mxu0
      %v2071 = vadd.f32 %v1765, %v2070
      %v2072 = vpop.f32.mrb[0].mxu0
      %v2073 = vpop.f32.mrb[0].mxu0
      %v2074 = vadd.f32 %v1765, %v2073
      %v2075 = vpop.f32.mrb[0].mxu0
      %2076 = vmatprep.mubr.bf16.mxu0 0
      %2077 = vmatmul.mubr.bf16.gmra.mrb[0].mxu0 %v1808
      %v2078 = vpop.f32.mrb[0].mxu0
      %v2079 = vadd.f32 %v1765, %v2078
      %v2080 = vpop.f32.mrb[0].mxu0
      %v2081 = vpop.f32.mrb[0].mxu0
      %v2082 = vadd.f32 %v1765, %v2081
      %v2083 = vpop.f32.mrb[0].mxu0
      %2084 = vmatprep.mubr.bf16.mxu0 0
      %2085 = vmatmul.mubr.bf16.gmra.mrb[0].mxu0 %v1811
      %v2086 = vpop.f32.mrb[0].mxu0
      %v2087 = vadd.f32 %v1765, %v2086
      %v2088 = vpop.f32.mrb[0].mxu0
      %v2089 = vpop.f32.mrb[0].mxu0
      %v2090 = vadd.f32 %v1765, %v2089
      %v2091 = vpop.f32.mrb[0].mxu0
      %2092 = vmatprep.mubr.bf16.mxu0 0
      %2093 = vmatmul.mubr.bf16.gmra.mrb[0].mxu0 %v1814
      %v2094 = vpop.f32.mrb[0].mxu0
      %v2095 = vadd.f32 %v1765, %v2094
      %v2096 = vpop.f32.mrb[0].mxu0
      %v2097 = vpop.f32.mrb[0].mxu0
      %v2098 = vadd.f32 %v1765, %v2097
      %v2099 = vpop.f32.mrb[0].mxu0
      %2100 = vmatprep.mubr.bf16.mxu0 0
      %2101 = vmatmul.mubr.bf16.gmra.mrb[0].mxu0 %v1817
      %v2102 = vpop.f32.mrb[0].mxu0
      %v2103 = vadd.f32 %v1765, %v2102
      %v2104 = vpop.f32.mrb[0].mxu0
      %v2105 = vpop.f32.mrb[0].mxu0
      %v2106 = vadd.f32 %v1765, %v2105
      %v2107 = vpop.f32.mrb[0].mxu0
      %2108 = vmatprep.mubr.bf16.mxu0 0
      %2109 = vmatmul.mubr.bf16.gmra.mrb[0].mxu0 %v1820
      %v2110 = vpop.f32.mrb[0].mxu0
      %v2111 = vadd.f32 %v1765, %v2110
      %v2112 = vpop.f32.mrb[0].mxu0
      %v2113 = vpop.f32.mrb[0].mxu0
      %v2114 = vadd.f32 %v1765, %v2113
      %v2115 = vpop.f32.mrb[0].mxu0
      %2116 = vmatprep.mubr.bf16.mxu0 0
      %2117 = vmatmul.mubr.bf16.gmra.mrb[0].mxu0 %v1823
      %v2118 = vpop.f32.mrb[0].mxu0
      %v2119 = vadd.f32 %v1765, %v2118
      %v2120 = vpop.f32.mrb[0].mxu0
      %v2121 = vpop.f32.mrb[0].mxu0
      %v2122 = vadd.f32 %v1765, %v2121
      %v2123 = vpop.f32.mrb[0].mxu0
      %2124 = vmatprep.mubr.bf16.mxu0 0
      %2125 = vmatmul.mubr.bf16.gmra.mrb[0].mxu0 %v1826
      %v2126 = vpop.f32.mrb[0].mxu0
      %v2127 = vadd.f32 %v1765, %v2126
      %v2128 = vpop.f32.mrb[0].mxu0
      %v2129 = vpop.f32.mrb[0].mxu0
      %v2130 = vadd.f32 %v1765, %v2129
      %v2131 = vpop.f32.mrb[0].mxu0
      %2132 = vmatprep.mubr.bf16.mxu0 0
      %2133 = vmatmul.mubr.bf16.gmra.mrb[0].mxu0 %v1829
      %v2134 = vpop.f32.mrb[0].mxu0
      %v2135 = vadd.f32 %v1765, %v2134
      %v2136 = vpop.f32.mrb[0].mxu0
      %v2137 = vpop.f32.mrb[0].mxu0
      %v2138 = vadd.f32 %v1765, %v2137
      %v2139 = vpop.f32.mrb[0].mxu0
      %2140 = vmatprep.mubr.bf16.mxu0 0
      %2141 = vmatmul.mubr.bf16.gmra.mrb[0].mxu0 %v1832
      %v2142 = vpop.f32.mrb[0].mxu0
      %v2143 = vadd.f32 %v1765, %v2142
      %v2144 = vpop.f32.mrb[0].mxu0
      %v2145 = vpop.f32.mrb[0].mxu0
      %v2146 = vadd.f32 %v1765, %v2145
      %v2147 = vpop.f32.mrb[0].mxu0
      %2148 = vmatprep.mubr.bf16.mxu0 0
      %2149 = vmatmul.mubr.bf16.gmra.mrb[0].mxu0 %v1835
      %v2150 = vpop.f32.mrb[0].mxu0
      %v2151 = vadd.f32 %v1765, %v2150
      %v2152 = vpop.f32.mrb[0].mxu0
      %v2153 = vpop.f32.mrb[0].mxu0
      %v2154 = vadd.f32 %v1765, %v2153
      %v2155 = vpop.f32.mrb[0].mxu0
      %2156 = vmatprep.mubr.bf16.mxu0 0
      %2157 = vmatmul.mubr.bf16.gmra.mrb[0].mxu0 %v1838
      %v2158 = vpop.f32.mrb[0].mxu0
      %v2159 = vadd.f32 %v1765, %v2158
      %v2160 = vpop.f32.mrb[0].mxu0
      %v2161 = vpop.f32.mrb[0].mxu0
      %v2162 = vadd.f32 %v1765, %v2161
      %v2163 = vpop.f32.mrb[0].mxu0
      %2164 = vmatprep.mubr.bf16.mxu0 0
      %2165 = vmatmul.mubr.bf16.gmra.mrb[0].mxu0 %v1841
      %v2166 = vpop.f32.mrb[0].mxu0
      %v2167 = vadd.f32 %v1765, %v2166
      %v2168 = vpop.f32.mrb[0].mxu0
      %v2169 = vpop.f32.mrb[0].mxu0
      %v2170 = vadd.f32 %v1765, %v2169
      %v2171 = vpop.f32.mrb[0].mxu0
      %2172 = vmatprep.mubr.bf16.mxu0 0
      %2173 = vmatmul.mubr.bf16.gmra.mrb[0].mxu0 %v1844
      %v2174 = vpop.f32.mrb[0].mxu0
      %v2175 = vadd.f32 %v1765, %v2174
      %v2176 = vpop.f32.mrb[0].mxu0
      %v2177 = vpop.f32.mrb[0].mxu0
      %v2178 = vadd.f32 %v1765, %v2177
      %v2179 = vpop.f32.mrb[0].mxu0
      %2180 = vmatprep.mubr.bf16.mxu0 0
      %2181 = vmatmul.mubr.bf16.gmra.mrb[0].mxu0 %v1847
      %v2182 = vpop.f32.mrb[0].mxu0
      %v2183 = vadd.f32 %v1765, %v2182
      %v2184 = vpop.f32.mrb[0].mxu0
      %v2185 = vpop.f32.mrb[0].mxu0
      %v2186 = vadd.f32 %v1765, %v2185
      %v2187 = vpop.f32.mrb[0].mxu0
      %2188 = vmatprep.mubr.bf16.mxu0 0
      %2189 = vmatmul.mubr.bf16.gmra.mrb[0].mxu0 %v1850
      %v2190 = vpop.f32.mrb[0].mxu0
      %v2191 = vadd.f32 %v1765, %v2190
      %v2192 = vpop.f32.mrb[0].mxu0
      %v2193 = vpop.f32.mrb[0].mxu0
      %v2194 = vadd.f32 %v1765, %v2193
      %v2195 = vpop.f32.mrb[0].mxu0
      %2196 = vmatprep.mubr.bf16.mxu0 0
      %2197 = vmatmul.mubr.bf16.gmra.mrb[0].mxu0 %v1853
      %v2198 = vpop.f32.mrb[0].mxu0
      %v2199 = vadd.f32 %v1765, %v2198
      %v2200 = vpop.f32.mrb[0].mxu0
      %v2201 = vpop.f32.mrb[0].mxu0
      %v2202 = vadd.f32 %v1765, %v2201
      %v2203 = vpop.f32.mrb[0].mxu0
      %2204 = vmatprep.mubr.bf16.mxu0 0
      %2205 = vmatmul.mubr.bf16.gmra.mrb[0].mxu0 %v1856
      %v2206 = vpop.f32.mrb[0].mxu0
      %v2207 = vadd.f32 %v1765, %v2206
      %v2208 = vpop.f32.mrb[0].mxu0
      %v2209 = vpop.f32.mrb[0].mxu0
      %v2210 = vadd.f32 %v1765, %v2209
      %v2211 = vpop.f32.mrb[0].mxu0
      %2212 = vmatprep.mubr.bf16.mxu0 0
      %2213 = vmatmul.mubr.bf16.gmra.mrb[0].mxu0 %v1859
      %v2214 = vpop.f32.mrb[0].mxu0
      %v2215 = vadd.f32 %v1765, %v2214
      %v2216 = vpop.f32.mrb[0].mxu0
      %v2217 = vpop.f32.mrb[0].mxu0
      %v2218 = vadd.f32 %v1765, %v2217
      %v2219 = vpop.f32.mrb[0].mxu0
      %2220 = vmatprep.mubr.bf16.mxu0 0
      %2221 = vmatmul.mubr.bf16.gmra.mrb[0].mxu0 %v1862
      %v2222 = vpop.f32.mrb[0].mxu0
      %v2223 = vadd.f32 %v1765, %v2222
      %v2224 = vpop.f32.mrb[0].mxu0
      %v2225 = vpop.f32.mrb[0].mxu0
      %v2226 = vadd.f32 %v1765, %v2225
      %v2227 = vpop.f32.mrb[0].mxu0
      %2228 = vmatprep.mubr.bf16.mxu0 0
      %2229 = vmatmul.mubr.bf16.gmra.mrb[0].mxu0 %v1865
      %v2230 = vpop.f32.mrb[0].mxu0
      %v2231 = vadd.f32 %v1765, %v2230
      %v2232 = vpop.f32.mrb[0].mxu0
      %v2233 = vpop.f32.mrb[0].mxu0
      %v2234 = vadd.f32 %v1765, %v2233
      %v2235 = vpop.f32.mrb[0].mxu0
      %2236 = vmatprep.mubr.bf16.mxu0 0
      %2237 = vmatmul.mubr.bf16.gmra.mrb[0].mxu0 %v1868
      %v2238 = vpop.f32.mrb[0].mxu0
      %v2239 = vadd.f32 %v1765, %v2238
      %v2240 = vpop.f32.mrb[0].mxu0
      %v2241 = vpop.f32.mrb[0].mxu0
      %v2242 = vadd.f32 %v1765, %v2241
      %v2243 = vpop.f32.mrb[0].mxu0
      %2244 = vmatprep.mubr.bf16.mxu0 0
      %2245 = vmatmul.mubr.bf16.gmra.mrb[0].mxu0 %v1871
      %v2246 = vpop.f32.mrb[0].mxu0
      %v2247 = vadd.f32 %v1765, %v2246
      %v2248 = vpop.f32.mrb[0].mxu0
      %v2249 = vpop.f32.mrb[0].mxu0
      %v2250 = vadd.f32 %v1765, %v2249
      %v2251 = vpop.f32.mrb[0].mxu0
      %2252 = vmatprep.mubr.bf16.mxu0 0
      %2253 = vmatmul.mubr.bf16.gmra.mrb[0].mxu0 %v1874
      %v2254 = vpop.f32.mrb[0].mxu0
      %v2255 = vadd.f32 %v1765, %v2254
      %v2256 = vpop.f32.mrb[0].mxu0
      %v2257 = vpop.f32.mrb[0].mxu0
      %v2258 = vadd.f32 %v1765, %v2257
      %v2259 = vpop.f32.mrb[0].mxu0
      %2260 = vmatprep.mubr.bf16.mxu0 0
      %2261 = vmatmul.mubr.bf16.gmra.mrb[0].mxu0 %v1877
      %v2262 = vpop.f32.mrb[0].mxu0
      %v2263 = vadd.f32 %v1765, %v2262
      %v2264 = vpop.f32.mrb[0].mxu0
      %v2265 = vpop.f32.mrb[0].mxu0
      %v2266 = vadd.f32 %v1765, %v2265
      %v2267 = vpop.f32.mrb[0].mxu0
      %2268 = vmatprep.mubr.bf16.mxu0 0
      %2269 = vmatmul.mubr.bf16.gmra.mrb[0].mxu0 %v1880
      %v2270 = vpop.f32.mrb[0].mxu0
      %v2271 = vadd.f32 %v1765, %v2270
      %v2272 = vpop.f32.mrb[0].mxu0
      %v2273 = vpop.f32.mrb[0].mxu0
      %v2274 = vadd.f32 %v1765, %v2273
      %v2275 = vpop.f32.mrb[0].mxu0
      %2276 = vmatprep.mubr.bf16.mxu0 0
      %2277 = vmatmul.mubr.bf16.gmra.mrb[0].mxu0 %v1883
      %v2278 = vpop.f32.mrb[0].mxu0
      %v2279 = vadd.f32 %v1765, %v2278
      %v2280 = vpop.f32.mrb[0].mxu0
      %v2281 = vpop.f32.mrb[0].mxu0
      %v2282 = vadd.f32 %v1765, %v2281
      %v2283 = vpop.f32.mrb[0].mxu0
      %2284 = vmatprep.mubr.bf16.mxu0 0
      %2285 = vmatmul.mubr.bf16.gmra.mrb[0].mxu0 %v1886
      %v2286 = vpop.f32.mrb[0].mxu0
      %v2287 = vadd.f32 %v1765, %v2286
      %v2288 = vpop.f32.mrb[0].mxu0
      %v2289 = vpop.f32.mrb[0].mxu0
      %v2290 = vadd.f32 %v1765, %v2289
      %v2291 = vpop.f32.mrb[0].mxu0
      %2292 = vmatprep.mubr.bf16.mxu0 0
      %2293 = vmatmul.mubr.bf16.gmra.mrb[0].mxu0 %v1889
      %v2294 = vpop.f32.mrb[0].mxu0
      %v2295 = vadd.f32 %v1765, %v2294
      %v2296 = vpop.f32.mrb[0].mxu0
      %v2297 = vpop.f32.mrb[0].mxu0
      %v2298 = vadd.f32 %v1765, %v2297
      %v2299 = vpop.f32.mrb[0].mxu0
      %2300 = vmatprep.mubr.bf16.mxu0 0
      %2301 = vmatmul.mubr.bf16.gmra.mrb[0].mxu0 %v1892
      %v2302 = vpop.f32.mrb[0].mxu0
      %v2303 = vadd.f32 %v1765, %v2302
      %v2304 = vpop.f32.mrb[0].mxu0
      %v2305 = vpop.f32.mrb[0].mxu0
      %v2306 = vadd.f32 %v1765, %v2305
      %v2307 = vpop.f32.mrb[0].mxu0
      %2308 = vmatprep.mubr.bf16.mxu0 0
      %2309 = vmatmul.mubr.bf16.gmra.mrb[0].mxu0 %v1895
      %v2310 = vpop.f32.mrb[0].mxu0
      %v2311 = vadd.f32 %v1765, %v2310
      %v2312 = vpop.f32.mrb[0].mxu0
      %v2313 = vpop.f32.mrb[0].mxu0
      %v2314 = vadd.f32 %v1765, %v2313
      %v2315 = vpop.f32.mrb[0].mxu0
      %2316 = vmatprep.mubr.bf16.mxu0 0
      %2317 = vmatmul.mubr.bf16.gmra.mrb[0].mxu0 %v1898
      %v2318 = vpop.f32.mrb[0].mxu0
      %v2319 = vadd.f32 %v1765, %v2318
      %v2320 = vpop.f32.mrb[0].mxu0
      %v2321 = vpop.f32.mrb[0].mxu0
      %v2322 = vadd.f32 %v1765, %v2321
      %v2323 = vpop.f32.mrb[0].mxu0
      %2324 = vmatprep.mubr.bf16.mxu0 0
      %2325 = vmatmul.mubr.bf16.gmra.mrb[0].mxu0 %v1901
      %v2326 = vpop.f32.mrb[0].mxu0
      %v2327 = vadd.f32 %v1765, %v2326
      %v2328 = vpop.f32.mrb[0].mxu0
      %v2329 = vpop.f32.mrb[0].mxu0
      %v2330 = vadd.f32 %v1765, %v2329
      %v2331 = vpop.f32.mrb[0].mxu0
      %2332 = vmatprep.mubr.bf16.mxu0 0
      %2333 = vmatmul.mubr.bf16.gmra.mrb[0].mxu0 %v1904
      %v2334 = vpop.f32.mrb[0].mxu0
      %v2335 = vadd.f32 %v1765, %v2334
      %v2336 = vpop.f32.mrb[0].mxu0
      %v2337 = vpop.f32.mrb[0].mxu0
      %v2338 = vadd.f32 %v1765, %v2337
      %v2339 = vpop.f32.mrb[0].mxu0
      %2340 = vmatprep.mubr.bf16.mxu0 0
      %2341 = vmatmul.mubr.bf16.gmra.mrb[0].mxu0 %v1907
      %v2342 = vpop.f32.mrb[0].mxu0
      %v2343 = vadd.f32 %v1765, %v2342
      %v2344 = vpop.f32.mrb[0].mxu0
      %v2345 = vpop.f32.mrb[0].mxu0
      %v2346 = vadd.f32 %v1765, %v2345
      %v2347 = vpop.f32.mrb[0].mxu0
      %2348 = vmatprep.mubr.bf16.mxu0 0
      %2349 = vmatmul.mubr.bf16.gmra.mrb[0].mxu0 %v1910
      %v2350 = vpop.f32.mrb[0].mxu0
      %v2351 = vadd.f32 %v1765, %v2350
      %v2352 = vpop.f32.mrb[0].mxu0
      %v2353 = vpop.f32.mrb[0].mxu0
      %v2354 = vadd.f32 %v1765, %v2353
      %v2355 = vpop.f32.mrb[0].mxu0
      %2356 = vmatprep.mubr.bf16.mxu0 0
      %2357 = vmatmul.mubr.bf16.gmra.mrb[0].mxu0 %v1913
      %v2358 = vpop.f32.mrb[0].mxu0
      %v2359 = vadd.f32 %v1765, %v2358
      %v2360 = vpop.f32.mrb[0].mxu0
      %v2361 = vpop.f32.mrb[0].mxu0
      %v2362 = vadd.f32 %v1765, %v2361
      %v2363 = vpop.f32.mrb[0].mxu0
      %2364 = vmatprep.mubr.bf16.mxu0 0
      %2365 = vmatmul.mubr.bf16.gmra.mrb[0].mxu0 %v1916
      %v2366 = vpop.f32.mrb[0].mxu0
      %v2367 = vadd.f32 %v1765, %v2366
      %v2368 = vpop.f32.mrb[0].mxu0
      %v2369 = vpop.f32.mrb[0].mxu0
      %v2370 = vadd.f32 %v1765, %v2369
      %v2371 = vpop.f32.mrb[0].mxu0
      %2372 = vmatprep.mubr.bf16.mxu0 0
      %2373 = vmatmul.mubr.bf16.gmra.mrb[0].mxu0 %v1919
      %v2374 = vpop.f32.mrb[0].mxu0
      %v2375 = vadd.f32 %v1765, %v2374
      %v2376 = vpop.f32.mrb[0].mxu0
      %v2377 = vpop.f32.mrb[0].mxu0
      %v2378 = vadd.f32 %v1765, %v2377
      %v2379 = vpop.f32.mrb[0].mxu0
      %2380 = vmatprep.mubr.bf16.mxu0 0
      %2381 = vmatmul.mubr.bf16.gmra.mrb[0].mxu0 %v1922
      %v2382 = vpop.f32.mrb[0].mxu0
      %v2383 = vadd.f32 %v1765, %v2382
      %v2384 = vpop.f32.mrb[0].mxu0
      %v2385 = vpop.f32.mrb[0].mxu0
      %v2386 = vadd.f32 %v1765, %v2385
      %v2387 = vpop.f32.mrb[0].mxu0
      %2388 = vmatprep.mubr.bf16.mxu0 0
      %2389 = vmatmul.mubr.bf16.gmra.mrb[0].mxu0 %v1925
      %v2390 = vpop.f32.mrb[0].mxu0
      %v2391 = vadd.f32 %v1765, %v2390
      %v2392 = vpop.f32.mrb[0].mxu0
      %v2393 = vpop.f32.mrb[0].mxu0
      %v2394 = vadd.f32 %v1765, %v2393
      %v2395 = vpop.f32.mrb[0].mxu0
      %2396 = vmatprep.mubr.bf16.mxu0 0
      %2397 = vmatmul.mubr.bf16.gmra.mrb[0].mxu0 %v1928
      %v2398 = vpop.f32.mrb[0].mxu0
      %v2399 = vadd.f32 %v1765, %v2398
      %v2400 = vpop.f32.mrb[0].mxu0
      %v2401 = vpop.f32.mrb[0].mxu0
      %v2402 = vadd.f32 %v1765, %v2401
      %v2403 = vpop.f32.mrb[0].mxu0
      %2404 = vmatprep.mubr.bf16.mxu0 0
      %2405 = vmatmul.mubr.bf16.gmra.mrb[0].mxu0 %v1931
      %v2406 = vpop.f32.mrb[0].mxu0
      %v2407 = vadd.f32 %v1765, %v2406
      %v2408 = vpop.f32.mrb[0].mxu0
      %v2409 = vpop.f32.mrb[0].mxu0
      %v2410 = vadd.f32 %v1765, %v2409
      %v2411 = vpop.f32.mrb[0].mxu0
      %2412 = vmatprep.mubr.bf16.mxu0 0
      %2413 = vmatmul.mubr.bf16.gmra.mrb[0].mxu0 %v1934
      %v2414 = vpop.f32.mrb[0].mxu0
      %v2415 = vadd.f32 %v1765, %v2414
      %v2416 = vpop.f32.mrb[0].mxu0
      %v2417 = vpop.f32.mrb[0].mxu0
      %v2418 = vadd.f32 %v1765, %v2417
      %v2419 = vpop.f32.mrb[0].mxu0
      %2420 = vmatprep.mubr.bf16.mxu0 0
      %2421 = vmatmul.mubr.bf16.gmra.mrb[0].mxu0 %v1937
      %v2422 = vpop.f32.mrb[0].mxu0
      %v2423 = vadd.f32 %v1765, %v2422
      %v2424 = vpop.f32.mrb[0].mxu0
      %v2425 = vpop.f32.mrb[0].mxu0
      %v2426 = vadd.f32 %v1765, %v2425
      %v2427 = vpop.f32.mrb[0].mxu0
      %2428 = vmatprep.mubr.bf16.mxu0 0
      %2429 = vmatmul.mubr.bf16.gmra.mrb[0].mxu0 %v1940
      %v2430 = vpop.f32.mrb[0].mxu0
      %v2431 = vadd.f32 %v1765, %v2430
      %v2432 = vpop.f32.mrb[0].mxu0
      %v2433 = vpop.f32.mrb[0].mxu0
      %v2434 = vadd.f32 %v1765, %v2433
      %v2435 = vpop.f32.mrb[0].mxu0
      %2436 = vmatprep.mubr.bf16.mxu0 0
      %2437 = vmatmul.mubr.bf16.gmra.mrb[0].mxu0 %v1943
      %v2438 = vpop.f32.mrb[0].mxu0
      %v2439 = vadd.f32 %v1765, %v2438
      %v2440 = vpop.f32.mrb[0].mxu0
      %v2441 = vpop.f32.mrb[0].mxu0
      %v2442 = vadd.f32 %v1765, %v2441
      %v2443 = vpop.f32.mrb[0].mxu0
      %2444 = vmatprep.mubr.bf16.mxu0 0
      %2445 = vmatmul.mubr.bf16.gmra.mrb[0].mxu0 %v1946
      %v2446 = vpop.f32.mrb[0].mxu0
      %v2447 = vadd.f32 %v1765, %v2446
      %v2448 = vpop.f32.mrb[0].mxu0
      %v2449 = vpop.f32.mrb[0].mxu0
      %v2450 = vadd.f32 %v1765, %v2449
      %v2451 = vpop.f32.mrb[0].mxu0
      %2452 = vmatprep.mubr.bf16.mxu0 0
      %2453 = vmatmul.mubr.bf16.gmra.mrb[0].mxu0 %v1949
      %v2454 = vpop.f32.mrb[0].mxu0
      %v2455 = vadd.f32 %v1765, %v2454
      %v2456 = vpop.f32.mrb[0].mxu0
      %v2457 = vpop.f32.mrb[0].mxu0
      %v2458 = vadd.f32 %v1765, %v2457
      %v2459 = vpop.f32.mrb[0].mxu0
      %2460 = vmatprep.mubr.bf16.mxu0 0
      %2461 = vmatmul.mubr.bf16.gmra.mrb[0].mxu0 %v1952
      %v2462 = vpop.f32.mrb[0].mxu0
      %v2463 = vadd.f32 %v1765, %v2462
      %v2464 = vpop.f32.mrb[0].mxu0
      %v2465 = vpop.f32.mrb[0].mxu0
      %v2466 = vadd.f32 %v1765, %v2465
      %v2467 = vpop.f32.mrb[0].mxu0
      %2468 = vmatprep.mubr.bf16.mxu0 0
      %2469 = vmatmul.mubr.bf16.gmra.mrb[0].mxu0 %v1955
      %v2470 = vpop.f32.mrb[0].mxu0
      %v2471 = vadd.f32 %v1765, %v2470
      %v2472 = vpop.f32.mrb[0].mxu0
      %v2473 = vpop.f32.mrb[0].mxu0
      %v2474 = vadd.f32 %v1765, %v2473
      %v2475 = vpop.f32.mrb[0].mxu0
      %2476 = vmatprep.mubr.bf16.mxu0 0
      %2477 = vmatmul.mubr.bf16.gmra.mrb[0].mxu0 %v1958
      %v2478 = vpop.f32.mrb[0].mxu0
      %v2479 = vadd.f32 %v1765, %v2478
      %v2480 = vpop.f32.mrb[0].mxu0
      %v2481 = vpop.f32.mrb[0].mxu0
      %v2482 = vadd.f32 %v1765, %v2481
      %v2483 = vpop.f32.mrb[0].mxu0
      %2484 = vmatprep.mubr.bf16.mxu0 0
      %2485 = vmatmul.mubr.bf16.gmra.mrb[0].mxu0 %v1961
      %v2486 = vpop.f32.mrb[0].mxu0
      %v2487 = vadd.f32 %v1765, %v2486
      %v2488 = vpop.f32.mrb[0].mxu0
      %v2489 = vpop.f32.mrb[0].mxu0
      %v2490 = vadd.f32 %v1765, %v2489
      %v2491 = vpop.f32.mrb[0].mxu0
      %2492 = vmatprep.mubr.bf16.mxu0 0
      %2493 = vmatmul.mubr.bf16.gmra.mrb[0].mxu0 %v1964
      %v2494 = vpop.f32.mrb[0].mxu0
      %v2495 = vadd.f32 %v1765, %v2494
      %v2496 = vpop.f32.mrb[0].mxu0
      %v2497 = vpop.f32.mrb[0].mxu0
      %v2498 = vadd.f32 %v1765, %v2497
      %v2499 = vpop.f32.mrb[0].mxu0
      %2500 = vmatprep.mubr.bf16.mxu0 0
      %2501 = vmatmul.mubr.bf16.gmra.mrb[0].mxu0 %v1967
      %v2502 = vpop.f32.mrb[0].mxu0
      %v2503 = vadd.f32 %v1765, %v2502
      %v2504 = vpop.f32.mrb[0].mxu0
      %v2505 = vpop.f32.mrb[0].mxu0
      %v2506 = vadd.f32 %v1765, %v2505
      %v2507 = vpop.f32.mrb[0].mxu0
      %2508 = vmatprep.mubr.bf16.mxu0 0
      %2509 = vmatmul.mubr.bf16.gmra.mrb[0].mxu0 %v1970
      %v2510 = vpop.f32.mrb[0].mxu0
      %v2511 = vadd.f32 %v1765, %v2510
      %v2512 = vpop.f32.mrb[0].mxu0
      %v2513 = vpop.f32.mrb[0].mxu0
      %v2514 = vadd.f32 %v1765, %v2513
      %v2515 = vpop.f32.mrb[0].mxu0
      %2516 = vdwg.mxu0
      %v2517 = vmax.f32 %v2007, 0.0
      %v2518 = vmax.f32 %v2010, 0.0
      %v2519 = vmax.f32 %v2015, 0.0
      %v2520 = vmax.f32 %v2018, 0.0
      %v2521 = vmax.f32 %v2023, 0.0
      %v2522 = vmax.f32 %v2026, 0.0
      %v2523 = vmax.f32 %v2031, 0.0
      %v2524 = vmax.f32 %v2034, 0.0
      %v2525 = vmax.f32 %v2039, 0.0
      %v2526 = vmax.f32 %v2042, 0.0
      %v2527 = vmax.f32 %v2047, 0.0
      %v2528 = vmax.f32 %v2050, 0.0
      %v2529 = vmax.f32 %v2055, 0.0
      %v2530 = vmax.f32 %v2058, 0.0
      %v2531 = vmax.f32 %v2063, 0.0
      %v2532 = vmax.f32 %v2066, 0.0
      %v2533 = vmax.f32 %v2071, 0.0
      %v2534 = vmax.f32 %v2074, 0.0
      %v2535 = vmax.f32 %v2079, 0.0
      %v2536 = vmax.f32 %v2082, 0.0
      %v2537 = vmax.f32 %v2087, 0.0
      %v2538 = vmax.f32 %v2090, 0.0
      %v2539 = vmax.f32 %v2095, 0.0
      %v2540 = vmax.f32 %v2098, 0.0
      %v2541 = vmax.f32 %v2103, 0.0
      %v2542 = vmax.f32 %v2106, 0.0
      %v2543 = vmax.f32 %v2111, 0.0
      %v2544 = vmax.f32 %v2114, 0.0
      %v2545 = vmax.f32 %v2119, 0.0
      %v2546 = vmax.f32 %v2122, 0.0
      %v2547 = vmax.f32 %v2127, 0.0
      %v2548 = vmax.f32 %v2130, 0.0
      %v2549 = vmax.f32 %v2135, 0.0
      %v2550 = vmax.f32 %v2138, 0.0
      %v2551 = vmax.f32 %v2143, 0.0
      %v2552 = vmax.f32 %v2146, 0.0
      %v2553 = vmax.f32 %v2151, 0.0
      %v2554 = vmax.f32 %v2154, 0.0
      %v2555 = vmax.f32 %v2159, 0.0
      %v2556 = vmax.f32 %v2162, 0.0
      %v2557 = vmax.f32 %v2167, 0.0
      %v2558 = vmax.f32 %v2170, 0.0
      %v2559 = vmax.f32 %v2175, 0.0
      %v2560 = vmax.f32 %v2178, 0.0
      %v2561 = vmax.f32 %v2183, 0.0
      %v2562 = vmax.f32 %v2186, 0.0
      %v2563 = vmax.f32 %v2191, 0.0
      %v2564 = vmax.f32 %v2194, 0.0
      %v2565 = vmax.f32 %v2199, 0.0
      %v2566 = vmax.f32 %v2202, 0.0
      %v2567 = vmax.f32 %v2207, 0.0
      %v2568 = vmax.f32 %v2210, 0.0
      %v2569 = vmax.f32 %v2215, 0.0
      %v2570 = vmax.f32 %v2218, 0.0
      %v2571 = vmax.f32 %v2223, 0.0
      %v2572 = vmax.f32 %v2226, 0.0
      %v2573 = vmax.f32 %v2231, 0.0
      %v2574 = vmax.f32 %v2234, 0.0
      %v2575 = vmax.f32 %v2239, 0.0
      %v2576 = vmax.f32 %v2242, 0.0
      %v2577 = vmax.f32 %v2247, 0.0
      %v2578 = vmax.f32 %v2250, 0.0
      %v2579 = vmax.f32 %v2255, 0.0
      %v2580 = vmax.f32 %v2258, 0.0
      %v2581 = vmax.f32 %v2263, 0.0
      %v2582 = vmax.f32 %v2266, 0.0
      %v2583 = vmax.f32 %v2271, 0.0
      %v2584 = vmax.f32 %v2274, 0.0
      %v2585 = vmax.f32 %v2279, 0.0
      %v2586 = vmax.f32 %v2282, 0.0
      %v2587 = vmax.f32 %v2287, 0.0
      %v2588 = vmax.f32 %v2290, 0.0
      %v2589 = vmax.f32 %v2295, 0.0
      %v2590 = vmax.f32 %v2298, 0.0
      %v2591 = vmax.f32 %v2303, 0.0
      %v2592 = vmax.f32 %v2306, 0.0
      %v2593 = vmax.f32 %v2311, 0.0
      %v2594 = vmax.f32 %v2314, 0.0
      %v2595 = vmax.f32 %v2319, 0.0
      %v2596 = vmax.f32 %v2322, 0.0
      %v2597 = vmax.f32 %v2327, 0.0
      %v2598 = vmax.f32 %v2330, 0.0
      %v2599 = vmax.f32 %v2335, 0.0
      %v2600 = vmax.f32 %v2338, 0.0
      %v2601 = vmax.f32 %v2343, 0.0
      %v2602 = vmax.f32 %v2346, 0.0
      %v2603 = vmax.f32 %v2351, 0.0
      %v2604 = vmax.f32 %v2354, 0.0
      %v2605 = vmax.f32 %v2359, 0.0
      %v2606 = vmax.f32 %v2362, 0.0
      %v2607 = vmax.f32 %v2367, 0.0
      %v2608 = vmax.f32 %v2370, 0.0
      %v2609 = vmax.f32 %v2375, 0.0
      %v2610 = vmax.f32 %v2378, 0.0
      %v2611 = vmax.f32 %v2383, 0.0
      %v2612 = vmax.f32 %v2386, 0.0
      %v2613 = vmax.f32 %v2391, 0.0
      %v2614 = vmax.f32 %v2394, 0.0
      %v2615 = vmax.f32 %v2399, 0.0
      %v2616 = vmax.f32 %v2402, 0.0
      %v2617 = vmax.f32 %v2407, 0.0
      %v2618 = vmax.f32 %v2410, 0.0
      %v2619 = vmax.f32 %v2415, 0.0
      %v2620 = vmax.f32 %v2418, 0.0
      %v2621 = vmax.f32 %v2423, 0.0
      %v2622 = vmax.f32 %v2426, 0.0
      %v2623 = vmax.f32 %v2431, 0.0
      %v2624 = vmax.f32 %v2434, 0.0
      %v2625 = vmax.f32 %v2439, 0.0
      %v2626 = vmax.f32 %v2442, 0.0
      %v2627 = vmax.f32 %v2447, 0.0
      %v2628 = vmax.f32 %v2450, 0.0
      %v2629 = vmax.f32 %v2455, 0.0
      %v2630 = vmax.f32 %v2458, 0.0
      %v2631 = vmax.f32 %v2463, 0.0
      %v2632 = vmax.f32 %v2466, 0.0
      %v2633 = vmax.f32 %v2471, 0.0
      %v2634 = vmax.f32 %v2474, 0.0
      %v2635 = vmax.f32 %v2479, 0.0
      %v2636 = vmax.f32 %v2482, 0.0
      %v2637 = vmax.f32 %v2487, 0.0
      %v2638 = vmax.f32 %v2490, 0.0
      %v2639 = vmax.f32 %v2495, 0.0
      %v2640 = vmax.f32 %v2498, 0.0
      %v2641 = vmax.f32 %v2503, 0.0
      %v2642 = vmax.f32 %v2506, 0.0
      %v2643 = vmax.f32 %v2511, 0.0
      %v2644 = vmax.f32 %v2514, 0.0
      %2773 = vrot.lane.b32.xlu0 %v2517, 120
      %v2774 = vpop.permute.xlu0 %2773
      %2775 = vrot.lane.b32.xlu0 %v2518, 120
      %v2776 = vpop.permute.xlu0 %2775
      %2777 = vrot.lane.b32.xlu0 %v2519, 120
      %v2778 = vpop.permute.xlu0 %2777
      %2779 = vrot.lane.b32.xlu0 %v2520, 120
      %v2780 = vpop.permute.xlu0 %2779
      %2781 = vrot.lane.b32.xlu0 %v2521, 120
      %v2782 = vpop.permute.xlu0 %2781
      %2783 = vrot.lane.b32.xlu0 %v2522, 120
      %v2784 = vpop.permute.xlu0 %2783
      %2785 = vrot.lane.b32.xlu0 %v2523, 120
      %v2786 = vpop.permute.xlu0 %2785
      %2787 = vrot.lane.b32.xlu0 %v2524, 120
      %v2788 = vpop.permute.xlu0 %2787
      %2789 = vrot.lane.b32.xlu0 %v2525, 120
      %v2790 = vpop.permute.xlu0 %2789
      %2791 = vrot.lane.b32.xlu0 %v2526, 120
      %v2792 = vpop.permute.xlu0 %2791
      %2793 = vrot.lane.b32.xlu0 %v2527, 120
      %v2794 = vpop.permute.xlu0 %2793
      %2795 = vrot.lane.b32.xlu0 %v2528, 120
      %v2796 = vpop.permute.xlu0 %2795
      %2797 = vrot.lane.b32.xlu0 %v2529, 120
      %v2798 = vpop.permute.xlu0 %2797
      %2799 = vrot.lane.b32.xlu0 %v2530, 120
      %v2800 = vpop.permute.xlu0 %2799
      %2801 = vrot.lane.b32.xlu0 %v2531, 120
      %v2802 = vpop.permute.xlu0 %2801
      %2803 = vrot.lane.b32.xlu0 %v2532, 120
      %v2804 = vpop.permute.xlu0 %2803
      %2805 = vrot.lane.b32.xlu0 %v2533, 120
      %v2806 = vpop.permute.xlu0 %2805
      %2807 = vrot.lane.b32.xlu0 %v2534, 120
      %v2808 = vpop.permute.xlu0 %2807
      %2809 = vrot.lane.b32.xlu0 %v2535, 120
      %v2810 = vpop.permute.xlu0 %2809
      %2811 = vrot.lane.b32.xlu0 %v2536, 120
      %v2812 = vpop.permute.xlu0 %2811
      %2813 = vrot.lane.b32.xlu0 %v2537, 120
      %v2814 = vpop.permute.xlu0 %2813
      %2815 = vrot.lane.b32.xlu0 %v2538, 120
      %v2816 = vpop.permute.xlu0 %2815
      %2817 = vrot.lane.b32.xlu0 %v2539, 120
      %v2818 = vpop.permute.xlu0 %2817
      %2819 = vrot.lane.b32.xlu0 %v2540, 120
      %v2820 = vpop.permute.xlu0 %2819
      %2821 = vrot.lane.b32.xlu0 %v2541, 120
      %v2822 = vpop.permute.xlu0 %2821
      %2823 = vrot.lane.b32.xlu0 %v2542, 120
      %v2824 = vpop.permute.xlu0 %2823
      %2825 = vrot.lane.b32.xlu0 %v2543, 120
      %v2826 = vpop.permute.xlu0 %2825
      %2827 = vrot.lane.b32.xlu0 %v2544, 120
      %v2828 = vpop.permute.xlu0 %2827
      %2829 = vrot.lane.b32.xlu0 %v2545, 120
      %v2830 = vpop.permute.xlu0 %2829
      %2831 = vrot.lane.b32.xlu0 %v2546, 120
      %v2832 = vpop.permute.xlu0 %2831
      %2833 = vrot.lane.b32.xlu0 %v2547, 120
      %v2834 = vpop.permute.xlu0 %2833
      %2835 = vrot.lane.b32.xlu0 %v2548, 120
      %v2836 = vpop.permute.xlu0 %2835
      %2837 = vrot.lane.b32.xlu0 %v2549, 120
      %v2838 = vpop.permute.xlu0 %2837
      %2839 = vrot.lane.b32.xlu0 %v2550, 120
      %v2840 = vpop.permute.xlu0 %2839
      %2841 = vrot.lane.b32.xlu0 %v2551, 120
      %v2842 = vpop.permute.xlu0 %2841
      %2843 = vrot.lane.b32.xlu0 %v2552, 120
      %v2844 = vpop.permute.xlu0 %2843
      %2845 = vrot.lane.b32.xlu0 %v2553, 120
      %v2846 = vpop.permute.xlu0 %2845
      %2847 = vrot.lane.b32.xlu0 %v2554, 120
      %v2848 = vpop.permute.xlu0 %2847
      %2849 = vrot.lane.b32.xlu0 %v2555, 120
      %v2850 = vpop.permute.xlu0 %2849
      %2851 = vrot.lane.b32.xlu0 %v2556, 120
      %v2852 = vpop.permute.xlu0 %2851
      %2853 = vrot.lane.b32.xlu0 %v2557, 120
      %v2854 = vpop.permute.xlu0 %2853
      %2855 = vrot.lane.b32.xlu0 %v2558, 120
      %v2856 = vpop.permute.xlu0 %2855
      %2857 = vrot.lane.b32.xlu0 %v2559, 120
      %v2858 = vpop.permute.xlu0 %2857
      %2859 = vrot.lane.b32.xlu0 %v2560, 120
      %v2860 = vpop.permute.xlu0 %2859
      %2861 = vrot.lane.b32.xlu0 %v2561, 120
      %v2862 = vpop.permute.xlu0 %2861
      %2863 = vrot.lane.b32.xlu0 %v2562, 120
      %v2864 = vpop.permute.xlu0 %2863
      %2865 = vrot.lane.b32.xlu0 %v2563, 120
      %v2866 = vpop.permute.xlu0 %2865
      %2867 = vrot.lane.b32.xlu0 %v2564, 120
      %v2868 = vpop.permute.xlu0 %2867
      %2869 = vrot.lane.b32.xlu0 %v2565, 120
      %v2870 = vpop.permute.xlu0 %2869
      %2871 = vrot.lane.b32.xlu0 %v2566, 120
      %v2872 = vpop.permute.xlu0 %2871
      %2873 = vrot.lane.b32.xlu0 %v2567, 120
      %v2874 = vpop.permute.xlu0 %2873
      %2875 = vrot.lane.b32.xlu0 %v2568, 120
      %v2876 = vpop.permute.xlu0 %2875
      %2877 = vrot.lane.b32.xlu0 %v2569, 120
      %v2878 = vpop.permute.xlu0 %2877
      %2879 = vrot.lane.b32.xlu0 %v2570, 120
      %v2880 = vpop.permute.xlu0 %2879
      %2881 = vrot.lane.b32.xlu0 %v2571, 120
      %v2882 = vpop.permute.xlu0 %2881
      %2883 = vrot.lane.b32.xlu0 %v2572, 120
      %v2884 = vpop.permute.xlu0 %2883
      %2885 = vrot.lane.b32.xlu0 %v2573, 120
      %v2886 = vpop.permute.xlu0 %2885
      %2887 = vrot.lane.b32.xlu0 %v2574, 120
      %v2888 = vpop.permute.xlu0 %2887
      %2889 = vrot.lane.b32.xlu0 %v2575, 120
      %v2890 = vpop.permute.xlu0 %2889
      %2891 = vrot.lane.b32.xlu0 %v2576, 120
      %v2892 = vpop.permute.xlu0 %2891
      %2893 = vrot.lane.b32.xlu0 %v2577, 120
      %v2894 = vpop.permute.xlu0 %2893
      %2895 = vrot.lane.b32.xlu0 %v2578, 120
      %v2896 = vpop.permute.xlu0 %2895
      %2897 = vrot.lane.b32.xlu0 %v2579, 120
      %v2898 = vpop.permute.xlu0 %2897
      %2899 = vrot.lane.b32.xlu0 %v2580, 120
      %v2900 = vpop.permute.xlu0 %2899
      %2901 = vrot.lane.b32.xlu0 %v2581, 120
      %v2902 = vpop.permute.xlu0 %2901
      %2903 = vrot.lane.b32.xlu0 %v2582, 120
      %v2904 = vpop.permute.xlu0 %2903
      %2905 = vrot.lane.b32.xlu0 %v2583, 120
      %v2906 = vpop.permute.xlu0 %2905
      %2907 = vrot.lane.b32.xlu0 %v2584, 120
      %v2908 = vpop.permute.xlu0 %2907
      %2909 = vrot.lane.b32.xlu0 %v2585, 120
      %v2910 = vpop.permute.xlu0 %2909
      %2911 = vrot.lane.b32.xlu0 %v2586, 120
      %v2912 = vpop.permute.xlu0 %2911
      %2913 = vrot.lane.b32.xlu0 %v2587, 120
      %v2914 = vpop.permute.xlu0 %2913
      %2915 = vrot.lane.b32.xlu0 %v2588, 120
      %v2916 = vpop.permute.xlu0 %2915
      %2917 = vrot.lane.b32.xlu0 %v2589, 120
      %v2918 = vpop.permute.xlu0 %2917
      %2919 = vrot.lane.b32.xlu0 %v2590, 120
      %v2920 = vpop.permute.xlu0 %2919
      %2921 = vrot.lane.b32.xlu0 %v2591, 120
      %v2922 = vpop.permute.xlu0 %2921
      %2923 = vrot.lane.b32.xlu0 %v2592, 120
      %v2924 = vpop.permute.xlu0 %2923
      %2925 = vrot.lane.b32.xlu0 %v2593, 120
      %v2926 = vpop.permute.xlu0 %2925
      %2927 = vrot.lane.b32.xlu0 %v2594, 120
      %v2928 = vpop.permute.xlu0 %2927
      %2929 = vrot.lane.b32.xlu0 %v2595, 120
      %v2930 = vpop.permute.xlu0 %2929
      %2931 = vrot.lane.b32.xlu0 %v2596, 120
      %v2932 = vpop.permute.xlu0 %2931
      %2933 = vrot.lane.b32.xlu0 %v2597, 120
      %v2934 = vpop.permute.xlu0 %2933
      %2935 = vrot.lane.b32.xlu0 %v2598, 120
      %v2936 = vpop.permute.xlu0 %2935
      %2937 = vrot.lane.b32.xlu0 %v2599, 120
      %v2938 = vpop.permute.xlu0 %2937
      %2939 = vrot.lane.b32.xlu0 %v2600, 120
      %v2940 = vpop.permute.xlu0 %2939
      %2941 = vrot.lane.b32.xlu0 %v2601, 120
      %v2942 = vpop.permute.xlu0 %2941
      %2943 = vrot.lane.b32.xlu0 %v2602, 120
      %v2944 = vpop.permute.xlu0 %2943
      %2945 = vrot.lane.b32.xlu0 %v2603, 120
      %v2946 = vpop.permute.xlu0 %2945
      %2947 = vrot.lane.b32.xlu0 %v2604, 120
      %v2948 = vpop.permute.xlu0 %2947
      %2949 = vrot.lane.b32.xlu0 %v2605, 120
      %v2950 = vpop.permute.xlu0 %2949
      %2951 = vrot.lane.b32.xlu0 %v2606, 120
      %v2952 = vpop.permute.xlu0 %2951
      %2953 = vrot.lane.b32.xlu0 %v2607, 120
      %v2954 = vpop.permute.xlu0 %2953
      %2955 = vrot.lane.b32.xlu0 %v2608, 120
      %v2956 = vpop.permute.xlu0 %2955
      %2957 = vrot.lane.b32.xlu0 %v2609, 120
      %v2958 = vpop.permute.xlu0 %2957
      %2959 = vrot.lane.b32.xlu0 %v2610, 120
      %v2960 = vpop.permute.xlu0 %2959
      %2961 = vrot.lane.b32.xlu0 %v2611, 120
      %v2962 = vpop.permute.xlu0 %2961
      %2963 = vrot.lane.b32.xlu0 %v2612, 120
      %v2964 = vpop.permute.xlu0 %2963
      %2965 = vrot.lane.b32.xlu0 %v2613, 120
      %v2966 = vpop.permute.xlu0 %2965
      %2967 = vrot.lane.b32.xlu0 %v2614, 120
      %v2968 = vpop.permute.xlu0 %2967
      %2969 = vrot.lane.b32.xlu0 %v2615, 120
      %v2970 = vpop.permute.xlu0 %2969
      %2971 = vrot.lane.b32.xlu0 %v2616, 120
      %v2972 = vpop.permute.xlu0 %2971
      %2973 = vrot.lane.b32.xlu0 %v2617, 120
      %v2974 = vpop.permute.xlu0 %2973
      %2975 = vrot.lane.b32.xlu0 %v2618, 120
      %v2976 = vpop.permute.xlu0 %2975
      %2977 = vrot.lane.b32.xlu0 %v2619, 120
      %v2978 = vpop.permute.xlu0 %2977
      %2979 = vrot.lane.b32.xlu0 %v2620, 120
      %v2980 = vpop.permute.xlu0 %2979
      %2981 = vrot.lane.b32.xlu0 %v2621, 120
      %v2982 = vpop.permute.xlu0 %2981
      %2983 = vrot.lane.b32.xlu0 %v2622, 120
      %v2984 = vpop.permute.xlu0 %2983
      %2985 = vrot.lane.b32.xlu0 %v2623, 120
      %v2986 = vpop.permute.xlu0 %2985
      %2987 = vrot.lane.b32.xlu0 %v2624, 120
      %v2988 = vpop.permute.xlu0 %2987
      %2989 = vrot.lane.b32.xlu0 %v2625, 120
      %v2990 = vpop.permute.xlu0 %2989
      %2991 = vrot.lane.b32.xlu0 %v2626, 120
      %v2992 = vpop.permute.xlu0 %2991
      %2993 = vrot.lane.b32.xlu0 %v2627, 120
      %v2994 = vpop.permute.xlu0 %2993
      %2995 = vrot.lane.b32.xlu0 %v2628, 120
      %v2996 = vpop.permute.xlu0 %2995
      %2997 = vrot.lane.b32.xlu0 %v2629, 120
      %v2998 = vpop.permute.xlu0 %2997
      %2999 = vrot.lane.b32.xlu0 %v2630, 120
      %v3000 = vpop.permute.xlu0 %2999
      %3001 = vrot.lane.b32.xlu0 %v2631, 120
      %v3002 = vpop.permute.xlu0 %3001
      %3003 = vrot.lane.b32.xlu0 %v2632, 120
      %v3004 = vpop.permute.xlu0 %3003
      %3005 = vrot.lane.b32.xlu0 %v2633, 120
      %v3006 = vpop.permute.xlu0 %3005
      %3007 = vrot.lane.b32.xlu0 %v2634, 120
      %v3008 = vpop.permute.xlu0 %3007
      %3009 = vrot.lane.b32.xlu0 %v2635, 120
      %v3010 = vpop.permute.xlu0 %3009
      %3011 = vrot.lane.b32.xlu0 %v2636, 120
      %v3012 = vpop.permute.xlu0 %3011
      %3013 = vrot.lane.b32.xlu0 %v2637, 120
      %v3014 = vpop.permute.xlu0 %3013
      %3015 = vrot.lane.b32.xlu0 %v2638, 120
      %v3016 = vpop.permute.xlu0 %3015
      %3017 = vrot.lane.b32.xlu0 %v2639, 120
      %v3018 = vpop.permute.xlu0 %3017
      %3019 = vrot.lane.b32.xlu0 %v2640, 120
      %v3020 = vpop.permute.xlu0 %3019
      %3021 = vrot.lane.b32.xlu0 %v2641, 120
      %v3022 = vpop.permute.xlu0 %3021
      %3023 = vrot.lane.b32.xlu0 %v2642, 120
      %v3024 = vpop.permute.xlu0 %3023
      %3025 = vrot.lane.b32.xlu0 %v2643, 120
      %v3026 = vpop.permute.xlu0 %3025
      %3027 = vrot.lane.b32.xlu0 %v2644, 120
      %v3028 = vpop.permute.xlu0 %3027
      %v3157 = vmax.f32 %v2517, %v2774
      %v3158 = vmax.f32 %v2518, %v2776
      %v3159 = vmax.f32 %v2519, %v2778
      %v3160 = vmax.f32 %v2520, %v2780
      %v3161 = vmax.f32 %v2521, %v2782
      %v3162 = vmax.f32 %v2522, %v2784
      %v3163 = vmax.f32 %v2523, %v2786
      %v3164 = vmax.f32 %v2524, %v2788
      %v3165 = vmax.f32 %v2525, %v2790
      %v3166 = vmax.f32 %v2526, %v2792
      %v3167 = vmax.f32 %v2527, %v2794
      %v3168 = vmax.f32 %v2528, %v2796
      %v3169 = vmax.f32 %v2529, %v2798
      %v3170 = vmax.f32 %v2530, %v2800
      %v3171 = vmax.f32 %v2531, %v2802
      %v3172 = vmax.f32 %v2532, %v2804
      %v3173 = vmax.f32 %v2533, %v2806
      %v3174 = vmax.f32 %v2534, %v2808
      %v3175 = vmax.f32 %v2535, %v2810
      %v3176 = vmax.f32 %v2536, %v2812
      %v3177 = vmax.f32 %v2537, %v2814
      %v3178 = vmax.f32 %v2538, %v2816
      %v3179 = vmax.f32 %v2539, %v2818
      %v3180 = vmax.f32 %v2540, %v2820
      %v3181 = vmax.f32 %v2541, %v2822
      %v3182 = vmax.f32 %v2542, %v2824
      %v3183 = vmax.f32 %v2543, %v2826
      %v3184 = vmax.f32 %v2544, %v2828
      %v3185 = vmax.f32 %v2545, %v2830
      %v3186 = vmax.f32 %v2546, %v2832
      %v3187 = vmax.f32 %v2547, %v2834
      %v3188 = vmax.f32 %v2548, %v2836
      %v3189 = vmax.f32 %v2549, %v2838
      %v3190 = vmax.f32 %v2550, %v2840
      %v3191 = vmax.f32 %v2551, %v2842
      %v3192 = vmax.f32 %v2552, %v2844
      %v3193 = vmax.f32 %v2553, %v2846
      %v3194 = vmax.f32 %v2554, %v2848
      %v3195 = vmax.f32 %v2555, %v2850
      %v3196 = vmax.f32 %v2556, %v2852
      %v3197 = vmax.f32 %v2557, %v2854
      %v3198 = vmax.f32 %v2558, %v2856
      %v3199 = vmax.f32 %v2559, %v2858
      %v3200 = vmax.f32 %v2560, %v2860
      %v3201 = vmax.f32 %v2561, %v2862
      %v3202 = vmax.f32 %v2562, %v2864
      %v3203 = vmax.f32 %v2563, %v2866
      %v3204 = vmax.f32 %v2564, %v2868
      %v3205 = vmax.f32 %v2565, %v2870
      %v3206 = vmax.f32 %v2566, %v2872
      %v3207 = vmax.f32 %v2567, %v2874
      %v3208 = vmax.f32 %v2568, %v2876
      %v3209 = vmax.f32 %v2569, %v2878
      %v3210 = vmax.f32 %v2570, %v2880
      %v3211 = vmax.f32 %v2571, %v2882
      %v3212 = vmax.f32 %v2572, %v2884
      %v3213 = vmax.f32 %v2573, %v2886
      %v3214 = vmax.f32 %v2574, %v2888
      %v3215 = vmax.f32 %v2575, %v2890
      %v3216 = vmax.f32 %v2576, %v2892
      %v3217 = vmax.f32 %v2577, %v2894
      %v3218 = vmax.f32 %v2578, %v2896
      %v3219 = vmax.f32 %v2579, %v2898
      %v3220 = vmax.f32 %v2580, %v2900
      %v3221 = vmax.f32 %v2581, %v2902
      %v3222 = vmax.f32 %v2582, %v2904
      %v3223 = vmax.f32 %v2583, %v2906
      %v3224 = vmax.f32 %v2584, %v2908
      %v3225 = vmax.f32 %v2585, %v2910
      %v3226 = vmax.f32 %v2586, %v2912
      %v3227 = vmax.f32 %v2587, %v2914
      %v3228 = vmax.f32 %v2588, %v2916
      %v3229 = vmax.f32 %v2589, %v2918
      %v3230 = vmax.f32 %v2590, %v2920
      %v3231 = vmax.f32 %v2591, %v2922
      %v3232 = vmax.f32 %v2592, %v2924
      %v3233 = vmax.f32 %v2593, %v2926
      %v3234 = vmax.f32 %v2594, %v2928
      %v3235 = vmax.f32 %v2595, %v2930
      %v3236 = vmax.f32 %v2596, %v2932
      %v3237 = vmax.f32 %v2597, %v2934
      %v3238 = vmax.f32 %v2598, %v2936
      %v3239 = vmax.f32 %v2599, %v2938
      %v3240 = vmax.f32 %v2600, %v2940
      %v3241 = vmax.f32 %v2601, %v2942
      %v3242 = vmax.f32 %v2602, %v2944
      %v3243 = vmax.f32 %v2603, %v2946
      %v3244 = vmax.f32 %v2604, %v2948
      %v3245 = vmax.f32 %v2605, %v2950
      %v3246 = vmax.f32 %v2606, %v2952
      %v3247 = vmax.f32 %v2607, %v2954
      %v3248 = vmax.f32 %v2608, %v2956
      %v3249 = vmax.f32 %v2609, %v2958
      %v3250 = vmax.f32 %v2610, %v2960
      %v3251 = vmax.f32 %v2611, %v2962
      %v3252 = vmax.f32 %v2612, %v2964
      %v3253 = vmax.f32 %v2613, %v2966
      %v3254 = vmax.f32 %v2614, %v2968
      %v3255 = vmax.f32 %v2615, %v2970
      %v3256 = vmax.f32 %v2616, %v2972
      %v3257 = vmax.f32 %v2617, %v2974
      %v3258 = vmax.f32 %v2618, %v2976
      %v3259 = vmax.f32 %v2619, %v2978
      %v3260 = vmax.f32 %v2620, %v2980
      %v3261 = vmax.f32 %v2621, %v2982
      %v3262 = vmax.f32 %v2622, %v2984
      %v3263 = vmax.f32 %v2623, %v2986
      %v3264 = vmax.f32 %v2624, %v2988
      %v3265 = vmax.f32 %v2625, %v2990
      %v3266 = vmax.f32 %v2626, %v2992
      %v3267 = vmax.f32 %v2627, %v2994
      %v3268 = vmax.f32 %v2628, %v2996
      %v3269 = vmax.f32 %v2629, %v2998
      %v3270 = vmax.f32 %v2630, %v3000
      %v3271 = vmax.f32 %v2631, %v3002
      %v3272 = vmax.f32 %v2632, %v3004
      %v3273 = vmax.f32 %v2633, %v3006
      %v3274 = vmax.f32 %v2634, %v3008
      %v3275 = vmax.f32 %v2635, %v3010
      %v3276 = vmax.f32 %v2636, %v3012
      %v3277 = vmax.f32 %v2637, %v3014
      %v3278 = vmax.f32 %v2638, %v3016
      %v3279 = vmax.f32 %v2639, %v3018
      %v3280 = vmax.f32 %v2640, %v3020
      %v3281 = vmax.f32 %v2641, %v3022
      %v3282 = vmax.f32 %v2642, %v3024
      %v3283 = vmax.f32 %v2643, %v3026
      %v3284 = vmax.f32 %v2644, %v3028
      %v3285 = vpack.c.bf16 %v3158, %v3157
      %v3286 = vpack.c.bf16 %v3160, %v3159
      %v3287 = vpack.c.bf16 %v3162, %v3161
      %v3288 = vpack.c.bf16 %v3164, %v3163
      %v3289 = vpack.c.bf16 %v3166, %v3165
      %v3290 = vpack.c.bf16 %v3168, %v3167
      %v3291 = vpack.c.bf16 %v3170, %v3169
      %v3292 = vpack.c.bf16 %v3172, %v3171
      %v3293 = vpack.c.bf16 %v3174, %v3173
      %v3294 = vpack.c.bf16 %v3176, %v3175
      %v3295 = vpack.c.bf16 %v3178, %v3177
      %v3296 = vpack.c.bf16 %v3180, %v3179
      %v3297 = vpack.c.bf16 %v3182, %v3181
      %v3298 = vpack.c.bf16 %v3184, %v3183
      %v3299 = vpack.c.bf16 %v3186, %v3185
      %v3300 = vpack.c.bf16 %v3188, %v3187
      %v3301 = vpack.c.bf16 %v3190, %v3189
      %v3302 = vpack.c.bf16 %v3192, %v3191
      %v3303 = vpack.c.bf16 %v3194, %v3193
      %v3304 = vpack.c.bf16 %v3196, %v3195
      %v3305 = vpack.c.bf16 %v3198, %v3197
      %v3306 = vpack.c.bf16 %v3200, %v3199
      %v3307 = vpack.c.bf16 %v3202, %v3201
      %v3308 = vpack.c.bf16 %v3204, %v3203
      %v3309 = vpack.c.bf16 %v3206, %v3205
      %v3310 = vpack.c.bf16 %v3208, %v3207
      %v3311 = vpack.c.bf16 %v3210, %v3209
      %v3312 = vpack.c.bf16 %v3212, %v3211
      %v3313 = vpack.c.bf16 %v3214, %v3213
      %v3314 = vpack.c.bf16 %v3216, %v3215
      %v3315 = vpack.c.bf16 %v3218, %v3217
      %v3316 = vpack.c.bf16 %v3220, %v3219
      %v3317 = vpack.c.bf16 %v3222, %v3221
      %v3318 = vpack.c.bf16 %v3224, %v3223
      %v3319 = vpack.c.bf16 %v3226, %v3225
      %v3320 = vpack.c.bf16 %v3228, %v3227
      %v3321 = vpack.c.bf16 %v3230, %v3229
      %v3322 = vpack.c.bf16 %v3232, %v3231
      %v3323 = vpack.c.bf16 %v3234, %v3233
      %v3324 = vpack.c.bf16 %v3236, %v3235
      %v3325 = vpack.c.bf16 %v3238, %v3237
      %v3326 = vpack.c.bf16 %v3240, %v3239
      %v3327 = vpack.c.bf16 %v3242, %v3241
      %v3328 = vpack.c.bf16 %v3244, %v3243
      %v3329 = vpack.c.bf16 %v3246, %v3245
      %v3330 = vpack.c.bf16 %v3248, %v3247
      %v3331 = vpack.c.bf16 %v3250, %v3249
      %v3332 = vpack.c.bf16 %v3252, %v3251
      %v3333 = vpack.c.bf16 %v3254, %v3253
      %v3334 = vpack.c.bf16 %v3256, %v3255
      %v3335 = vpack.c.bf16 %v3258, %v3257
      %v3336 = vpack.c.bf16 %v3260, %v3259
      %v3337 = vpack.c.bf16 %v3262, %v3261
      %v3338 = vpack.c.bf16 %v3264, %v3263
      %v3339 = vpack.c.bf16 %v3266, %v3265
      %v3340 = vpack.c.bf16 %v3268, %v3267
      %v3341 = vpack.c.bf16 %v3270, %v3269
      %v3342 = vpack.c.bf16 %v3272, %v3271
      %v3343 = vpack.c.bf16 %v3274, %v3273
      %v3344 = vpack.c.bf16 %v3276, %v3275
      %v3345 = vpack.c.bf16 %v3278, %v3277
      %v3346 = vpack.c.bf16 %v3280, %v3279
      %v3347 = vpack.c.bf16 %v3282, %v3281
      %v3348 = vpack.c.bf16 %v3284, %v3283
      %v3349 = vld [vmem:[%s5] sm:$0xf]
      %v3350 = vld [vmem:[%s6] sm:$0x1]
      %v3352 = vlaneseq
      %v3353 = vshrl.u32 %v3352, 7
      %v3354 = vsub.s32 0, %v3353
      %v3355 = vrot.slane %v3350, %v3354
      %vm3357 = vcmask 64512
      %v3359 = vsel %vm3357, %v3285, 0
      %v3362 = vsel %vm3357, %v3286, 0
      %v3365 = vsel %vm3357, %v3287, 0
      %v3368 = vsel %vm3357, %v3288, 0
      %v3371 = vsel %vm3357, %v3289, 0
      %v3374 = vsel %vm3357, %v3290, 0
      %v3377 = vsel %vm3357, %v3291, 0
      %v3380 = vsel %vm3357, %v3292, 0
      %v3383 = vsel %vm3357, %v3293, 0
      %v3386 = vsel %vm3357, %v3294, 0
      %v3389 = vsel %vm3357, %v3295, 0
      %v3392 = vsel %vm3357, %v3296, 0
      %v3395 = vsel %vm3357, %v3297, 0
      %v3398 = vsel %vm3357, %v3298, 0
      %v3401 = vsel %vm3357, %v3299, 0
      %v3404 = vsel %vm3357, %v3300, 0
      %v3407 = vsel %vm3357, %v3301, 0
      %v3410 = vsel %vm3357, %v3302, 0
      %v3413 = vsel %vm3357, %v3303, 0
      %v3416 = vsel %vm3357, %v3304, 0
      %v3419 = vsel %vm3357, %v3305, 0
      %v3422 = vsel %vm3357, %v3306, 0
      %v3425 = vsel %vm3357, %v3307, 0
      %v3428 = vsel %vm3357, %v3308, 0
      %v3431 = vsel %vm3357, %v3309, 0
      %v3434 = vsel %vm3357, %v3310, 0
      %v3437 = vsel %vm3357, %v3311, 0
      %v3440 = vsel %vm3357, %v3312, 0
      %v3443 = vsel %vm3357, %v3313, 0
      %v3446 = vsel %vm3357, %v3314, 0
      %v3449 = vsel %vm3357, %v3315, 0
      %v3452 = vsel %vm3357, %v3316, 0
      %v3455 = vsel %vm3357, %v3317, 0
      %v3458 = vsel %vm3357, %v3318, 0
      %v3461 = vsel %vm3357, %v3319, 0
      %v3464 = vsel %vm3357, %v3320, 0
      %v3467 = vsel %vm3357, %v3321, 0
      %v3470 = vsel %vm3357, %v3322, 0
      %v3473 = vsel %vm3357, %v3323, 0
      %v3476 = vsel %vm3357, %v3324, 0
      %v3479 = vsel %vm3357, %v3325, 0
      %v3482 = vsel %vm3357, %v3326, 0
      %v3485 = vsel %vm3357, %v3327, 0
      %v3488 = vsel %vm3357, %v3328, 0
      %v3491 = vsel %vm3357, %v3329, 0
      %v3494 = vsel %vm3357, %v3330, 0
      %v3497 = vsel %vm3357, %v3331, 0
      %v3500 = vsel %vm3357, %v3332, 0
      %v3503 = vsel %vm3357, %v3333, 0
      %v3506 = vsel %vm3357, %v3334, 0
      %v3509 = vsel %vm3357, %v3335, 0
      %v3512 = vsel %vm3357, %v3336, 0
      %v3515 = vsel %vm3357, %v3337, 0
      %v3518 = vsel %vm3357, %v3338, 0
      %v3521 = vsel %vm3357, %v3339, 0
      %v3524 = vsel %vm3357, %v3340, 0
      %v3527 = vsel %vm3357, %v3341, 0
      %v3530 = vsel %vm3357, %v3342, 0
      %v3533 = vsel %vm3357, %v3343, 0
      %v3536 = vsel %vm3357, %v3344, 0
      %v3539 = vsel %vm3357, %v3345, 0
      %v3542 = vsel %vm3357, %v3346, 0
      %v3545 = vsel %vm3357, %v3347, 0
      %v3548 = vsel %vm3357, %v3348, 0
      %vm3550 = vcmask 1043456
      %v3552 = vsel %vm3550, %v3349, 0
      %3554 = vmatprep.subr.bf16.mxu0 0
      %3555 = vmatpush1.bf16.msra.mxu0 %v3552
      %3556 = vmatprep.subr.bf16.mxu0 0
      %3557 = vmatpush1.bf16.msra.mxu0 0
      %3558 = vmatprep.subr.bf16.mxu0 0
      %3559 = vmatpush1.bf16.msra.mxu0 0
      %3560 = vmatprep.subr.bf16.mxu0 0
      %3561 = vmatpush1.bf16.msra.mxu0 0
      %3562 = vmatprep.subr.bf16.mxu0 0
      %3563 = vmatpush1.bf16.msra.mxu0 0
      %3564 = vmatprep.subr.bf16.mxu0 0
      %3565 = vmatpush1.bf16.msra.mxu0 0
      %3566 = vmatprep.subr.bf16.mxu0 0
      %3567 = vmatpush1.bf16.msra.mxu0 0
      %3568 = vmatprep.subr.bf16.mxu0 0
      %3569 = vmatpush1.bf16.msra.mxu0 0
      %3570 = vmatprep.subr.bf16.mxu0 0
      %3571 = vmatpush1.bf16.msra.mxu0 0
      %3572 = vmatprep.subr.bf16.mxu0 0
      %3573 = vmatpush1.bf16.msra.mxu0 0
      %3574 = vmatprep.subr.bf16.mxu0 0
      %3575 = vmatpush1.bf16.msra.mxu0 0
      %3576 = vmatprep.subr.bf16.mxu0 0
      %3577 = vmatpush1.bf16.msra.mxu0 0
      %3578 = vmatprep.subr.bf16.mxu0 0
      %3579 = vmatpush1.bf16.msra.mxu0 0
      %3580 = vmatprep.subr.bf16.mxu0 0
      %3581 = vmatpush1.bf16.msra.mxu0 0
      %3582 = vmatprep.subr.bf16.mxu0 0
      %3583 = vmatpush1.bf16.msra.mxu0 0
      %3584 = vmatprep.subr.bf16.mxu0 0
      %3585 = vmatpush1.bf16.msra.mxu0 0
      %3586 = vmatprep.mubr.bf16.mxu0 0
      %3587 = vmatmul.mubr.bf16.gmra.mrb[0].mxu0 %v3359
      %v3588 = vpop.f32.mrb[0].mxu0
      %v3589 = vadd.f32 %v3355, %v3588
      %v3590 = vpop.f32.mrb[0].mxu0
      %v3591 = vpop.f32.mrb[0].mxu0
      %v3592 = vadd.f32 %v3355, %v3591
      %v3593 = vpop.f32.mrb[0].mxu0
      %3594 = vmatprep.mubr.bf16.mxu0 0
      %3595 = vmatmul.mubr.bf16.gmra.mrb[0].mxu0 %v3362
      %v3596 = vpop.f32.mrb[0].mxu0
      %v3597 = vadd.f32 %v3355, %v3596
      %v3598 = vpop.f32.mrb[0].mxu0
      %v3599 = vpop.f32.mrb[0].mxu0
      %v3600 = vadd.f32 %v3355, %v3599
      %v3601 = vpop.f32.mrb[0].mxu0
      %3602 = vmatprep.mubr.bf16.mxu0 0
      %3603 = vmatmul.mubr.bf16.gmra.mrb[0].mxu0 %v3365
      %v3604 = vpop.f32.mrb[0].mxu0
      %v3605 = vadd.f32 %v3355, %v3604
      %v3606 = vpop.f32.mrb[0].mxu0
      %v3607 = vpop.f32.mrb[0].mxu0
      %v3608 = vadd.f32 %v3355, %v3607
      %v3609 = vpop.f32.mrb[0].mxu0
      %3610 = vmatprep.mubr.bf16.mxu0 0
      %3611 = vmatmul.mubr.bf16.gmra.mrb[0].mxu0 %v3368
      %v3612 = vpop.f32.mrb[0].mxu0
      %v3613 = vadd.f32 %v3355, %v3612
      %v3614 = vpop.f32.mrb[0].mxu0
      %v3615 = vpop.f32.mrb[0].mxu0
      %v3616 = vadd.f32 %v3355, %v3615
      %v3617 = vpop.f32.mrb[0].mxu0
      %3618 = vmatprep.mubr.bf16.mxu0 0
      %3619 = vmatmul.mubr.bf16.gmra.mrb[0].mxu0 %v3371
      %v3620 = vpop.f32.mrb[0].mxu0
      %v3621 = vadd.f32 %v3355, %v3620
      %v3622 = vpop.f32.mrb[0].mxu0
      %v3623 = vpop.f32.mrb[0].mxu0
      %v3624 = vadd.f32 %v3355, %v3623
      %v3625 = vpop.f32.mrb[0].mxu0
      %3626 = vmatprep.mubr.bf16.mxu0 0
      %3627 = vmatmul.mubr.bf16.gmra.mrb[0].mxu0 %v3374
      %v3628 = vpop.f32.mrb[0].mxu0
      %v3629 = vadd.f32 %v3355, %v3628
      %v3630 = vpop.f32.mrb[0].mxu0
      %v3631 = vpop.f32.mrb[0].mxu0
      %v3632 = vadd.f32 %v3355, %v3631
      %v3633 = vpop.f32.mrb[0].mxu0
      %3634 = vmatprep.mubr.bf16.mxu0 0
      %3635 = vmatmul.mubr.bf16.gmra.mrb[0].mxu0 %v3377
      %v3636 = vpop.f32.mrb[0].mxu0
      %v3637 = vadd.f32 %v3355, %v3636
      %v3638 = vpop.f32.mrb[0].mxu0
      %v3639 = vpop.f32.mrb[0].mxu0
      %v3640 = vadd.f32 %v3355, %v3639
      %v3641 = vpop.f32.mrb[0].mxu0
      %3642 = vmatprep.mubr.bf16.mxu0 0
      %3643 = vmatmul.mubr.bf16.gmra.mrb[0].mxu0 %v3380
      %v3644 = vpop.f32.mrb[0].mxu0
      %v3645 = vadd.f32 %v3355, %v3644
      %v3646 = vpop.f32.mrb[0].mxu0
      %v3647 = vpop.f32.mrb[0].mxu0
      %v3648 = vadd.f32 %v3355, %v3647
      %v3649 = vpop.f32.mrb[0].mxu0
      %3650 = vmatprep.mubr.bf16.mxu0 0
      %3651 = vmatmul.mubr.bf16.gmra.mrb[0].mxu0 %v3383
      %v3652 = vpop.f32.mrb[0].mxu0
      %v3653 = vadd.f32 %v3355, %v3652
      %v3654 = vpop.f32.mrb[0].mxu0
      %v3655 = vpop.f32.mrb[0].mxu0
      %v3656 = vadd.f32 %v3355, %v3655
      %v3657 = vpop.f32.mrb[0].mxu0
      %3658 = vmatprep.mubr.bf16.mxu0 0
      %3659 = vmatmul.mubr.bf16.gmra.mrb[0].mxu0 %v3386
      %v3660 = vpop.f32.mrb[0].mxu0
      %v3661 = vadd.f32 %v3355, %v3660
      %v3662 = vpop.f32.mrb[0].mxu0
      %v3663 = vpop.f32.mrb[0].mxu0
      %v3664 = vadd.f32 %v3355, %v3663
      %v3665 = vpop.f32.mrb[0].mxu0
      %3666 = vmatprep.mubr.bf16.mxu0 0
      %3667 = vmatmul.mubr.bf16.gmra.mrb[0].mxu0 %v3389
      %v3668 = vpop.f32.mrb[0].mxu0
      %v3669 = vadd.f32 %v3355, %v3668
      %v3670 = vpop.f32.mrb[0].mxu0
      %v3671 = vpop.f32.mrb[0].mxu0
      %v3672 = vadd.f32 %v3355, %v3671
      %v3673 = vpop.f32.mrb[0].mxu0
      %3674 = vmatprep.mubr.bf16.mxu0 0
      %3675 = vmatmul.mubr.bf16.gmra.mrb[0].mxu0 %v3392
      %v3676 = vpop.f32.mrb[0].mxu0
      %v3677 = vadd.f32 %v3355, %v3676
      %v3678 = vpop.f32.mrb[0].mxu0
      %v3679 = vpop.f32.mrb[0].mxu0
      %v3680 = vadd.f32 %v3355, %v3679
      %v3681 = vpop.f32.mrb[0].mxu0
      %3682 = vmatprep.mubr.bf16.mxu0 0
      %3683 = vmatmul.mubr.bf16.gmra.mrb[0].mxu0 %v3395
      %v3684 = vpop.f32.mrb[0].mxu0
      %v3685 = vadd.f32 %v3355, %v3684
      %v3686 = vpop.f32.mrb[0].mxu0
      %v3687 = vpop.f32.mrb[0].mxu0
      %v3688 = vadd.f32 %v3355, %v3687
      %v3689 = vpop.f32.mrb[0].mxu0
      %3690 = vmatprep.mubr.bf16.mxu0 0
      %3691 = vmatmul.mubr.bf16.gmra.mrb[0].mxu0 %v3398
      %v3692 = vpop.f32.mrb[0].mxu0
      %v3693 = vadd.f32 %v3355, %v3692
      %v3694 = vpop.f32.mrb[0].mxu0
      %v3695 = vpop.f32.mrb[0].mxu0
      %v3696 = vadd.f32 %v3355, %v3695
      %v3697 = vpop.f32.mrb[0].mxu0
      %3698 = vmatprep.mubr.bf16.mxu0 0
      %3699 = vmatmul.mubr.bf16.gmra.mrb[0].mxu0 %v3401
      %v3700 = vpop.f32.mrb[0].mxu0
      %v3701 = vadd.f32 %v3355, %v3700
      %v3702 = vpop.f32.mrb[0].mxu0
      %v3703 = vpop.f32.mrb[0].mxu0
      %v3704 = vadd.f32 %v3355, %v3703
      %v3705 = vpop.f32.mrb[0].mxu0
      %3706 = vmatprep.mubr.bf16.mxu0 0
      %3707 = vmatmul.mubr.bf16.gmra.mrb[0].mxu0 %v3404
      %v3708 = vpop.f32.mrb[0].mxu0
      %v3709 = vadd.f32 %v3355, %v3708
      %v3710 = vpop.f32.mrb[0].mxu0
      %v3711 = vpop.f32.mrb[0].mxu0
      %v3712 = vadd.f32 %v3355, %v3711
      %v3713 = vpop.f32.mrb[0].mxu0
      %3714 = vmatprep.mubr.bf16.mxu0 0
      %3715 = vmatmul.mubr.bf16.gmra.mrb[0].mxu0 %v3407
      %v3716 = vpop.f32.mrb[0].mxu0
      %v3717 = vadd.f32 %v3355, %v3716
      %v3718 = vpop.f32.mrb[0].mxu0
      %v3719 = vpop.f32.mrb[0].mxu0
      %v3720 = vadd.f32 %v3355, %v3719
      %v3721 = vpop.f32.mrb[0].mxu0
      %3722 = vmatprep.mubr.bf16.mxu0 0
      %3723 = vmatmul.mubr.bf16.gmra.mrb[0].mxu0 %v3410
      %v3724 = vpop.f32.mrb[0].mxu0
      %v3725 = vadd.f32 %v3355, %v3724
      %v3726 = vpop.f32.mrb[0].mxu0
      %v3727 = vpop.f32.mrb[0].mxu0
      %v3728 = vadd.f32 %v3355, %v3727
      %v3729 = vpop.f32.mrb[0].mxu0
      %3730 = vmatprep.mubr.bf16.mxu0 0
      %3731 = vmatmul.mubr.bf16.gmra.mrb[0].mxu0 %v3413
      %v3732 = vpop.f32.mrb[0].mxu0
      %v3733 = vadd.f32 %v3355, %v3732
      %v3734 = vpop.f32.mrb[0].mxu0
      %v3735 = vpop.f32.mrb[0].mxu0
      %v3736 = vadd.f32 %v3355, %v3735
      %v3737 = vpop.f32.mrb[0].mxu0
      %3738 = vmatprep.mubr.bf16.mxu0 0
      %3739 = vmatmul.mubr.bf16.gmra.mrb[0].mxu0 %v3416
      %v3740 = vpop.f32.mrb[0].mxu0
      %v3741 = vadd.f32 %v3355, %v3740
      %v3742 = vpop.f32.mrb[0].mxu0
      %v3743 = vpop.f32.mrb[0].mxu0
      %v3744 = vadd.f32 %v3355, %v3743
      %v3745 = vpop.f32.mrb[0].mxu0
      %3746 = vmatprep.mubr.bf16.mxu0 0
      %3747 = vmatmul.mubr.bf16.gmra.mrb[0].mxu0 %v3419
      %v3748 = vpop.f32.mrb[0].mxu0
      %v3749 = vadd.f32 %v3355, %v3748
      %v3750 = vpop.f32.mrb[0].mxu0
      %v3751 = vpop.f32.mrb[0].mxu0
      %v3752 = vadd.f32 %v3355, %v3751
      %v3753 = vpop.f32.mrb[0].mxu0
      %3754 = vmatprep.mubr.bf16.mxu0 0
      %3755 = vmatmul.mubr.bf16.gmra.mrb[0].mxu0 %v3422
      %v3756 = vpop.f32.mrb[0].mxu0
      %v3757 = vadd.f32 %v3355, %v3756
      %v3758 = vpop.f32.mrb[0].mxu0
      %v3759 = vpop.f32.mrb[0].mxu0
      %v3760 = vadd.f32 %v3355, %v3759
      %v3761 = vpop.f32.mrb[0].mxu0
      %3762 = vmatprep.mubr.bf16.mxu0 0
      %3763 = vmatmul.mubr.bf16.gmra.mrb[0].mxu0 %v3425
      %v3764 = vpop.f32.mrb[0].mxu0
      %v3765 = vadd.f32 %v3355, %v3764
      %v3766 = vpop.f32.mrb[0].mxu0
      %v3767 = vpop.f32.mrb[0].mxu0
      %v3768 = vadd.f32 %v3355, %v3767
      %v3769 = vpop.f32.mrb[0].mxu0
      %3770 = vmatprep.mubr.bf16.mxu0 0
      %3771 = vmatmul.mubr.bf16.gmra.mrb[0].mxu0 %v3428
      %v3772 = vpop.f32.mrb[0].mxu0
      %v3773 = vadd.f32 %v3355, %v3772
      %v3774 = vpop.f32.mrb[0].mxu0
      %v3775 = vpop.f32.mrb[0].mxu0
      %v3776 = vadd.f32 %v3355, %v3775
      %v3777 = vpop.f32.mrb[0].mxu0
      %3778 = vmatprep.mubr.bf16.mxu0 0
      %3779 = vmatmul.mubr.bf16.gmra.mrb[0].mxu0 %v3431
      %v3780 = vpop.f32.mrb[0].mxu0
      %v3781 = vadd.f32 %v3355, %v3780
      %v3782 = vpop.f32.mrb[0].mxu0
      %v3783 = vpop.f32.mrb[0].mxu0
      %v3784 = vadd.f32 %v3355, %v3783
      %v3785 = vpop.f32.mrb[0].mxu0
      %3786 = vmatprep.mubr.bf16.mxu0 0
      %3787 = vmatmul.mubr.bf16.gmra.mrb[0].mxu0 %v3434
      %v3788 = vpop.f32.mrb[0].mxu0
      %v3789 = vadd.f32 %v3355, %v3788
      %v3790 = vpop.f32.mrb[0].mxu0
      %v3791 = vpop.f32.mrb[0].mxu0
      %v3792 = vadd.f32 %v3355, %v3791
      %v3793 = vpop.f32.mrb[0].mxu0
      %3794 = vmatprep.mubr.bf16.mxu0 0
      %3795 = vmatmul.mubr.bf16.gmra.mrb[0].mxu0 %v3437
      %v3796 = vpop.f32.mrb[0].mxu0
      %v3797 = vadd.f32 %v3355, %v3796
      %v3798 = vpop.f32.mrb[0].mxu0
      %v3799 = vpop.f32.mrb[0].mxu0
      %v3800 = vadd.f32 %v3355, %v3799
      %v3801 = vpop.f32.mrb[0].mxu0
      %3802 = vmatprep.mubr.bf16.mxu0 0
      %3803 = vmatmul.mubr.bf16.gmra.mrb[0].mxu0 %v3440
      %v3804 = vpop.f32.mrb[0].mxu0
      %v3805 = vadd.f32 %v3355, %v3804
      %v3806 = vpop.f32.mrb[0].mxu0
      %v3807 = vpop.f32.mrb[0].mxu0
      %v3808 = vadd.f32 %v3355, %v3807
      %v3809 = vpop.f32.mrb[0].mxu0
      %3810 = vmatprep.mubr.bf16.mxu0 0
      %3811 = vmatmul.mubr.bf16.gmra.mrb[0].mxu0 %v3443
      %v3812 = vpop.f32.mrb[0].mxu0
      %v3813 = vadd.f32 %v3355, %v3812
      %v3814 = vpop.f32.mrb[0].mxu0
      %v3815 = vpop.f32.mrb[0].mxu0
      %v3816 = vadd.f32 %v3355, %v3815
      %v3817 = vpop.f32.mrb[0].mxu0
      %3818 = vmatprep.mubr.bf16.mxu0 0
      %3819 = vmatmul.mubr.bf16.gmra.mrb[0].mxu0 %v3446
      %v3820 = vpop.f32.mrb[0].mxu0
      %v3821 = vadd.f32 %v3355, %v3820
      %v3822 = vpop.f32.mrb[0].mxu0
      %v3823 = vpop.f32.mrb[0].mxu0
      %v3824 = vadd.f32 %v3355, %v3823
      %v3825 = vpop.f32.mrb[0].mxu0
      %3826 = vmatprep.mubr.bf16.mxu0 0
      %3827 = vmatmul.mubr.bf16.gmra.mrb[0].mxu0 %v3449
      %v3828 = vpop.f32.mrb[0].mxu0
      %v3829 = vadd.f32 %v3355, %v3828
      %v3830 = vpop.f32.mrb[0].mxu0
      %v3831 = vpop.f32.mrb[0].mxu0
      %v3832 = vadd.f32 %v3355, %v3831
      %v3833 = vpop.f32.mrb[0].mxu0
      %3834 = vmatprep.mubr.bf16.mxu0 0
      %3835 = vmatmul.mubr.bf16.gmra.mrb[0].mxu0 %v3452
      %v3836 = vpop.f32.mrb[0].mxu0
      %v3837 = vadd.f32 %v3355, %v3836
      %v3838 = vpop.f32.mrb[0].mxu0
      %v3839 = vpop.f32.mrb[0].mxu0
      %v3840 = vadd.f32 %v3355, %v3839
      %v3841 = vpop.f32.mrb[0].mxu0
      %3842 = vmatprep.mubr.bf16.mxu0 0
      %3843 = vmatmul.mubr.bf16.gmra.mrb[0].mxu0 %v3455
      %v3844 = vpop.f32.mrb[0].mxu0
      %v3845 = vadd.f32 %v3355, %v3844
      %v3846 = vpop.f32.mrb[0].mxu0
      %v3847 = vpop.f32.mrb[0].mxu0
      %v3848 = vadd.f32 %v3355, %v3847
      %v3849 = vpop.f32.mrb[0].mxu0
      %3850 = vmatprep.mubr.bf16.mxu0 0
      %3851 = vmatmul.mubr.bf16.gmra.mrb[0].mxu0 %v3458
      %v3852 = vpop.f32.mrb[0].mxu0
      %v3853 = vadd.f32 %v3355, %v3852
      %v3854 = vpop.f32.mrb[0].mxu0
      %v3855 = vpop.f32.mrb[0].mxu0
      %v3856 = vadd.f32 %v3355, %v3855
      %v3857 = vpop.f32.mrb[0].mxu0
      %3858 = vmatprep.mubr.bf16.mxu0 0
      %3859 = vmatmul.mubr.bf16.gmra.mrb[0].mxu0 %v3461
      %v3860 = vpop.f32.mrb[0].mxu0
      %v3861 = vadd.f32 %v3355, %v3860
      %v3862 = vpop.f32.mrb[0].mxu0
      %v3863 = vpop.f32.mrb[0].mxu0
      %v3864 = vadd.f32 %v3355, %v3863
      %v3865 = vpop.f32.mrb[0].mxu0
      %3866 = vmatprep.mubr.bf16.mxu0 0
      %3867 = vmatmul.mubr.bf16.gmra.mrb[0].mxu0 %v3464
      %v3868 = vpop.f32.mrb[0].mxu0
      %v3869 = vadd.f32 %v3355, %v3868
      %v3870 = vpop.f32.mrb[0].mxu0
      %v3871 = vpop.f32.mrb[0].mxu0
      %v3872 = vadd.f32 %v3355, %v3871
      %v3873 = vpop.f32.mrb[0].mxu0
      %3874 = vmatprep.mubr.bf16.mxu0 0
      %3875 = vmatmul.mubr.bf16.gmra.mrb[0].mxu0 %v3467
      %v3876 = vpop.f32.mrb[0].mxu0
      %v3877 = vadd.f32 %v3355, %v3876
      %v3878 = vpop.f32.mrb[0].mxu0
      %v3879 = vpop.f32.mrb[0].mxu0
      %v3880 = vadd.f32 %v3355, %v3879
      %v3881 = vpop.f32.mrb[0].mxu0
      %3882 = vmatprep.mubr.bf16.mxu0 0
      %3883 = vmatmul.mubr.bf16.gmra.mrb[0].mxu0 %v3470
      %v3884 = vpop.f32.mrb[0].mxu0
      %v3885 = vadd.f32 %v3355, %v3884
      %v3886 = vpop.f32.mrb[0].mxu0
      %v3887 = vpop.f32.mrb[0].mxu0
      %v3888 = vadd.f32 %v3355, %v3887
      %v3889 = vpop.f32.mrb[0].mxu0
      %3890 = vmatprep.mubr.bf16.mxu0 0
      %3891 = vmatmul.mubr.bf16.gmra.mrb[0].mxu0 %v3473
      %v3892 = vpop.f32.mrb[0].mxu0
      %v3893 = vadd.f32 %v3355, %v3892
      %v3894 = vpop.f32.mrb[0].mxu0
      %v3895 = vpop.f32.mrb[0].mxu0
      %v3896 = vadd.f32 %v3355, %v3895
      %v3897 = vpop.f32.mrb[0].mxu0
      %3898 = vmatprep.mubr.bf16.mxu0 0
      %3899 = vmatmul.mubr.bf16.gmra.mrb[0].mxu0 %v3476
      %v3900 = vpop.f32.mrb[0].mxu0
      %v3901 = vadd.f32 %v3355, %v3900
      %v3902 = vpop.f32.mrb[0].mxu0
      %v3903 = vpop.f32.mrb[0].mxu0
      %v3904 = vadd.f32 %v3355, %v3903
      %v3905 = vpop.f32.mrb[0].mxu0
      %3906 = vmatprep.mubr.bf16.mxu0 0
      %3907 = vmatmul.mubr.bf16.gmra.mrb[0].mxu0 %v3479
      %v3908 = vpop.f32.mrb[0].mxu0
      %v3909 = vadd.f32 %v3355, %v3908
      %v3910 = vpop.f32.mrb[0].mxu0
      %v3911 = vpop.f32.mrb[0].mxu0
      %v3912 = vadd.f32 %v3355, %v3911
      %v3913 = vpop.f32.mrb[0].mxu0
      %3914 = vmatprep.mubr.bf16.mxu0 0
      %3915 = vmatmul.mubr.bf16.gmra.mrb[0].mxu0 %v3482
      %v3916 = vpop.f32.mrb[0].mxu0
      %v3917 = vadd.f32 %v3355, %v3916
      %v3918 = vpop.f32.mrb[0].mxu0
      %v3919 = vpop.f32.mrb[0].mxu0
      %v3920 = vadd.f32 %v3355, %v3919
      %v3921 = vpop.f32.mrb[0].mxu0
      %3922 = vmatprep.mubr.bf16.mxu0 0
      %3923 = vmatmul.mubr.bf16.gmra.mrb[0].mxu0 %v3485
      %v3924 = vpop.f32.mrb[0].mxu0
      %v3925 = vadd.f32 %v3355, %v3924
      %v3926 = vpop.f32.mrb[0].mxu0
      %v3927 = vpop.f32.mrb[0].mxu0
      %v3928 = vadd.f32 %v3355, %v3927
      %v3929 = vpop.f32.mrb[0].mxu0
      %3930 = vmatprep.mubr.bf16.mxu0 0
      %3931 = vmatmul.mubr.bf16.gmra.mrb[0].mxu0 %v3488
      %v3932 = vpop.f32.mrb[0].mxu0
      %v3933 = vadd.f32 %v3355, %v3932
      %v3934 = vpop.f32.mrb[0].mxu0
      %v3935 = vpop.f32.mrb[0].mxu0
      %v3936 = vadd.f32 %v3355, %v3935
      %v3937 = vpop.f32.mrb[0].mxu0
      %3938 = vmatprep.mubr.bf16.mxu0 0
      %3939 = vmatmul.mubr.bf16.gmra.mrb[0].mxu0 %v3491
      %v3940 = vpop.f32.mrb[0].mxu0
      %v3941 = vadd.f32 %v3355, %v3940
      %v3942 = vpop.f32.mrb[0].mxu0
      %v3943 = vpop.f32.mrb[0].mxu0
      %v3944 = vadd.f32 %v3355, %v3943
      %v3945 = vpop.f32.mrb[0].mxu0
      %3946 = vmatprep.mubr.bf16.mxu0 0
      %3947 = vmatmul.mubr.bf16.gmra.mrb[0].mxu0 %v3494
      %v3948 = vpop.f32.mrb[0].mxu0
      %v3949 = vadd.f32 %v3355, %v3948
      %v3950 = vpop.f32.mrb[0].mxu0
      %v3951 = vpop.f32.mrb[0].mxu0
      %v3952 = vadd.f32 %v3355, %v3951
      %v3953 = vpop.f32.mrb[0].mxu0
      %3954 = vmatprep.mubr.bf16.mxu0 0
      %3955 = vmatmul.mubr.bf16.gmra.mrb[0].mxu0 %v3497
      %v3956 = vpop.f32.mrb[0].mxu0
      %v3957 = vadd.f32 %v3355, %v3956
      %v3958 = vpop.f32.mrb[0].mxu0
      %v3959 = vpop.f32.mrb[0].mxu0
      %v3960 = vadd.f32 %v3355, %v3959
      %v3961 = vpop.f32.mrb[0].mxu0
      %3962 = vmatprep.mubr.bf16.mxu0 0
      %3963 = vmatmul.mubr.bf16.gmra.mrb[0].mxu0 %v3500
      %v3964 = vpop.f32.mrb[0].mxu0
      %v3965 = vadd.f32 %v3355, %v3964
      %v3966 = vpop.f32.mrb[0].mxu0
      %v3967 = vpop.f32.mrb[0].mxu0
      %v3968 = vadd.f32 %v3355, %v3967
      %v3969 = vpop.f32.mrb[0].mxu0
      %3970 = vmatprep.mubr.bf16.mxu0 0
      %3971 = vmatmul.mubr.bf16.gmra.mrb[0].mxu0 %v3503
      %v3972 = vpop.f32.mrb[0].mxu0
      %v3973 = vadd.f32 %v3355, %v3972
      %v3974 = vpop.f32.mrb[0].mxu0
      %v3975 = vpop.f32.mrb[0].mxu0
      %v3976 = vadd.f32 %v3355, %v3975
      %v3977 = vpop.f32.mrb[0].mxu0
      %3978 = vmatprep.mubr.bf16.mxu0 0
      %3979 = vmatmul.mubr.bf16.gmra.mrb[0].mxu0 %v3506
      %v3980 = vpop.f32.mrb[0].mxu0
      %v3981 = vadd.f32 %v3355, %v3980
      %v3982 = vpop.f32.mrb[0].mxu0
      %v3983 = vpop.f32.mrb[0].mxu0
      %v3984 = vadd.f32 %v3355, %v3983
      %v3985 = vpop.f32.mrb[0].mxu0
      %3986 = vmatprep.mubr.bf16.mxu0 0
      %3987 = vmatmul.mubr.bf16.gmra.mrb[0].mxu0 %v3509
      %v3988 = vpop.f32.mrb[0].mxu0
      %v3989 = vadd.f32 %v3355, %v3988
      %v3990 = vpop.f32.mrb[0].mxu0
      %v3991 = vpop.f32.mrb[0].mxu0
      %v3992 = vadd.f32 %v3355, %v3991
      %v3993 = vpop.f32.mrb[0].mxu0
      %3994 = vmatprep.mubr.bf16.mxu0 0
      %3995 = vmatmul.mubr.bf16.gmra.mrb[0].mxu0 %v3512
      %v3996 = vpop.f32.mrb[0].mxu0
      %v3997 = vadd.f32 %v3355, %v3996
      %v3998 = vpop.f32.mrb[0].mxu0
      %v3999 = vpop.f32.mrb[0].mxu0
      %v4000 = vadd.f32 %v3355, %v3999
      %v4001 = vpop.f32.mrb[0].mxu0
      %4002 = vmatprep.mubr.bf16.mxu0 0
      %4003 = vmatmul.mubr.bf16.gmra.mrb[0].mxu0 %v3515
      %v4004 = vpop.f32.mrb[0].mxu0
      %v4005 = vadd.f32 %v3355, %v4004
      %v4006 = vpop.f32.mrb[0].mxu0
      %v4007 = vpop.f32.mrb[0].mxu0
      %v4008 = vadd.f32 %v3355, %v4007
      %v4009 = vpop.f32.mrb[0].mxu0
      %4010 = vmatprep.mubr.bf16.mxu0 0
      %4011 = vmatmul.mubr.bf16.gmra.mrb[0].mxu0 %v3518
      %v4012 = vpop.f32.mrb[0].mxu0
      %v4013 = vadd.f32 %v3355, %v4012
      %v4014 = vpop.f32.mrb[0].mxu0
      %v4015 = vpop.f32.mrb[0].mxu0
      %v4016 = vadd.f32 %v3355, %v4015
      %v4017 = vpop.f32.mrb[0].mxu0
      %4018 = vmatprep.mubr.bf16.mxu0 0
      %4019 = vmatmul.mubr.bf16.gmra.mrb[0].mxu0 %v3521
      %v4020 = vpop.f32.mrb[0].mxu0
      %v4021 = vadd.f32 %v3355, %v4020
      %v4022 = vpop.f32.mrb[0].mxu0
      %v4023 = vpop.f32.mrb[0].mxu0
      %v4024 = vadd.f32 %v3355, %v4023
      %v4025 = vpop.f32.mrb[0].mxu0
      %4026 = vmatprep.mubr.bf16.mxu0 0
      %4027 = vmatmul.mubr.bf16.gmra.mrb[0].mxu0 %v3524
      %v4028 = vpop.f32.mrb[0].mxu0
      %v4029 = vadd.f32 %v3355, %v4028
      %v4030 = vpop.f32.mrb[0].mxu0
      %v4031 = vpop.f32.mrb[0].mxu0
      %v4032 = vadd.f32 %v3355, %v4031
      %v4033 = vpop.f32.mrb[0].mxu0
      %4034 = vmatprep.mubr.bf16.mxu0 0
      %4035 = vmatmul.mubr.bf16.gmra.mrb[0].mxu0 %v3527
      %v4036 = vpop.f32.mrb[0].mxu0
      %v4037 = vadd.f32 %v3355, %v4036
      %v4038 = vpop.f32.mrb[0].mxu0
      %v4039 = vpop.f32.mrb[0].mxu0
      %v4040 = vadd.f32 %v3355, %v4039
      %v4041 = vpop.f32.mrb[0].mxu0
      %4042 = vmatprep.mubr.bf16.mxu0 0
      %4043 = vmatmul.mubr.bf16.gmra.mrb[0].mxu0 %v3530
      %v4044 = vpop.f32.mrb[0].mxu0
      %v4045 = vadd.f32 %v3355, %v4044
      %v4046 = vpop.f32.mrb[0].mxu0
      %v4047 = vpop.f32.mrb[0].mxu0
      %v4048 = vadd.f32 %v3355, %v4047
      %v4049 = vpop.f32.mrb[0].mxu0
      %4050 = vmatprep.mubr.bf16.mxu0 0
      %4051 = vmatmul.mubr.bf16.gmra.mrb[0].mxu0 %v3533
      %v4052 = vpop.f32.mrb[0].mxu0
      %v4053 = vadd.f32 %v3355, %v4052
      %v4054 = vpop.f32.mrb[0].mxu0
      %v4055 = vpop.f32.mrb[0].mxu0
      %v4056 = vadd.f32 %v3355, %v4055
      %v4057 = vpop.f32.mrb[0].mxu0
      %4058 = vmatprep.mubr.bf16.mxu0 0
      %4059 = vmatmul.mubr.bf16.gmra.mrb[0].mxu0 %v3536
      %v4060 = vpop.f32.mrb[0].mxu0
      %v4061 = vadd.f32 %v3355, %v4060
      %v4062 = vpop.f32.mrb[0].mxu0
      %v4063 = vpop.f32.mrb[0].mxu0
      %v4064 = vadd.f32 %v3355, %v4063
      %v4065 = vpop.f32.mrb[0].mxu0
      %4066 = vmatprep.mubr.bf16.mxu0 0
      %4067 = vmatmul.mubr.bf16.gmra.mrb[0].mxu0 %v3539
      %v4068 = vpop.f32.mrb[0].mxu0
      %v4069 = vadd.f32 %v3355, %v4068
      %v4070 = vpop.f32.mrb[0].mxu0
      %v4071 = vpop.f32.mrb[0].mxu0
      %v4072 = vadd.f32 %v3355, %v4071
      %v4073 = vpop.f32.mrb[0].mxu0
      %4074 = vmatprep.mubr.bf16.mxu0 0
      %4075 = vmatmul.mubr.bf16.gmra.mrb[0].mxu0 %v3542
      %v4076 = vpop.f32.mrb[0].mxu0
      %v4077 = vadd.f32 %v3355, %v4076
      %v4078 = vpop.f32.mrb[0].mxu0
      %v4079 = vpop.f32.mrb[0].mxu0
      %v4080 = vadd.f32 %v3355, %v4079
      %v4081 = vpop.f32.mrb[0].mxu0
      %4082 = vmatprep.mubr.bf16.mxu0 0
      %4083 = vmatmul.mubr.bf16.gmra.mrb[0].mxu0 %v3545
      %v4084 = vpop.f32.mrb[0].mxu0
      %v4085 = vadd.f32 %v3355, %v4084
      %v4086 = vpop.f32.mrb[0].mxu0
      %v4087 = vpop.f32.mrb[0].mxu0
      %v4088 = vadd.f32 %v3355, %v4087
      %v4089 = vpop.f32.mrb[0].mxu0
      %4090 = vmatprep.mubr.bf16.mxu0 0
      %4091 = vmatmul.mubr.bf16.gmra.mrb[0].mxu0 %v3548
      %v4092 = vpop.f32.mrb[0].mxu0
      %v4093 = vadd.f32 %v3355, %v4092
      %v4094 = vpop.f32.mrb[0].mxu0
      %v4095 = vpop.f32.mrb[0].mxu0
      %v4096 = vadd.f32 %v3355, %v4095
      %v4097 = vpop.f32.mrb[0].mxu0
      %4098 = vdwg.mxu0
      %v4099 = vmax.f32 %v3589, 0.0
      %v4100 = vmax.f32 %v3592, 0.0
      %v4101 = vmax.f32 %v3597, 0.0
      %v4102 = vmax.f32 %v3600, 0.0
      %v4103 = vmax.f32 %v3605, 0.0
      %v4104 = vmax.f32 %v3608, 0.0
      %v4105 = vmax.f32 %v3613, 0.0
      %v4106 = vmax.f32 %v3616, 0.0
      %v4107 = vmax.f32 %v3621, 0.0
      %v4108 = vmax.f32 %v3624, 0.0
      %v4109 = vmax.f32 %v3629, 0.0
      %v4110 = vmax.f32 %v3632, 0.0
      %v4111 = vmax.f32 %v3637, 0.0
      %v4112 = vmax.f32 %v3640, 0.0
      %v4113 = vmax.f32 %v3645, 0.0
      %v4114 = vmax.f32 %v3648, 0.0
      %v4115 = vmax.f32 %v3653, 0.0
      %v4116 = vmax.f32 %v3656, 0.0
      %v4117 = vmax.f32 %v3661, 0.0
      %v4118 = vmax.f32 %v3664, 0.0
      %v4119 = vmax.f32 %v3669, 0.0
      %v4120 = vmax.f32 %v3672, 0.0
      %v4121 = vmax.f32 %v3677, 0.0
      %v4122 = vmax.f32 %v3680, 0.0
      %v4123 = vmax.f32 %v3685, 0.0
      %v4124 = vmax.f32 %v3688, 0.0
      %v4125 = vmax.f32 %v3693, 0.0
      %v4126 = vmax.f32 %v3696, 0.0
      %v4127 = vmax.f32 %v3701, 0.0
      %v4128 = vmax.f32 %v3704, 0.0
      %v4129 = vmax.f32 %v3709, 0.0
      %v4130 = vmax.f32 %v3712, 0.0
      %v4131 = vmax.f32 %v3717, 0.0
      %v4132 = vmax.f32 %v3720, 0.0
      %v4133 = vmax.f32 %v3725, 0.0
      %v4134 = vmax.f32 %v3728, 0.0
      %v4135 = vmax.f32 %v3733, 0.0
      %v4136 = vmax.f32 %v3736, 0.0
      %v4137 = vmax.f32 %v3741, 0.0
      %v4138 = vmax.f32 %v3744, 0.0
      %v4139 = vmax.f32 %v3749, 0.0
      %v4140 = vmax.f32 %v3752, 0.0
      %v4141 = vmax.f32 %v3757, 0.0
      %v4142 = vmax.f32 %v3760, 0.0
      %v4143 = vmax.f32 %v3765, 0.0
      %v4144 = vmax.f32 %v3768, 0.0
      %v4145 = vmax.f32 %v3773, 0.0
      %v4146 = vmax.f32 %v3776, 0.0
      %v4147 = vmax.f32 %v3781, 0.0
      %v4148 = vmax.f32 %v3784, 0.0
      %v4149 = vmax.f32 %v3789, 0.0
      %v4150 = vmax.f32 %v3792, 0.0
      %v4151 = vmax.f32 %v3797, 0.0
      %v4152 = vmax.f32 %v3800, 0.0
      %v4153 = vmax.f32 %v3805, 0.0
      %v4154 = vmax.f32 %v3808, 0.0
      %v4155 = vmax.f32 %v3813, 0.0
      %v4156 = vmax.f32 %v3816, 0.0
      %v4157 = vmax.f32 %v3821, 0.0
      %v4158 = vmax.f32 %v3824, 0.0
      %v4159 = vmax.f32 %v3829, 0.0
      %v4160 = vmax.f32 %v3832, 0.0
      %v4161 = vmax.f32 %v3837, 0.0
      %v4162 = vmax.f32 %v3840, 0.0
      %v4163 = vmax.f32 %v3845, 0.0
      %v4164 = vmax.f32 %v3848, 0.0
      %v4165 = vmax.f32 %v3853, 0.0
      %v4166 = vmax.f32 %v3856, 0.0
      %v4167 = vmax.f32 %v3861, 0.0
      %v4168 = vmax.f32 %v3864, 0.0
      %v4169 = vmax.f32 %v3869, 0.0
      %v4170 = vmax.f32 %v3872, 0.0
      %v4171 = vmax.f32 %v3877, 0.0
      %v4172 = vmax.f32 %v3880, 0.0
      %v4173 = vmax.f32 %v3885, 0.0
      %v4174 = vmax.f32 %v3888, 0.0
      %v4175 = vmax.f32 %v3893, 0.0
      %v4176 = vmax.f32 %v3896, 0.0
      %v4177 = vmax.f32 %v3901, 0.0
      %v4178 = vmax.f32 %v3904, 0.0
      %v4179 = vmax.f32 %v3909, 0.0
      %v4180 = vmax.f32 %v3912, 0.0
      %v4181 = vmax.f32 %v3917, 0.0
      %v4182 = vmax.f32 %v3920, 0.0
      %v4183 = vmax.f32 %v3925, 0.0
      %v4184 = vmax.f32 %v3928, 0.0
      %v4185 = vmax.f32 %v3933, 0.0
      %v4186 = vmax.f32 %v3936, 0.0
      %v4187 = vmax.f32 %v3941, 0.0
      %v4188 = vmax.f32 %v3944, 0.0
      %v4189 = vmax.f32 %v3949, 0.0
      %v4190 = vmax.f32 %v3952, 0.0
      %v4191 = vmax.f32 %v3957, 0.0
      %v4192 = vmax.f32 %v3960, 0.0
      %v4193 = vmax.f32 %v3965, 0.0
      %v4194 = vmax.f32 %v3968, 0.0
      %v4195 = vmax.f32 %v3973, 0.0
      %v4196 = vmax.f32 %v3976, 0.0
      %v4197 = vmax.f32 %v3981, 0.0
      %v4198 = vmax.f32 %v3984, 0.0
      %v4199 = vmax.f32 %v3989, 0.0
      %v4200 = vmax.f32 %v3992, 0.0
      %v4201 = vmax.f32 %v3997, 0.0
      %v4202 = vmax.f32 %v4000, 0.0
      %v4203 = vmax.f32 %v4005, 0.0
      %v4204 = vmax.f32 %v4008, 0.0
      %v4205 = vmax.f32 %v4013, 0.0
      %v4206 = vmax.f32 %v4016, 0.0
      %v4207 = vmax.f32 %v4021, 0.0
      %v4208 = vmax.f32 %v4024, 0.0
      %v4209 = vmax.f32 %v4029, 0.0
      %v4210 = vmax.f32 %v4032, 0.0
      %v4211 = vmax.f32 %v4037, 0.0
      %v4212 = vmax.f32 %v4040, 0.0
      %v4213 = vmax.f32 %v4045, 0.0
      %v4214 = vmax.f32 %v4048, 0.0
      %v4215 = vmax.f32 %v4053, 0.0
      %v4216 = vmax.f32 %v4056, 0.0
      %v4217 = vmax.f32 %v4061, 0.0
      %v4218 = vmax.f32 %v4064, 0.0
      %v4219 = vmax.f32 %v4069, 0.0
      %v4220 = vmax.f32 %v4072, 0.0
      %v4221 = vmax.f32 %v4077, 0.0
      %v4222 = vmax.f32 %v4080, 0.0
      %v4223 = vmax.f32 %v4085, 0.0
      %v4224 = vmax.f32 %v4088, 0.0
      %v4225 = vmax.f32 %v4093, 0.0
      %v4226 = vmax.f32 %v4096, 0.0
      %v4227 = vpack.c.bf16 %v4100, %v4099
      %v4228 = vpack.c.bf16 %v4102, %v4101
      %v4229 = vpack.c.bf16 %v4104, %v4103
      %v4230 = vpack.c.bf16 %v4106, %v4105
      %v4231 = vpack.c.bf16 %v4108, %v4107
      %v4232 = vpack.c.bf16 %v4110, %v4109
      %v4233 = vpack.c.bf16 %v4112, %v4111
      %v4234 = vpack.c.bf16 %v4114, %v4113
      %v4235 = vpack.c.bf16 %v4116, %v4115
      %v4236 = vpack.c.bf16 %v4118, %v4117
      %v4237 = vpack.c.bf16 %v4120, %v4119
      %v4238 = vpack.c.bf16 %v4122, %v4121
      %v4239 = vpack.c.bf16 %v4124, %v4123
      %v4240 = vpack.c.bf16 %v4126, %v4125
      %v4241 = vpack.c.bf16 %v4128, %v4127
      %v4242 = vpack.c.bf16 %v4130, %v4129
      %v4243 = vpack.c.bf16 %v4132, %v4131
      %v4244 = vpack.c.bf16 %v4134, %v4133
      %v4245 = vpack.c.bf16 %v4136, %v4135
      %v4246 = vpack.c.bf16 %v4138, %v4137
      %v4247 = vpack.c.bf16 %v4140, %v4139
      %v4248 = vpack.c.bf16 %v4142, %v4141
      %v4249 = vpack.c.bf16 %v4144, %v4143
      %v4250 = vpack.c.bf16 %v4146, %v4145
      %v4251 = vpack.c.bf16 %v4148, %v4147
      %v4252 = vpack.c.bf16 %v4150, %v4149
      %v4253 = vpack.c.bf16 %v4152, %v4151
      %v4254 = vpack.c.bf16 %v4154, %v4153
      %v4255 = vpack.c.bf16 %v4156, %v4155
      %v4256 = vpack.c.bf16 %v4158, %v4157
      %v4257 = vpack.c.bf16 %v4160, %v4159
      %v4258 = vpack.c.bf16 %v4162, %v4161
      %v4259 = vpack.c.bf16 %v4164, %v4163
      %v4260 = vpack.c.bf16 %v4166, %v4165
      %v4261 = vpack.c.bf16 %v4168, %v4167
      %v4262 = vpack.c.bf16 %v4170, %v4169
      %v4263 = vpack.c.bf16 %v4172, %v4171
      %v4264 = vpack.c.bf16 %v4174, %v4173
      %v4265 = vpack.c.bf16 %v4176, %v4175
      %v4266 = vpack.c.bf16 %v4178, %v4177
      %v4267 = vpack.c.bf16 %v4180, %v4179
      %v4268 = vpack.c.bf16 %v4182, %v4181
      %v4269 = vpack.c.bf16 %v4184, %v4183
      %v4270 = vpack.c.bf16 %v4186, %v4185
      %v4271 = vpack.c.bf16 %v4188, %v4187
      %v4272 = vpack.c.bf16 %v4190, %v4189
      %v4273 = vpack.c.bf16 %v4192, %v4191
      %v4274 = vpack.c.bf16 %v4194, %v4193
      %v4275 = vpack.c.bf16 %v4196, %v4195
      %v4276 = vpack.c.bf16 %v4198, %v4197
      %v4277 = vpack.c.bf16 %v4200, %v4199
      %v4278 = vpack.c.bf16 %v4202, %v4201
      %v4279 = vpack.c.bf16 %v4204, %v4203
      %v4280 = vpack.c.bf16 %v4206, %v4205
      %v4281 = vpack.c.bf16 %v4208, %v4207
      %v4282 = vpack.c.bf16 %v4210, %v4209
      %v4283 = vpack.c.bf16 %v4212, %v4211
      %v4284 = vpack.c.bf16 %v4214, %v4213
      %v4285 = vpack.c.bf16 %v4216, %v4215
      %v4286 = vpack.c.bf16 %v4218, %v4217
      %v4287 = vpack.c.bf16 %v4220, %v4219
      %v4288 = vpack.c.bf16 %v4222, %v4221
      %v4289 = vpack.c.bf16 %v4224, %v4223
      %v4290 = vpack.c.bf16 %v4226, %v4225
      %v4291 = vld [vmem:[%s7] sm:$0xf]
      %v4292 = vld [vmem:[#allocation2] sm:$0x1]
      %v4294 = vlaneseq
      %v4295 = vshrl.u32 %v4294, 7
      %v4296 = vsub.s32 0, %v4295
      %v4297 = vrot.slane %v4292, %v4296
      %v4300 = vsel %vm3357, %v4227, 0
      %v4303 = vsel %vm3357, %v4228, 0
      %v4306 = vsel %vm3357, %v4229, 0
      %v4309 = vsel %vm3357, %v4230, 0
      %v4312 = vsel %vm3357, %v4231, 0
      %v4315 = vsel %vm3357, %v4232, 0
      %v4318 = vsel %vm3357, %v4233, 0
      %v4321 = vsel %vm3357, %v4234, 0
      %v4324 = vsel %vm3357, %v4235, 0
      %v4327 = vsel %vm3357, %v4236, 0
      %v4330 = vsel %vm3357, %v4237, 0
      %v4333 = vsel %vm3357, %v4238, 0
      %v4336 = vsel %vm3357, %v4239, 0
      %v4339 = vsel %vm3357, %v4240, 0
      %v4342 = vsel %vm3357, %v4241, 0
      %v4345 = vsel %vm3357, %v4242, 0
      %v4348 = vsel %vm3357, %v4243, 0
      %v4351 = vsel %vm3357, %v4244, 0
      %v4354 = vsel %vm3357, %v4245, 0
      %v4357 = vsel %vm3357, %v4246, 0
      %v4360 = vsel %vm3357, %v4247, 0
      %v4363 = vsel %vm3357, %v4248, 0
      %v4366 = vsel %vm3357, %v4249, 0
      %v4369 = vsel %vm3357, %v4250, 0
      %v4372 = vsel %vm3357, %v4251, 0
      %v4375 = vsel %vm3357, %v4252, 0
      %v4378 = vsel %vm3357, %v4253, 0
      %v4381 = vsel %vm3357, %v4254, 0
      %v4384 = vsel %vm3357, %v4255, 0
      %v4387 = vsel %vm3357, %v4256, 0
      %v4390 = vsel %vm3357, %v4257, 0
      %v4393 = vsel %vm3357, %v4258, 0
      %v4396 = vsel %vm3357, %v4259, 0
      %v4399 = vsel %vm3357, %v4260, 0
      %v4402 = vsel %vm3357, %v4261, 0
      %v4405 = vsel %vm3357, %v4262, 0
      %v4408 = vsel %vm3357, %v4263, 0
      %v4411 = vsel %vm3357, %v4264, 0
      %v4414 = vsel %vm3357, %v4265, 0
      %v4417 = vsel %vm3357, %v4266, 0
      %v4420 = vsel %vm3357, %v4267, 0
      %v4423 = vsel %vm3357, %v4268, 0
      %v4426 = vsel %vm3357, %v4269, 0
      %v4429 = vsel %vm3357, %v4270, 0
      %v4432 = vsel %vm3357, %v4271, 0
      %v4435 = vsel %vm3357, %v4272, 0
      %v4438 = vsel %vm3357, %v4273, 0
      %v4441 = vsel %vm3357, %v4274, 0
      %v4444 = vsel %vm3357, %v4275, 0
      %v4447 = vsel %vm3357, %v4276, 0
      %v4450 = vsel %vm3357, %v4277, 0
      %v4453 = vsel %vm3357, %v4278, 0
      %v4456 = vsel %vm3357, %v4279, 0
      %v4459 = vsel %vm3357, %v4280, 0
      %v4462 = vsel %vm3357, %v4281, 0
      %v4465 = vsel %vm3357, %v4282, 0
      %v4468 = vsel %vm3357, %v4283, 0
      %v4471 = vsel %vm3357, %v4284, 0
      %v4474 = vsel %vm3357, %v4285, 0
      %v4477 = vsel %vm3357, %v4286, 0
      %v4480 = vsel %vm3357, %v4287, 0
      %v4483 = vsel %vm3357, %v4288, 0
      %v4486 = vsel %vm3357, %v4289, 0
      %v4489 = vsel %vm3357, %v4290, 0
      %v4492 = vsel %vm3550, %v4291, 0
      %4494 = vmatprep.subr.bf16.mxu0 0
      %4495 = vmatpush1.bf16.msra.mxu0 %v4492
      %4496 = vmatprep.subr.bf16.mxu0 0
      %4497 = vmatpush1.bf16.msra.mxu0 0
      %4498 = vmatprep.subr.bf16.mxu0 0
      %4499 = vmatpush1.bf16.msra.mxu0 0
      %4500 = vmatprep.subr.bf16.mxu0 0
      %4501 = vmatpush1.bf16.msra.mxu0 0
      %4502 = vmatprep.subr.bf16.mxu0 0
      %4503 = vmatpush1.bf16.msra.mxu0 0
      %4504 = vmatprep.subr.bf16.mxu0 0
      %4505 = vmatpush1.bf16.msra.mxu0 0
      %4506 = vmatprep.subr.bf16.mxu0 0
      %4507 = vmatpush1.bf16.msra.mxu0 0
      %4508 = vmatprep.subr.bf16.mxu0 0
      %4509 = vmatpush1.bf16.msra.mxu0 0
      %4510 = vmatprep.subr.bf16.mxu0 0
      %4511 = vmatpush1.bf16.msra.mxu0 0
      %4512 = vmatprep.subr.bf16.mxu0 0
      %4513 = vmatpush1.bf16.msra.mxu0 0
      %4514 = vmatprep.subr.bf16.mxu0 0
      %4515 = vmatpush1.bf16.msra.mxu0 0
      %4516 = vmatprep.subr.bf16.mxu0 0
      %4517 = vmatpush1.bf16.msra.mxu0 0
      %4518 = vmatprep.subr.bf16.mxu0 0
      %4519 = vmatpush1.bf16.msra.mxu0 0
      %4520 = vmatprep.subr.bf16.mxu0 0
      %4521 = vmatpush1.bf16.msra.mxu0 0
      %4522 = vmatprep.subr.bf16.mxu0 0
      %4523 = vmatpush1.bf16.msra.mxu0 0
      %4524 = vmatprep.subr.bf16.mxu0 0
      %4525 = vmatpush1.bf16.msra.mxu0 0
      %4526 = vmatprep.mubr.bf16.mxu0 0
      %4527 = vmatmul.mubr.bf16.gmra.mrb[0].mxu0 %v4300
      %v4528 = vpop.f32.mrb[0].mxu0
      %v4529 = vadd.f32 %v4297, %v4528
      %v4530 = vpop.f32.mrb[0].mxu0
      %v4531 = vpop.f32.mrb[0].mxu0
      %v4532 = vadd.f32 %v4297, %v4531
      %v4533 = vpop.f32.mrb[0].mxu0
      %4534 = vmatprep.mubr.bf16.mxu0 0
      %4535 = vmatmul.mubr.bf16.gmra.mrb[0].mxu0 %v4303
      %v4536 = vpop.f32.mrb[0].mxu0
      %v4537 = vadd.f32 %v4297, %v4536
      %v4538 = vpop.f32.mrb[0].mxu0
      %v4539 = vpop.f32.mrb[0].mxu0
      %v4540 = vadd.f32 %v4297, %v4539
      %v4541 = vpop.f32.mrb[0].mxu0
      %4542 = vmatprep.mubr.bf16.mxu0 0
      %4543 = vmatmul.mubr.bf16.gmra.mrb[0].mxu0 %v4306
      %v4544 = vpop.f32.mrb[0].mxu0
      %v4545 = vadd.f32 %v4297, %v4544
      %v4546 = vpop.f32.mrb[0].mxu0
      %v4547 = vpop.f32.mrb[0].mxu0
      %v4548 = vadd.f32 %v4297, %v4547
      %v4549 = vpop.f32.mrb[0].mxu0
      %4550 = vmatprep.mubr.bf16.mxu0 0
      %4551 = vmatmul.mubr.bf16.gmra.mrb[0].mxu0 %v4309
      %v4552 = vpop.f32.mrb[0].mxu0
      %v4553 = vadd.f32 %v4297, %v4552
      %v4554 = vpop.f32.mrb[0].mxu0
      %v4555 = vpop.f32.mrb[0].mxu0
      %v4556 = vadd.f32 %v4297, %v4555
      %v4557 = vpop.f32.mrb[0].mxu0
      %4558 = vmatprep.mubr.bf16.mxu0 0
      %4559 = vmatmul.mubr.bf16.gmra.mrb[0].mxu0 %v4312
      %v4560 = vpop.f32.mrb[0].mxu0
      %v4561 = vadd.f32 %v4297, %v4560
      %v4562 = vpop.f32.mrb[0].mxu0
      %v4563 = vpop.f32.mrb[0].mxu0
      %v4564 = vadd.f32 %v4297, %v4563
      %v4565 = vpop.f32.mrb[0].mxu0
      %4566 = vmatprep.mubr.bf16.mxu0 0
      %4567 = vmatmul.mubr.bf16.gmra.mrb[0].mxu0 %v4315
      %v4568 = vpop.f32.mrb[0].mxu0
      %v4569 = vadd.f32 %v4297, %v4568
      %v4570 = vpop.f32.mrb[0].mxu0
      %v4571 = vpop.f32.mrb[0].mxu0
      %v4572 = vadd.f32 %v4297, %v4571
      %v4573 = vpop.f32.mrb[0].mxu0
      %4574 = vmatprep.mubr.bf16.mxu0 0
      %4575 = vmatmul.mubr.bf16.gmra.mrb[0].mxu0 %v4318
      %v4576 = vpop.f32.mrb[0].mxu0
      %v4577 = vadd.f32 %v4297, %v4576
      %v4578 = vpop.f32.mrb[0].mxu0
      %v4579 = vpop.f32.mrb[0].mxu0
      %v4580 = vadd.f32 %v4297, %v4579
      %v4581 = vpop.f32.mrb[0].mxu0
      %4582 = vmatprep.mubr.bf16.mxu0 0
      %4583 = vmatmul.mubr.bf16.gmra.mrb[0].mxu0 %v4321
      %v4584 = vpop.f32.mrb[0].mxu0
      %v4585 = vadd.f32 %v4297, %v4584
      %v4586 = vpop.f32.mrb[0].mxu0
      %v4587 = vpop.f32.mrb[0].mxu0
      %v4588 = vadd.f32 %v4297, %v4587
      %v4589 = vpop.f32.mrb[0].mxu0
      %4590 = vmatprep.mubr.bf16.mxu0 0
      %4591 = vmatmul.mubr.bf16.gmra.mrb[0].mxu0 %v4324
      %v4592 = vpop.f32.mrb[0].mxu0
      %v4593 = vadd.f32 %v4297, %v4592
      %v4594 = vpop.f32.mrb[0].mxu0
      %v4595 = vpop.f32.mrb[0].mxu0
      %v4596 = vadd.f32 %v4297, %v4595
      %v4597 = vpop.f32.mrb[0].mxu0
      %4598 = vmatprep.mubr.bf16.mxu0 0
      %4599 = vmatmul.mubr.bf16.gmra.mrb[0].mxu0 %v4327
      %v4600 = vpop.f32.mrb[0].mxu0
      %v4601 = vadd.f32 %v4297, %v4600
      %v4602 = vpop.f32.mrb[0].mxu0
      %v4603 = vpop.f32.mrb[0].mxu0
      %v4604 = vadd.f32 %v4297, %v4603
      %v4605 = vpop.f32.mrb[0].mxu0
      %4606 = vmatprep.mubr.bf16.mxu0 0
      %4607 = vmatmul.mubr.bf16.gmra.mrb[0].mxu0 %v4330
      %v4608 = vpop.f32.mrb[0].mxu0
      %v4609 = vadd.f32 %v4297, %v4608
      %v4610 = vpop.f32.mrb[0].mxu0
      %v4611 = vpop.f32.mrb[0].mxu0
      %v4612 = vadd.f32 %v4297, %v4611
      %v4613 = vpop.f32.mrb[0].mxu0
      %4614 = vmatprep.mubr.bf16.mxu0 0
      %4615 = vmatmul.mubr.bf16.gmra.mrb[0].mxu0 %v4333
      %v4616 = vpop.f32.mrb[0].mxu0
      %v4617 = vadd.f32 %v4297, %v4616
      %v4618 = vpop.f32.mrb[0].mxu0
      %v4619 = vpop.f32.mrb[0].mxu0
      %v4620 = vadd.f32 %v4297, %v4619
      %v4621 = vpop.f32.mrb[0].mxu0
      %4622 = vmatprep.mubr.bf16.mxu0 0
      %4623 = vmatmul.mubr.bf16.gmra.mrb[0].mxu0 %v4336
      %v4624 = vpop.f32.mrb[0].mxu0
      %v4625 = vadd.f32 %v4297, %v4624
      %v4626 = vpop.f32.mrb[0].mxu0
      %v4627 = vpop.f32.mrb[0].mxu0
      %v4628 = vadd.f32 %v4297, %v4627
      %v4629 = vpop.f32.mrb[0].mxu0
      %4630 = vmatprep.mubr.bf16.mxu0 0
      %4631 = vmatmul.mubr.bf16.gmra.mrb[0].mxu0 %v4339
      %v4632 = vpop.f32.mrb[0].mxu0
      %v4633 = vadd.f32 %v4297, %v4632
      %v4634 = vpop.f32.mrb[0].mxu0
      %v4635 = vpop.f32.mrb[0].mxu0
      %v4636 = vadd.f32 %v4297, %v4635
      %v4637 = vpop.f32.mrb[0].mxu0
      %4638 = vmatprep.mubr.bf16.mxu0 0
      %4639 = vmatmul.mubr.bf16.gmra.mrb[0].mxu0 %v4342
      %v4640 = vpop.f32.mrb[0].mxu0
      %v4641 = vadd.f32 %v4297, %v4640
      %v4642 = vpop.f32.mrb[0].mxu0
      %v4643 = vpop.f32.mrb[0].mxu0
      %v4644 = vadd.f32 %v4297, %v4643
      %v4645 = vpop.f32.mrb[0].mxu0
      %4646 = vmatprep.mubr.bf16.mxu0 0
      %4647 = vmatmul.mubr.bf16.gmra.mrb[0].mxu0 %v4345
      %v4648 = vpop.f32.mrb[0].mxu0
      %v4649 = vadd.f32 %v4297, %v4648
      %v4650 = vpop.f32.mrb[0].mxu0
      %v4651 = vpop.f32.mrb[0].mxu0
      %v4652 = vadd.f32 %v4297, %v4651
      %v4653 = vpop.f32.mrb[0].mxu0
      %4654 = vmatprep.mubr.bf16.mxu0 0
      %4655 = vmatmul.mubr.bf16.gmra.mrb[0].mxu0 %v4348
      %v4656 = vpop.f32.mrb[0].mxu0
      %v4657 = vadd.f32 %v4297, %v4656
      %v4658 = vpop.f32.mrb[0].mxu0
      %v4659 = vpop.f32.mrb[0].mxu0
      %v4660 = vadd.f32 %v4297, %v4659
      %v4661 = vpop.f32.mrb[0].mxu0
      %4662 = vmatprep.mubr.bf16.mxu0 0
      %4663 = vmatmul.mubr.bf16.gmra.mrb[0].mxu0 %v4351
      %v4664 = vpop.f32.mrb[0].mxu0
      %v4665 = vadd.f32 %v4297, %v4664
      %v4666 = vpop.f32.mrb[0].mxu0
      %v4667 = vpop.f32.mrb[0].mxu0
      %v4668 = vadd.f32 %v4297, %v4667
      %v4669 = vpop.f32.mrb[0].mxu0
      %4670 = vmatprep.mubr.bf16.mxu0 0
      %4671 = vmatmul.mubr.bf16.gmra.mrb[0].mxu0 %v4354
      %v4672 = vpop.f32.mrb[0].mxu0
      %v4673 = vadd.f32 %v4297, %v4672
      %v4674 = vpop.f32.mrb[0].mxu0
      %v4675 = vpop.f32.mrb[0].mxu0
      %v4676 = vadd.f32 %v4297, %v4675
      %v4677 = vpop.f32.mrb[0].mxu0
      %4678 = vmatprep.mubr.bf16.mxu0 0
      %4679 = vmatmul.mubr.bf16.gmra.mrb[0].mxu0 %v4357
      %v4680 = vpop.f32.mrb[0].mxu0
      %v4681 = vadd.f32 %v4297, %v4680
      %v4682 = vpop.f32.mrb[0].mxu0
      %v4683 = vpop.f32.mrb[0].mxu0
      %v4684 = vadd.f32 %v4297, %v4683
      %v4685 = vpop.f32.mrb[0].mxu0
      %4686 = vmatprep.mubr.bf16.mxu0 0
      %4687 = vmatmul.mubr.bf16.gmra.mrb[0].mxu0 %v4360
      %v4688 = vpop.f32.mrb[0].mxu0
      %v4689 = vadd.f32 %v4297, %v4688
      %v4690 = vpop.f32.mrb[0].mxu0
      %v4691 = vpop.f32.mrb[0].mxu0
      %v4692 = vadd.f32 %v4297, %v4691
      %v4693 = vpop.f32.mrb[0].mxu0
      %4694 = vmatprep.mubr.bf16.mxu0 0
      %4695 = vmatmul.mubr.bf16.gmra.mrb[0].mxu0 %v4363
      %v4696 = vpop.f32.mrb[0].mxu0
      %v4697 = vadd.f32 %v4297, %v4696
      %v4698 = vpop.f32.mrb[0].mxu0
      %v4699 = vpop.f32.mrb[0].mxu0
      %v4700 = vadd.f32 %v4297, %v4699
      %v4701 = vpop.f32.mrb[0].mxu0
      %4702 = vmatprep.mubr.bf16.mxu0 0
      %4703 = vmatmul.mubr.bf16.gmra.mrb[0].mxu0 %v4366
      %v4704 = vpop.f32.mrb[0].mxu0
      %v4705 = vadd.f32 %v4297, %v4704
      %v4706 = vpop.f32.mrb[0].mxu0
      %v4707 = vpop.f32.mrb[0].mxu0
      %v4708 = vadd.f32 %v4297, %v4707
      %v4709 = vpop.f32.mrb[0].mxu0
      %4710 = vmatprep.mubr.bf16.mxu0 0
      %4711 = vmatmul.mubr.bf16.gmra.mrb[0].mxu0 %v4369
      %v4712 = vpop.f32.mrb[0].mxu0
      %v4713 = vadd.f32 %v4297, %v4712
      %v4714 = vpop.f32.mrb[0].mxu0
      %v4715 = vpop.f32.mrb[0].mxu0
      %v4716 = vadd.f32 %v4297, %v4715
      %v4717 = vpop.f32.mrb[0].mxu0
      %4718 = vmatprep.mubr.bf16.mxu0 0
      %4719 = vmatmul.mubr.bf16.gmra.mrb[0].mxu0 %v4372
      %v4720 = vpop.f32.mrb[0].mxu0
      %v4721 = vadd.f32 %v4297, %v4720
      %v4722 = vpop.f32.mrb[0].mxu0
      %v4723 = vpop.f32.mrb[0].mxu0
      %v4724 = vadd.f32 %v4297, %v4723
      %v4725 = vpop.f32.mrb[0].mxu0
      %4726 = vmatprep.mubr.bf16.mxu0 0
      %4727 = vmatmul.mubr.bf16.gmra.mrb[0].mxu0 %v4375
      %v4728 = vpop.f32.mrb[0].mxu0
      %v4729 = vadd.f32 %v4297, %v4728
      %v4730 = vpop.f32.mrb[0].mxu0
      %v4731 = vpop.f32.mrb[0].mxu0
      %v4732 = vadd.f32 %v4297, %v4731
      %v4733 = vpop.f32.mrb[0].mxu0
      %4734 = vmatprep.mubr.bf16.mxu0 0
      %4735 = vmatmul.mubr.bf16.gmra.mrb[0].mxu0 %v4378
      %v4736 = vpop.f32.mrb[0].mxu0
      %v4737 = vadd.f32 %v4297, %v4736
      %v4738 = vpop.f32.mrb[0].mxu0
      %v4739 = vpop.f32.mrb[0].mxu0
      %v4740 = vadd.f32 %v4297, %v4739
      %v4741 = vpop.f32.mrb[0].mxu0
      %4742 = vmatprep.mubr.bf16.mxu0 0
      %4743 = vmatmul.mubr.bf16.gmra.mrb[0].mxu0 %v4381
      %v4744 = vpop.f32.mrb[0].mxu0
      %v4745 = vadd.f32 %v4297, %v4744
      %v4746 = vpop.f32.mrb[0].mxu0
      %v4747 = vpop.f32.mrb[0].mxu0
      %v4748 = vadd.f32 %v4297, %v4747
      %v4749 = vpop.f32.mrb[0].mxu0
      %4750 = vmatprep.mubr.bf16.mxu0 0
      %4751 = vmatmul.mubr.bf16.gmra.mrb[0].mxu0 %v4384
      %v4752 = vpop.f32.mrb[0].mxu0
      %v4753 = vadd.f32 %v4297, %v4752
      %v4754 = vpop.f32.mrb[0].mxu0
      %v4755 = vpop.f32.mrb[0].mxu0
      %v4756 = vadd.f32 %v4297, %v4755
      %v4757 = vpop.f32.mrb[0].mxu0
      %4758 = vmatprep.mubr.bf16.mxu0 0
      %4759 = vmatmul.mubr.bf16.gmra.mrb[0].mxu0 %v4387
      %v4760 = vpop.f32.mrb[0].mxu0
      %v4761 = vadd.f32 %v4297, %v4760
      %v4762 = vpop.f32.mrb[0].mxu0
      %v4763 = vpop.f32.mrb[0].mxu0
      %v4764 = vadd.f32 %v4297, %v4763
      %v4765 = vpop.f32.mrb[0].mxu0
      %4766 = vmatprep.mubr.bf16.mxu0 0
      %4767 = vmatmul.mubr.bf16.gmra.mrb[0].mxu0 %v4390
      %v4768 = vpop.f32.mrb[0].mxu0
      %v4769 = vadd.f32 %v4297, %v4768
      %v4770 = vpop.f32.mrb[0].mxu0
      %v4771 = vpop.f32.mrb[0].mxu0
      %v4772 = vadd.f32 %v4297, %v4771
      %v4773 = vpop.f32.mrb[0].mxu0
      %4774 = vmatprep.mubr.bf16.mxu0 0
      %4775 = vmatmul.mubr.bf16.gmra.mrb[0].mxu0 %v4393
      %v4776 = vpop.f32.mrb[0].mxu0
      %v4777 = vadd.f32 %v4297, %v4776
      %v4778 = vpop.f32.mrb[0].mxu0
      %v4779 = vpop.f32.mrb[0].mxu0
      %v4780 = vadd.f32 %v4297, %v4779
      %v4781 = vpop.f32.mrb[0].mxu0
      %4782 = vmatprep.mubr.bf16.mxu0 0
      %4783 = vmatmul.mubr.bf16.gmra.mrb[0].mxu0 %v4396
      %v4784 = vpop.f32.mrb[0].mxu0
      %v4785 = vadd.f32 %v4297, %v4784
      %v4786 = vpop.f32.mrb[0].mxu0
      %v4787 = vpop.f32.mrb[0].mxu0
      %v4788 = vadd.f32 %v4297, %v4787
      %v4789 = vpop.f32.mrb[0].mxu0
      %4790 = vmatprep.mubr.bf16.mxu0 0
      %4791 = vmatmul.mubr.bf16.gmra.mrb[0].mxu0 %v4399
      %v4792 = vpop.f32.mrb[0].mxu0
      %v4793 = vadd.f32 %v4297, %v4792
      %v4794 = vpop.f32.mrb[0].mxu0
      %v4795 = vpop.f32.mrb[0].mxu0
      %v4796 = vadd.f32 %v4297, %v4795
      %v4797 = vpop.f32.mrb[0].mxu0
      %4798 = vmatprep.mubr.bf16.mxu0 0
      %4799 = vmatmul.mubr.bf16.gmra.mrb[0].mxu0 %v4402
      %v4800 = vpop.f32.mrb[0].mxu0
      %v4801 = vadd.f32 %v4297, %v4800
      %v4802 = vpop.f32.mrb[0].mxu0
      %v4803 = vpop.f32.mrb[0].mxu0
      %v4804 = vadd.f32 %v4297, %v4803
      %v4805 = vpop.f32.mrb[0].mxu0
      %4806 = vmatprep.mubr.bf16.mxu0 0
      %4807 = vmatmul.mubr.bf16.gmra.mrb[0].mxu0 %v4405
      %v4808 = vpop.f32.mrb[0].mxu0
      %v4809 = vadd.f32 %v4297, %v4808
      %v4810 = vpop.f32.mrb[0].mxu0
      %v4811 = vpop.f32.mrb[0].mxu0
      %v4812 = vadd.f32 %v4297, %v4811
      %v4813 = vpop.f32.mrb[0].mxu0
      %4814 = vmatprep.mubr.bf16.mxu0 0
      %4815 = vmatmul.mubr.bf16.gmra.mrb[0].mxu0 %v4408
      %v4816 = vpop.f32.mrb[0].mxu0
      %v4817 = vadd.f32 %v4297, %v4816
      %v4818 = vpop.f32.mrb[0].mxu0
      %v4819 = vpop.f32.mrb[0].mxu0
      %v4820 = vadd.f32 %v4297, %v4819
      %v4821 = vpop.f32.mrb[0].mxu0
      %4822 = vmatprep.mubr.bf16.mxu0 0
      %4823 = vmatmul.mubr.bf16.gmra.mrb[0].mxu0 %v4411
      %v4824 = vpop.f32.mrb[0].mxu0
      %v4825 = vadd.f32 %v4297, %v4824
      %v4826 = vpop.f32.mrb[0].mxu0
      %v4827 = vpop.f32.mrb[0].mxu0
      %v4828 = vadd.f32 %v4297, %v4827
      %v4829 = vpop.f32.mrb[0].mxu0
      %4830 = vmatprep.mubr.bf16.mxu0 0
      %4831 = vmatmul.mubr.bf16.gmra.mrb[0].mxu0 %v4414
      %v4832 = vpop.f32.mrb[0].mxu0
      %v4833 = vadd.f32 %v4297, %v4832
      %v4834 = vpop.f32.mrb[0].mxu0
      %v4835 = vpop.f32.mrb[0].mxu0
      %v4836 = vadd.f32 %v4297, %v4835
      %v4837 = vpop.f32.mrb[0].mxu0
      %4838 = vmatprep.mubr.bf16.mxu0 0
      %4839 = vmatmul.mubr.bf16.gmra.mrb[0].mxu0 %v4417
      %v4840 = vpop.f32.mrb[0].mxu0
      %v4841 = vadd.f32 %v4297, %v4840
      %v4842 = vpop.f32.mrb[0].mxu0
      %v4843 = vpop.f32.mrb[0].mxu0
      %v4844 = vadd.f32 %v4297, %v4843
      %v4845 = vpop.f32.mrb[0].mxu0
      %4846 = vmatprep.mubr.bf16.mxu0 0
      %4847 = vmatmul.mubr.bf16.gmra.mrb[0].mxu0 %v4420
      %v4848 = vpop.f32.mrb[0].mxu0
      %v4849 = vadd.f32 %v4297, %v4848
      %v4850 = vpop.f32.mrb[0].mxu0
      %v4851 = vpop.f32.mrb[0].mxu0
      %v4852 = vadd.f32 %v4297, %v4851
      %v4853 = vpop.f32.mrb[0].mxu0
      %4854 = vmatprep.mubr.bf16.mxu0 0
      %4855 = vmatmul.mubr.bf16.gmra.mrb[0].mxu0 %v4423
      %v4856 = vpop.f32.mrb[0].mxu0
      %v4857 = vadd.f32 %v4297, %v4856
      %v4858 = vpop.f32.mrb[0].mxu0
      %v4859 = vpop.f32.mrb[0].mxu0
      %v4860 = vadd.f32 %v4297, %v4859
      %v4861 = vpop.f32.mrb[0].mxu0
      %4862 = vmatprep.mubr.bf16.mxu0 0
      %4863 = vmatmul.mubr.bf16.gmra.mrb[0].mxu0 %v4426
      %v4864 = vpop.f32.mrb[0].mxu0
      %v4865 = vadd.f32 %v4297, %v4864
      %v4866 = vpop.f32.mrb[0].mxu0
      %v4867 = vpop.f32.mrb[0].mxu0
      %v4868 = vadd.f32 %v4297, %v4867
      %v4869 = vpop.f32.mrb[0].mxu0
      %4870 = vmatprep.mubr.bf16.mxu0 0
      %4871 = vmatmul.mubr.bf16.gmra.mrb[0].mxu0 %v4429
      %v4872 = vpop.f32.mrb[0].mxu0
      %v4873 = vadd.f32 %v4297, %v4872
      %v4874 = vpop.f32.mrb[0].mxu0
      %v4875 = vpop.f32.mrb[0].mxu0
      %v4876 = vadd.f32 %v4297, %v4875
      %v4877 = vpop.f32.mrb[0].mxu0
      %4878 = vmatprep.mubr.bf16.mxu0 0
      %4879 = vmatmul.mubr.bf16.gmra.mrb[0].mxu0 %v4432
      %v4880 = vpop.f32.mrb[0].mxu0
      %v4881 = vadd.f32 %v4297, %v4880
      %v4882 = vpop.f32.mrb[0].mxu0
      %v4883 = vpop.f32.mrb[0].mxu0
      %v4884 = vadd.f32 %v4297, %v4883
      %v4885 = vpop.f32.mrb[0].mxu0
      %4886 = vmatprep.mubr.bf16.mxu0 0
      %4887 = vmatmul.mubr.bf16.gmra.mrb[0].mxu0 %v4435
      %v4888 = vpop.f32.mrb[0].mxu0
      %v4889 = vadd.f32 %v4297, %v4888
      %v4890 = vpop.f32.mrb[0].mxu0
      %v4891 = vpop.f32.mrb[0].mxu0
      %v4892 = vadd.f32 %v4297, %v4891
      %v4893 = vpop.f32.mrb[0].mxu0
      %4894 = vmatprep.mubr.bf16.mxu0 0
      %4895 = vmatmul.mubr.bf16.gmra.mrb[0].mxu0 %v4438
      %v4896 = vpop.f32.mrb[0].mxu0
      %v4897 = vadd.f32 %v4297, %v4896
      %v4898 = vpop.f32.mrb[0].mxu0
      %v4899 = vpop.f32.mrb[0].mxu0
      %v4900 = vadd.f32 %v4297, %v4899
      %v4901 = vpop.f32.mrb[0].mxu0
      %4902 = vmatprep.mubr.bf16.mxu0 0
      %4903 = vmatmul.mubr.bf16.gmra.mrb[0].mxu0 %v4441
      %v4904 = vpop.f32.mrb[0].mxu0
      %v4905 = vadd.f32 %v4297, %v4904
      %v4906 = vpop.f32.mrb[0].mxu0
      %v4907 = vpop.f32.mrb[0].mxu0
      %v4908 = vadd.f32 %v4297, %v4907
      %v4909 = vpop.f32.mrb[0].mxu0
      %4910 = vmatprep.mubr.bf16.mxu0 0
      %4911 = vmatmul.mubr.bf16.gmra.mrb[0].mxu0 %v4444
      %v4912 = vpop.f32.mrb[0].mxu0
      %v4913 = vadd.f32 %v4297, %v4912
      %v4914 = vpop.f32.mrb[0].mxu0
      %v4915 = vpop.f32.mrb[0].mxu0
      %v4916 = vadd.f32 %v4297, %v4915
      %v4917 = vpop.f32.mrb[0].mxu0
      %4918 = vmatprep.mubr.bf16.mxu0 0
      %4919 = vmatmul.mubr.bf16.gmra.mrb[0].mxu0 %v4447
      %v4920 = vpop.f32.mrb[0].mxu0
      %v4921 = vadd.f32 %v4297, %v4920
      %v4922 = vpop.f32.mrb[0].mxu0
      %v4923 = vpop.f32.mrb[0].mxu0
      %v4924 = vadd.f32 %v4297, %v4923
      %v4925 = vpop.f32.mrb[0].mxu0
      %4926 = vmatprep.mubr.bf16.mxu0 0
      %4927 = vmatmul.mubr.bf16.gmra.mrb[0].mxu0 %v4450
      %v4928 = vpop.f32.mrb[0].mxu0
      %v4929 = vadd.f32 %v4297, %v4928
      %v4930 = vpop.f32.mrb[0].mxu0
      %v4931 = vpop.f32.mrb[0].mxu0
      %v4932 = vadd.f32 %v4297, %v4931
      %v4933 = vpop.f32.mrb[0].mxu0
      %4934 = vmatprep.mubr.bf16.mxu0 0
      %4935 = vmatmul.mubr.bf16.gmra.mrb[0].mxu0 %v4453
      %v4936 = vpop.f32.mrb[0].mxu0
      %v4937 = vadd.f32 %v4297, %v4936
      %v4938 = vpop.f32.mrb[0].mxu0
      %v4939 = vpop.f32.mrb[0].mxu0
      %v4940 = vadd.f32 %v4297, %v4939
      %v4941 = vpop.f32.mrb[0].mxu0
      %4942 = vmatprep.mubr.bf16.mxu0 0
      %4943 = vmatmul.mubr.bf16.gmra.mrb[0].mxu0 %v4456
      %v4944 = vpop.f32.mrb[0].mxu0
      %v4945 = vadd.f32 %v4297, %v4944
      %v4946 = vpop.f32.mrb[0].mxu0
      %v4947 = vpop.f32.mrb[0].mxu0
      %v4948 = vadd.f32 %v4297, %v4947
      %v4949 = vpop.f32.mrb[0].mxu0
      %4950 = vmatprep.mubr.bf16.mxu0 0
      %4951 = vmatmul.mubr.bf16.gmra.mrb[0].mxu0 %v4459
      %v4952 = vpop.f32.mrb[0].mxu0
      %v4953 = vadd.f32 %v4297, %v4952
      %v4954 = vpop.f32.mrb[0].mxu0
      %v4955 = vpop.f32.mrb[0].mxu0
      %v4956 = vadd.f32 %v4297, %v4955
      %v4957 = vpop.f32.mrb[0].mxu0
      %4958 = vmatprep.mubr.bf16.mxu0 0
      %4959 = vmatmul.mubr.bf16.gmra.mrb[0].mxu0 %v4462
      %v4960 = vpop.f32.mrb[0].mxu0
      %v4961 = vadd.f32 %v4297, %v4960
      %v4962 = vpop.f32.mrb[0].mxu0
      %v4963 = vpop.f32.mrb[0].mxu0
      %v4964 = vadd.f32 %v4297, %v4963
      %v4965 = vpop.f32.mrb[0].mxu0
      %4966 = vmatprep.mubr.bf16.mxu0 0
      %4967 = vmatmul.mubr.bf16.gmra.mrb[0].mxu0 %v4465
      %v4968 = vpop.f32.mrb[0].mxu0
      %v4969 = vadd.f32 %v4297, %v4968
      %v4970 = vpop.f32.mrb[0].mxu0
      %v4971 = vpop.f32.mrb[0].mxu0
      %v4972 = vadd.f32 %v4297, %v4971
      %v4973 = vpop.f32.mrb[0].mxu0
      %4974 = vmatprep.mubr.bf16.mxu0 0
      %4975 = vmatmul.mubr.bf16.gmra.mrb[0].mxu0 %v4468
      %v4976 = vpop.f32.mrb[0].mxu0
      %v4977 = vadd.f32 %v4297, %v4976
      %v4978 = vpop.f32.mrb[0].mxu0
      %v4979 = vpop.f32.mrb[0].mxu0
      %v4980 = vadd.f32 %v4297, %v4979
      %v4981 = vpop.f32.mrb[0].mxu0
      %4982 = vmatprep.mubr.bf16.mxu0 0
      %4983 = vmatmul.mubr.bf16.gmra.mrb[0].mxu0 %v4471
      %v4984 = vpop.f32.mrb[0].mxu0
      %v4985 = vadd.f32 %v4297, %v4984
      %v4986 = vpop.f32.mrb[0].mxu0
      %v4987 = vpop.f32.mrb[0].mxu0
      %v4988 = vadd.f32 %v4297, %v4987
      %v4989 = vpop.f32.mrb[0].mxu0
      %4990 = vmatprep.mubr.bf16.mxu0 0
      %4991 = vmatmul.mubr.bf16.gmra.mrb[0].mxu0 %v4474
      %v4992 = vpop.f32.mrb[0].mxu0
      %v4993 = vadd.f32 %v4297, %v4992
      %v4994 = vpop.f32.mrb[0].mxu0
      %v4995 = vpop.f32.mrb[0].mxu0
      %v4996 = vadd.f32 %v4297, %v4995
      %v4997 = vpop.f32.mrb[0].mxu0
      %4998 = vmatprep.mubr.bf16.mxu0 0
      %4999 = vmatmul.mubr.bf16.gmra.mrb[0].mxu0 %v4477
      %v5000 = vpop.f32.mrb[0].mxu0
      %v5001 = vadd.f32 %v4297, %v5000
      %v5002 = vpop.f32.mrb[0].mxu0
      %v5003 = vpop.f32.mrb[0].mxu0
      %v5004 = vadd.f32 %v4297, %v5003
      %v5005 = vpop.f32.mrb[0].mxu0
      %5006 = vmatprep.mubr.bf16.mxu0 0
      %5007 = vmatmul.mubr.bf16.gmra.mrb[0].mxu0 %v4480
      %v5008 = vpop.f32.mrb[0].mxu0
      %v5009 = vadd.f32 %v4297, %v5008
      %v5010 = vpop.f32.mrb[0].mxu0
      %v5011 = vpop.f32.mrb[0].mxu0
      %v5012 = vadd.f32 %v4297, %v5011
      %v5013 = vpop.f32.mrb[0].mxu0
      %5014 = vmatprep.mubr.bf16.mxu0 0
      %5015 = vmatmul.mubr.bf16.gmra.mrb[0].mxu0 %v4483
      %v5016 = vpop.f32.mrb[0].mxu0
      %v5017 = vadd.f32 %v4297, %v5016
      %v5018 = vpop.f32.mrb[0].mxu0
      %v5019 = vpop.f32.mrb[0].mxu0
      %v5020 = vadd.f32 %v4297, %v5019
      %v5021 = vpop.f32.mrb[0].mxu0
      %5022 = vmatprep.mubr.bf16.mxu0 0
      %5023 = vmatmul.mubr.bf16.gmra.mrb[0].mxu0 %v4486
      %v5024 = vpop.f32.mrb[0].mxu0
      %v5025 = vadd.f32 %v4297, %v5024
      %v5026 = vpop.f32.mrb[0].mxu0
      %v5027 = vpop.f32.mrb[0].mxu0
      %v5028 = vadd.f32 %v4297, %v5027
      %v5029 = vpop.f32.mrb[0].mxu0
      %5030 = vmatprep.mubr.bf16.mxu0 0
      %5031 = vmatmul.mubr.bf16.gmra.mrb[0].mxu0 %v4489
      %v5032 = vpop.f32.mrb[0].mxu0
      %v5033 = vadd.f32 %v4297, %v5032
      %v5034 = vpop.f32.mrb[0].mxu0
      %v5035 = vpop.f32.mrb[0].mxu0
      %v5036 = vadd.f32 %v4297, %v5035
      %v5037 = vpop.f32.mrb[0].mxu0
      %5038 = vdwg.mxu0
      %v5039 = vxor.u32 %v4529, 2147483648
      %v5040 = vxor.u32 %v4532, 2147483648
      %v5041 = vxor.u32 %v4537, 2147483648
      %v5042 = vxor.u32 %v4540, 2147483648
      %v5043 = vxor.u32 %v4545, 2147483648
      %v5044 = vxor.u32 %v4548, 2147483648
      %v5045 = vxor.u32 %v4553, 2147483648
      %v5046 = vxor.u32 %v4556, 2147483648
      %v5047 = vxor.u32 %v4561, 2147483648
      %v5048 = vxor.u32 %v4564, 2147483648
      %v5049 = vxor.u32 %v4569, 2147483648
      %v5050 = vxor.u32 %v4572, 2147483648
      %v5051 = vxor.u32 %v4577, 2147483648
      %v5052 = vxor.u32 %v4580, 2147483648
      %v5053 = vxor.u32 %v4585, 2147483648
      %v5054 = vxor.u32 %v4588, 2147483648
      %v5055 = vxor.u32 %v4593, 2147483648
      %v5056 = vxor.u32 %v4596, 2147483648
      %v5057 = vxor.u32 %v4601, 2147483648
      %v5058 = vxor.u32 %v4604, 2147483648
      %v5059 = vxor.u32 %v4609, 2147483648
      %v5060 = vxor.u32 %v4612, 2147483648
      %v5061 = vxor.u32 %v4617, 2147483648
      %v5062 = vxor.u32 %v4620, 2147483648
      %v5063 = vxor.u32 %v4625, 2147483648
      %v5064 = vxor.u32 %v4628, 2147483648
      %v5065 = vxor.u32 %v4633, 2147483648
      %v5066 = vxor.u32 %v4636, 2147483648
      %v5067 = vxor.u32 %v4641, 2147483648
      %v5068 = vxor.u32 %v4644, 2147483648
      %v5069 = vxor.u32 %v4649, 2147483648
      %v5070 = vxor.u32 %v4652, 2147483648
      %v5071 = vxor.u32 %v4657, 2147483648
      %v5072 = vxor.u32 %v4660, 2147483648
      %v5073 = vxor.u32 %v4665, 2147483648
      %v5074 = vxor.u32 %v4668, 2147483648
      %v5075 = vxor.u32 %v4673, 2147483648
      %v5076 = vxor.u32 %v4676, 2147483648
      %v5077 = vxor.u32 %v4681, 2147483648
      %v5078 = vxor.u32 %v4684, 2147483648
      %v5079 = vxor.u32 %v4689, 2147483648
      %v5080 = vxor.u32 %v4692, 2147483648
      %v5081 = vxor.u32 %v4697, 2147483648
      %v5082 = vxor.u32 %v4700, 2147483648
      %v5083 = vxor.u32 %v4705, 2147483648
      %v5084 = vxor.u32 %v4708, 2147483648
      %v5085 = vxor.u32 %v4713, 2147483648
      %v5086 = vxor.u32 %v4716, 2147483648
      %v5087 = vxor.u32 %v4721, 2147483648
      %v5088 = vxor.u32 %v4724, 2147483648
      %v5089 = vxor.u32 %v4729, 2147483648
      %v5090 = vxor.u32 %v4732, 2147483648
      %v5091 = vxor.u32 %v4737, 2147483648
      %v5092 = vxor.u32 %v4740, 2147483648
      %v5093 = vxor.u32 %v4745, 2147483648
      %v5094 = vxor.u32 %v4748, 2147483648
      %v5095 = vxor.u32 %v4753, 2147483648
      %v5096 = vxor.u32 %v4756, 2147483648
      %v5097 = vxor.u32 %v4761, 2147483648
      %v5098 = vxor.u32 %v4764, 2147483648
      %v5099 = vxor.u32 %v4769, 2147483648
      %v5100 = vxor.u32 %v4772, 2147483648
      %v5101 = vxor.u32 %v4777, 2147483648
      %v5102 = vxor.u32 %v4780, 2147483648
      %v5103 = vxor.u32 %v4785, 2147483648
      %v5104 = vxor.u32 %v4788, 2147483648
      %v5105 = vxor.u32 %v4793, 2147483648
      %v5106 = vxor.u32 %v4796, 2147483648
      %v5107 = vxor.u32 %v4801, 2147483648
      %v5108 = vxor.u32 %v4804, 2147483648
      %v5109 = vxor.u32 %v4809, 2147483648
      %v5110 = vxor.u32 %v4812, 2147483648
      %v5111 = vxor.u32 %v4817, 2147483648
      %v5112 = vxor.u32 %v4820, 2147483648
      %v5113 = vxor.u32 %v4825, 2147483648
      %v5114 = vxor.u32 %v4828, 2147483648
      %v5115 = vxor.u32 %v4833, 2147483648
      %v5116 = vxor.u32 %v4836, 2147483648
      %v5117 = vxor.u32 %v4841, 2147483648
      %v5118 = vxor.u32 %v4844, 2147483648
      %v5119 = vxor.u32 %v4849, 2147483648
      %v5120 = vxor.u32 %v4852, 2147483648
      %v5121 = vxor.u32 %v4857, 2147483648
      %v5122 = vxor.u32 %v4860, 2147483648
      %v5123 = vxor.u32 %v4865, 2147483648
      %v5124 = vxor.u32 %v4868, 2147483648
      %v5125 = vxor.u32 %v4873, 2147483648
      %v5126 = vxor.u32 %v4876, 2147483648
      %v5127 = vxor.u32 %v4881, 2147483648
      %v5128 = vxor.u32 %v4884, 2147483648
      %v5129 = vxor.u32 %v4889, 2147483648
      %v5130 = vxor.u32 %v4892, 2147483648
      %v5131 = vxor.u32 %v4897, 2147483648
      %v5132 = vxor.u32 %v4900, 2147483648
      %v5133 = vxor.u32 %v4905, 2147483648
      %v5134 = vxor.u32 %v4908, 2147483648
      %v5135 = vxor.u32 %v4913, 2147483648
      %v5136 = vxor.u32 %v4916, 2147483648
      %v5137 = vxor.u32 %v4921, 2147483648
      %v5138 = vxor.u32 %v4924, 2147483648
      %v5139 = vxor.u32 %v4929, 2147483648
      %v5140 = vxor.u32 %v4932, 2147483648
      %v5141 = vxor.u32 %v4937, 2147483648
      %v5142 = vxor.u32 %v4940, 2147483648
      %v5143 = vxor.u32 %v4945, 2147483648
      %v5144 = vxor.u32 %v4948, 2147483648
      %v5145 = vxor.u32 %v4953, 2147483648
      %v5146 = vxor.u32 %v4956, 2147483648
      %v5147 = vxor.u32 %v4961, 2147483648
      %v5148 = vxor.u32 %v4964, 2147483648
      %v5149 = vxor.u32 %v4969, 2147483648
      %v5150 = vxor.u32 %v4972, 2147483648
      %v5151 = vxor.u32 %v4977, 2147483648
      %v5152 = vxor.u32 %v4980, 2147483648
      %v5153 = vxor.u32 %v4985, 2147483648
      %v5154 = vxor.u32 %v4988, 2147483648
      %v5155 = vxor.u32 %v4993, 2147483648
      %v5156 = vxor.u32 %v4996, 2147483648
      %v5157 = vxor.u32 %v5001, 2147483648
      %v5158 = vxor.u32 %v5004, 2147483648
      %v5159 = vxor.u32 %v5009, 2147483648
      %v5160 = vxor.u32 %v5012, 2147483648
      %v5161 = vxor.u32 %v5017, 2147483648
      %v5162 = vxor.u32 %v5020, 2147483648
      %v5163 = vxor.u32 %v5025, 2147483648
      %v5164 = vxor.u32 %v5028, 2147483648
      %v5165 = vxor.u32 %v5033, 2147483648
      %v5166 = vxor.u32 %v5036, 2147483648
      %v5167 = vmul.f32 %v5039, 1.442695
      %v5168 = vpow.pop %v5167
      %v5169 = vmul.f32 %v5040, 1.442695
      %v5170 = vpow.pop %v5169
      %v5171 = vmul.f32 %v5041, 1.442695
      %v5172 = vpow.pop %v5171
      %v5173 = vmul.f32 %v5042, 1.442695
      %v5174 = vpow.pop %v5173
      %v5175 = vmul.f32 %v5043, 1.442695
      %v5176 = vpow.pop %v5175
      %v5177 = vmul.f32 %v5044, 1.442695
      %v5178 = vpow.pop %v5177
      %v5179 = vmul.f32 %v5045, 1.442695
      %v5180 = vpow.pop %v5179
      %v5181 = vmul.f32 %v5046, 1.442695
      %v5182 = vpow.pop %v5181
      %v5183 = vmul.f32 %v5047, 1.442695
      %v5184 = vpow.pop %v5183
      %v5185 = vmul.f32 %v5048, 1.442695
      %v5186 = vpow.pop %v5185
      %v5187 = vmul.f32 %v5049, 1.442695
      %v5188 = vpow.pop %v5187
      %v5189 = vmul.f32 %v5050, 1.442695
      %v5190 = vpow.pop %v5189
      %v5191 = vmul.f32 %v5051, 1.442695
      %v5192 = vpow.pop %v5191
      %v5193 = vmul.f32 %v5052, 1.442695
      %v5194 = vpow.pop %v5193
      %v5195 = vmul.f32 %v5053, 1.442695
      %v5196 = vpow.pop %v5195
      %v5197 = vmul.f32 %v5054, 1.442695
      %v5198 = vpow.pop %v5197
      %v5199 = vmul.f32 %v5055, 1.442695
      %v5200 = vpow.pop %v5199
      %v5201 = vmul.f32 %v5056, 1.442695
      %v5202 = vpow.pop %v5201
      %v5203 = vmul.f32 %v5057, 1.442695
      %v5204 = vpow.pop %v5203
      %v5205 = vmul.f32 %v5058, 1.442695
      %v5206 = vpow.pop %v5205
      %v5207 = vmul.f32 %v5059, 1.442695
      %v5208 = vpow.pop %v5207
      %v5209 = vmul.f32 %v5060, 1.442695
      %v5210 = vpow.pop %v5209
      %v5211 = vmul.f32 %v5061, 1.442695
      %v5212 = vpow.pop %v5211
      %v5213 = vmul.f32 %v5062, 1.442695
      %v5214 = vpow.pop %v5213
      %v5215 = vmul.f32 %v5063, 1.442695
      %v5216 = vpow.pop %v5215
      %v5217 = vmul.f32 %v5064, 1.442695
      %v5218 = vpow.pop %v5217
      %v5219 = vmul.f32 %v5065, 1.442695
      %v5220 = vpow.pop %v5219
      %v5221 = vmul.f32 %v5066, 1.442695
      %v5222 = vpow.pop %v5221
      %v5223 = vmul.f32 %v5067, 1.442695
      %v5224 = vpow.pop %v5223
      %v5225 = vmul.f32 %v5068, 1.442695
      %v5226 = vpow.pop %v5225
      %v5227 = vmul.f32 %v5069, 1.442695
      %v5228 = vpow.pop %v5227
      %v5229 = vmul.f32 %v5070, 1.442695
      %v5230 = vpow.pop %v5229
      %v5231 = vmul.f32 %v5071, 1.442695
      %v5232 = vpow.pop %v5231
      %v5233 = vmul.f32 %v5072, 1.442695
      %v5234 = vpow.pop %v5233
      %v5235 = vmul.f32 %v5073, 1.442695
      %v5236 = vpow.pop %v5235
      %v5237 = vmul.f32 %v5074, 1.442695
      %v5238 = vpow.pop %v5237
      %v5239 = vmul.f32 %v5075, 1.442695
      %v5240 = vpow.pop %v5239
      %v5241 = vmul.f32 %v5076, 1.442695
      %v5242 = vpow.pop %v5241
      %v5243 = vmul.f32 %v5077, 1.442695
      %v5244 = vpow.pop %v5243
      %v5245 = vmul.f32 %v5078, 1.442695
      %v5246 = vpow.pop %v5245
      %v5247 = vmul.f32 %v5079, 1.442695
      %v5248 = vpow.pop %v5247
      %v5249 = vmul.f32 %v5080, 1.442695
      %v5250 = vpow.pop %v5249
      %v5251 = vmul.f32 %v5081, 1.442695
      %v5252 = vpow.pop %v5251
      %v5253 = vmul.f32 %v5082, 1.442695
      %v5254 = vpow.pop %v5253
      %v5255 = vmul.f32 %v5083, 1.442695
      %v5256 = vpow.pop %v5255
      %v5257 = vmul.f32 %v5084, 1.442695
      %v5258 = vpow.pop %v5257
      %v5259 = vmul.f32 %v5085, 1.442695
      %v5260 = vpow.pop %v5259
      %v5261 = vmul.f32 %v5086, 1.442695
      %v5262 = vpow.pop %v5261
      %v5263 = vmul.f32 %v5087, 1.442695
      %v5264 = vpow.pop %v5263
      %v5265 = vmul.f32 %v5088, 1.442695
      %v5266 = vpow.pop %v5265
      %v5267 = vmul.f32 %v5089, 1.442695
      %v5268 = vpow.pop %v5267
      %v5269 = vmul.f32 %v5090, 1.442695
      %v5270 = vpow.pop %v5269
      %v5271 = vmul.f32 %v5091, 1.442695
      %v5272 = vpow.pop %v5271
      %v5273 = vmul.f32 %v5092, 1.442695
      %v5274 = vpow.pop %v5273
      %v5275 = vmul.f32 %v5093, 1.442695
      %v5276 = vpow.pop %v5275
      %v5277 = vmul.f32 %v5094, 1.442695
      %v5278 = vpow.pop %v5277
      %v5279 = vmul.f32 %v5095, 1.442695
      %v5280 = vpow.pop %v5279
      %v5281 = vmul.f32 %v5096, 1.442695
      %v5282 = vpow.pop %v5281
      %v5283 = vmul.f32 %v5097, 1.442695
      %v5284 = vpow.pop %v5283
      %v5285 = vmul.f32 %v5098, 1.442695
      %v5286 = vpow.pop %v5285
      %v5287 = vmul.f32 %v5099, 1.442695
      %v5288 = vpow.pop %v5287
      %v5289 = vmul.f32 %v5100, 1.442695
      %v5290 = vpow.pop %v5289
      %v5291 = vmul.f32 %v5101, 1.442695
      %v5292 = vpow.pop %v5291
      %v5293 = vmul.f32 %v5102, 1.442695
      %v5294 = vpow.pop %v5293
      %v5295 = vmul.f32 %v5103, 1.442695
      %v5296 = vpow.pop %v5295
      %v5297 = vmul.f32 %v5104, 1.442695
      %v5298 = vpow.pop %v5297
      %v5299 = vmul.f32 %v5105, 1.442695
      %v5300 = vpow.pop %v5299
      %v5301 = vmul.f32 %v5106, 1.442695
      %v5302 = vpow.pop %v5301
      %v5303 = vmul.f32 %v5107, 1.442695
      %v5304 = vpow.pop %v5303
      %v5305 = vmul.f32 %v5108, 1.442695
      %v5306 = vpow.pop %v5305
      %v5307 = vmul.f32 %v5109, 1.442695
      %v5308 = vpow.pop %v5307
      %v5309 = vmul.f32 %v5110, 1.442695
      %v5310 = vpow.pop %v5309
      %v5311 = vmul.f32 %v5111, 1.442695
      %v5312 = vpow.pop %v5311
      %v5313 = vmul.f32 %v5112, 1.442695
      %v5314 = vpow.pop %v5313
      %v5315 = vmul.f32 %v5113, 1.442695
      %v5316 = vpow.pop %v5315
      %v5317 = vmul.f32 %v5114, 1.442695
      %v5318 = vpow.pop %v5317
      %v5319 = vmul.f32 %v5115, 1.442695
      %v5320 = vpow.pop %v5319
      %v5321 = vmul.f32 %v5116, 1.442695
      %v5322 = vpow.pop %v5321
      %v5323 = vmul.f32 %v5117, 1.442695
      %v5324 = vpow.pop %v5323
      %v5325 = vmul.f32 %v5118, 1.442695
      %v5326 = vpow.pop %v5325
      %v5327 = vmul.f32 %v5119, 1.442695
      %v5328 = vpow.pop %v5327
      %v5329 = vmul.f32 %v5120, 1.442695
      %v5330 = vpow.pop %v5329
      %v5331 = vmul.f32 %v5121, 1.442695
      %v5332 = vpow.pop %v5331
      %v5333 = vmul.f32 %v5122, 1.442695
      %v5334 = vpow.pop %v5333
      %v5335 = vmul.f32 %v5123, 1.442695
      %v5336 = vpow.pop %v5335
      %v5337 = vmul.f32 %v5124, 1.442695
      %v5338 = vpow.pop %v5337
      %v5339 = vmul.f32 %v5125, 1.442695
      %v5340 = vpow.pop %v5339
      %v5341 = vmul.f32 %v5126, 1.442695
      %v5342 = vpow.pop %v5341
      %v5343 = vmul.f32 %v5127, 1.442695
      %v5344 = vpow.pop %v5343
      %v5345 = vmul.f32 %v5128, 1.442695
      %v5346 = vpow.pop %v5345
      %v5347 = vmul.f32 %v5129, 1.442695
      %v5348 = vpow.pop %v5347
      %v5349 = vmul.f32 %v5130, 1.442695
      %v5350 = vpow.pop %v5349
      %v5351 = vmul.f32 %v5131, 1.442695
      %v5352 = vpow.pop %v5351
      %v5353 = vmul.f32 %v5132, 1.442695
      %v5354 = vpow.pop %v5353
      %v5355 = vmul.f32 %v5133, 1.442695
      %v5356 = vpow.pop %v5355
      %v5357 = vmul.f32 %v5134, 1.442695
      %v5358 = vpow.pop %v5357
      %v5359 = vmul.f32 %v5135, 1.442695
      %v5360 = vpow.pop %v5359
      %v5361 = vmul.f32 %v5136, 1.442695
      %v5362 = vpow.pop %v5361
      %v5363 = vmul.f32 %v5137, 1.442695
      %v5364 = vpow.pop %v5363
      %v5365 = vmul.f32 %v5138, 1.442695
      %v5366 = vpow.pop %v5365
      %v5367 = vmul.f32 %v5139, 1.442695
      %v5368 = vpow.pop %v5367
      %v5369 = vmul.f32 %v5140, 1.442695
      %v5370 = vpow.pop %v5369
      %v5371 = vmul.f32 %v5141, 1.442695
      %v5372 = vpow.pop %v5371
      %v5373 = vmul.f32 %v5142, 1.442695
      %v5374 = vpow.pop %v5373
      %v5375 = vmul.f32 %v5143, 1.442695
      %v5376 = vpow.pop %v5375
      %v5377 = vmul.f32 %v5144, 1.442695
      %v5378 = vpow.pop %v5377
      %v5379 = vmul.f32 %v5145, 1.442695
      %v5380 = vpow.pop %v5379
      %v5381 = vmul.f32 %v5146, 1.442695
      %v5382 = vpow.pop %v5381
      %v5383 = vmul.f32 %v5147, 1.442695
      %v5384 = vpow.pop %v5383
      %v5385 = vmul.f32 %v5148, 1.442695
      %v5386 = vpow.pop %v5385
      %v5387 = vmul.f32 %v5149, 1.442695
      %v5388 = vpow.pop %v5387
      %v5389 = vmul.f32 %v5150, 1.442695
      %v5390 = vpow.pop %v5389
      %v5391 = vmul.f32 %v5151, 1.442695
      %v5392 = vpow.pop %v5391
      %v5393 = vmul.f32 %v5152, 1.442695
      %v5394 = vpow.pop %v5393
      %v5395 = vmul.f32 %v5153, 1.442695
      %v5396 = vpow.pop %v5395
      %v5397 = vmul.f32 %v5154, 1.442695
      %v5398 = vpow.pop %v5397
      %v5399 = vmul.f32 %v5155, 1.442695
      %v5400 = vpow.pop %v5399
      %v5401 = vmul.f32 %v5156, 1.442695
      %v5402 = vpow.pop %v5401
      %v5403 = vmul.f32 %v5157, 1.442695
      %v5404 = vpow.pop %v5403
      %v5405 = vmul.f32 %v5158, 1.442695
      %v5406 = vpow.pop %v5405
      %v5407 = vmul.f32 %v5159, 1.442695
      %v5408 = vpow.pop %v5407
      %v5409 = vmul.f32 %v5160, 1.442695
      %v5410 = vpow.pop %v5409
      %v5411 = vmul.f32 %v5161, 1.442695
      %v5412 = vpow.pop %v5411
      %v5413 = vmul.f32 %v5162, 1.442695
      %v5414 = vpow.pop %v5413
      %v5415 = vmul.f32 %v5163, 1.442695
      %v5416 = vpow.pop %v5415
      %v5417 = vmul.f32 %v5164, 1.442695
      %v5418 = vpow.pop %v5417
      %v5419 = vmul.f32 %v5165, 1.442695
      %v5420 = vpow.pop %v5419
      %v5421 = vmul.f32 %v5166, 1.442695
      %v5422 = vpow.pop %v5421
      %v5423 = vadd.f32 %v5168, 1.0
      %v5424 = vadd.f32 %v5170, 1.0
      %v5425 = vadd.f32 %v5172, 1.0
      %v5426 = vadd.f32 %v5174, 1.0
      %v5427 = vadd.f32 %v5176, 1.0
      %v5428 = vadd.f32 %v5178, 1.0
      %v5429 = vadd.f32 %v5180, 1.0
      %v5430 = vadd.f32 %v5182, 1.0
      %v5431 = vadd.f32 %v5184, 1.0
      %v5432 = vadd.f32 %v5186, 1.0
      %v5433 = vadd.f32 %v5188, 1.0
      %v5434 = vadd.f32 %v5190, 1.0
      %v5435 = vadd.f32 %v5192, 1.0
      %v5436 = vadd.f32 %v5194, 1.0
      %v5437 = vadd.f32 %v5196, 1.0
      %v5438 = vadd.f32 %v5198, 1.0
      %v5439 = vadd.f32 %v5200, 1.0
      %v5440 = vadd.f32 %v5202, 1.0
      %v5441 = vadd.f32 %v5204, 1.0
      %v5442 = vadd.f32 %v5206, 1.0
      %v5443 = vadd.f32 %v5208, 1.0
      %v5444 = vadd.f32 %v5210, 1.0
      %v5445 = vadd.f32 %v5212, 1.0
      %v5446 = vadd.f32 %v5214, 1.0
      %v5447 = vadd.f32 %v5216, 1.0
      %v5448 = vadd.f32 %v5218, 1.0
      %v5449 = vadd.f32 %v5220, 1.0
      %v5450 = vadd.f32 %v5222, 1.0
      %v5451 = vadd.f32 %v5224, 1.0
      %v5452 = vadd.f32 %v5226, 1.0
      %v5453 = vadd.f32 %v5228, 1.0
      %v5454 = vadd.f32 %v5230, 1.0
      %v5455 = vadd.f32 %v5232, 1.0
      %v5456 = vadd.f32 %v5234, 1.0
      %v5457 = vadd.f32 %v5236, 1.0
      %v5458 = vadd.f32 %v5238, 1.0
      %v5459 = vadd.f32 %v5240, 1.0
      %v5460 = vadd.f32 %v5242, 1.0
      %v5461 = vadd.f32 %v5244, 1.0
      %v5462 = vadd.f32 %v5246, 1.0
      %v5463 = vadd.f32 %v5248, 1.0
      %v5464 = vadd.f32 %v5250, 1.0
      %v5465 = vadd.f32 %v5252, 1.0
      %v5466 = vadd.f32 %v5254, 1.0
      %v5467 = vadd.f32 %v5256, 1.0
      %v5468 = vadd.f32 %v5258, 1.0
      %v5469 = vadd.f32 %v5260, 1.0
      %v5470 = vadd.f32 %v5262, 1.0
      %v5471 = vadd.f32 %v5264, 1.0
      %v5472 = vadd.f32 %v5266, 1.0
      %v5473 = vadd.f32 %v5268, 1.0
      %v5474 = vadd.f32 %v5270, 1.0
      %v5475 = vadd.f32 %v5272, 1.0
      %v5476 = vadd.f32 %v5274, 1.0
      %v5477 = vadd.f32 %v5276, 1.0
      %v5478 = vadd.f32 %v5278, 1.0
      %v5479 = vadd.f32 %v5280, 1.0
      %v5480 = vadd.f32 %v5282, 1.0
      %v5481 = vadd.f32 %v5284, 1.0
      %v5482 = vadd.f32 %v5286, 1.0
      %v5483 = vadd.f32 %v5288, 1.0
      %v5484 = vadd.f32 %v5290, 1.0
      %v5485 = vadd.f32 %v5292, 1.0
      %v5486 = vadd.f32 %v5294, 1.0
      %v5487 = vadd.f32 %v5296, 1.0
      %v5488 = vadd.f32 %v5298, 1.0
      %v5489 = vadd.f32 %v5300, 1.0
      %v5490 = vadd.f32 %v5302, 1.0
      %v5491 = vadd.f32 %v5304, 1.0
      %v5492 = vadd.f32 %v5306, 1.0
      %v5493 = vadd.f32 %v5308, 1.0
      %v5494 = vadd.f32 %v5310, 1.0
      %v5495 = vadd.f32 %v5312, 1.0
      %v5496 = vadd.f32 %v5314, 1.0
      %v5497 = vadd.f32 %v5316, 1.0
      %v5498 = vadd.f32 %v5318, 1.0
      %v5499 = vadd.f32 %v5320, 1.0
      %v5500 = vadd.f32 %v5322, 1.0
      %v5501 = vadd.f32 %v5324, 1.0
      %v5502 = vadd.f32 %v5326, 1.0
      %v5503 = vadd.f32 %v5328, 1.0
      %v5504 = vadd.f32 %v5330, 1.0
      %v5505 = vadd.f32 %v5332, 1.0
      %v5506 = vadd.f32 %v5334, 1.0
      %v5507 = vadd.f32 %v5336, 1.0
      %v5508 = vadd.f32 %v5338, 1.0
      %v5509 = vadd.f32 %v5340, 1.0
      %v5510 = vadd.f32 %v5342, 1.0
      %v5511 = vadd.f32 %v5344, 1.0
      %v5512 = vadd.f32 %v5346, 1.0
      %v5513 = vadd.f32 %v5348, 1.0
      %v5514 = vadd.f32 %v5350, 1.0
      %v5515 = vadd.f32 %v5352, 1.0
      %v5516 = vadd.f32 %v5354, 1.0
      %v5517 = vadd.f32 %v5356, 1.0
      %v5518 = vadd.f32 %v5358, 1.0
      %v5519 = vadd.f32 %v5360, 1.0
      %v5520 = vadd.f32 %v5362, 1.0
      %v5521 = vadd.f32 %v5364, 1.0
      %v5522 = vadd.f32 %v5366, 1.0
      %v5523 = vadd.f32 %v5368, 1.0
      %v5524 = vadd.f32 %v5370, 1.0
      %v5525 = vadd.f32 %v5372, 1.0
      %v5526 = vadd.f32 %v5374, 1.0
      %v5527 = vadd.f32 %v5376, 1.0
      %v5528 = vadd.f32 %v5378, 1.0
      %v5529 = vadd.f32 %v5380, 1.0
      %v5530 = vadd.f32 %v5382, 1.0
      %v5531 = vadd.f32 %v5384, 1.0
      %v5532 = vadd.f32 %v5386, 1.0
      %v5533 = vadd.f32 %v5388, 1.0
      %v5534 = vadd.f32 %v5390, 1.0
      %v5535 = vadd.f32 %v5392, 1.0
      %v5536 = vadd.f32 %v5394, 1.0
      %v5537 = vadd.f32 %v5396, 1.0
      %v5538 = vadd.f32 %v5398, 1.0
      %v5539 = vadd.f32 %v5400, 1.0
      %v5540 = vadd.f32 %v5402, 1.0
      %v5541 = vadd.f32 %v5404, 1.0
      %v5542 = vadd.f32 %v5406, 1.0
      %v5543 = vadd.f32 %v5408, 1.0
      %v5544 = vadd.f32 %v5410, 1.0
      %v5545 = vadd.f32 %v5412, 1.0
      %v5546 = vadd.f32 %v5414, 1.0
      %v5547 = vadd.f32 %v5416, 1.0
      %v5548 = vadd.f32 %v5418, 1.0
      %v5549 = vadd.f32 %v5420, 1.0
      %v5550 = vadd.f32 %v5422, 1.0
      %v5551 = vrcp.pop %v5423
      %v5552 = vmul.f32 1.0, %v5551
      %v5553 = vrcp.pop %v5424
      %v5554 = vmul.f32 1.0, %v5553
      %v5555 = vrcp.pop %v5425
      %v5556 = vmul.f32 1.0, %v5555
      %v5557 = vrcp.pop %v5426
      %v5558 = vmul.f32 1.0, %v5557
      %v5559 = vrcp.pop %v5427
      %v5560 = vmul.f32 1.0, %v5559
      %v5561 = vrcp.pop %v5428
      %v5562 = vmul.f32 1.0, %v5561
      %v5563 = vrcp.pop %v5429
      %v5564 = vmul.f32 1.0, %v5563
      %v5565 = vrcp.pop %v5430
      %v5566 = vmul.f32 1.0, %v5565
      %v5567 = vrcp.pop %v5431
      %v5568 = vmul.f32 1.0, %v5567
      %v5569 = vrcp.pop %v5432
      %v5570 = vmul.f32 1.0, %v5569
      %v5571 = vrcp.pop %v5433
      %v5572 = vmul.f32 1.0, %v5571
      %v5573 = vrcp.pop %v5434
      %v5574 = vmul.f32 1.0, %v5573
      %v5575 = vrcp.pop %v5435
      %v5576 = vmul.f32 1.0, %v5575
      %v5577 = vrcp.pop %v5436
      %v5578 = vmul.f32 1.0, %v5577
      %v5579 = vrcp.pop %v5437
      %v5580 = vmul.f32 1.0, %v5579
      %v5581 = vrcp.pop %v5438
      %v5582 = vmul.f32 1.0, %v5581
      %v5583 = vrcp.pop %v5439
      %v5584 = vmul.f32 1.0, %v5583
      %v5585 = vrcp.pop %v5440
      %v5586 = vmul.f32 1.0, %v5585
      %v5587 = vrcp.pop %v5441
      %v5588 = vmul.f32 1.0, %v5587
      %v5589 = vrcp.pop %v5442
      %v5590 = vmul.f32 1.0, %v5589
      %v5591 = vrcp.pop %v5443
      %v5592 = vmul.f32 1.0, %v5591
      %v5593 = vrcp.pop %v5444
      %v5594 = vmul.f32 1.0, %v5593
      %v5595 = vrcp.pop %v5445
      %v5596 = vmul.f32 1.0, %v5595
      %v5597 = vrcp.pop %v5446
      %v5598 = vmul.f32 1.0, %v5597
      %v5599 = vrcp.pop %v5447
      %v5600 = vmul.f32 1.0, %v5599
      %v5601 = vrcp.pop %v5448
      %v5602 = vmul.f32 1.0, %v5601
      %v5603 = vrcp.pop %v5449
      %v5604 = vmul.f32 1.0, %v5603
      %v5605 = vrcp.pop %v5450
      %v5606 = vmul.f32 1.0, %v5605
      %v5607 = vrcp.pop %v5451
      %v5608 = vmul.f32 1.0, %v5607
      %v5609 = vrcp.pop %v5452
      %v5610 = vmul.f32 1.0, %v5609
      %v5611 = vrcp.pop %v5453
      %v5612 = vmul.f32 1.0, %v5611
      %v5613 = vrcp.pop %v5454
      %v5614 = vmul.f32 1.0, %v5613
      %v5615 = vrcp.pop %v5455
      %v5616 = vmul.f32 1.0, %v5615
      %v5617 = vrcp.pop %v5456
      %v5618 = vmul.f32 1.0, %v5617
      %v5619 = vrcp.pop %v5457
      %v5620 = vmul.f32 1.0, %v5619
      %v5621 = vrcp.pop %v5458
      %v5622 = vmul.f32 1.0, %v5621
      %v5623 = vrcp.pop %v5459
      %v5624 = vmul.f32 1.0, %v5623
      %v5625 = vrcp.pop %v5460
      %v5626 = vmul.f32 1.0, %v5625
      %v5627 = vrcp.pop %v5461
      %v5628 = vmul.f32 1.0, %v5627
      %v5629 = vrcp.pop %v5462
      %v5630 = vmul.f32 1.0, %v5629
      %v5631 = vrcp.pop %v5463
      %v5632 = vmul.f32 1.0, %v5631
      %v5633 = vrcp.pop %v5464
      %v5634 = vmul.f32 1.0, %v5633
      %v5635 = vrcp.pop %v5465
      %v5636 = vmul.f32 1.0, %v5635
      %v5637 = vrcp.pop %v5466
      %v5638 = vmul.f32 1.0, %v5637
      %v5639 = vrcp.pop %v5467
      %v5640 = vmul.f32 1.0, %v5639
      %v5641 = vrcp.pop %v5468
      %v5642 = vmul.f32 1.0, %v5641
      %v5643 = vrcp.pop %v5469
      %v5644 = vmul.f32 1.0, %v5643
      %v5645 = vrcp.pop %v5470
      %v5646 = vmul.f32 1.0, %v5645
      %v5647 = vrcp.pop %v5471
      %v5648 = vmul.f32 1.0, %v5647
      %v5649 = vrcp.pop %v5472
      %v5650 = vmul.f32 1.0, %v5649
      %v5651 = vrcp.pop %v5473
      %v5652 = vmul.f32 1.0, %v5651
      %v5653 = vrcp.pop %v5474
      %v5654 = vmul.f32 1.0, %v5653
      %v5655 = vrcp.pop %v5475
      %v5656 = vmul.f32 1.0, %v5655
      %v5657 = vrcp.pop %v5476
      %v5658 = vmul.f32 1.0, %v5657
      %v5659 = vrcp.pop %v5477
      %v5660 = vmul.f32 1.0, %v5659
      %v5661 = vrcp.pop %v5478
      %v5662 = vmul.f32 1.0, %v5661
      %v5663 = vrcp.pop %v5479
      %v5664 = vmul.f32 1.0, %v5663
      %v5665 = vrcp.pop %v5480
      %v5666 = vmul.f32 1.0, %v5665
      %v5667 = vrcp.pop %v5481
      %v5668 = vmul.f32 1.0, %v5667
      %v5669 = vrcp.pop %v5482
      %v5670 = vmul.f32 1.0, %v5669
      %v5671 = vrcp.pop %v5483
      %v5672 = vmul.f32 1.0, %v5671
      %v5673 = vrcp.pop %v5484
      %v5674 = vmul.f32 1.0, %v5673
      %v5675 = vrcp.pop %v5485
      %v5676 = vmul.f32 1.0, %v5675
      %v5677 = vrcp.pop %v5486
      %v5678 = vmul.f32 1.0, %v5677
      %v5679 = vrcp.pop %v5487
      %v5680 = vmul.f32 1.0, %v5679
      %v5681 = vrcp.pop %v5488
      %v5682 = vmul.f32 1.0, %v5681
      %v5683 = vrcp.pop %v5489
      %v5684 = vmul.f32 1.0, %v5683
      %v5685 = vrcp.pop %v5490
      %v5686 = vmul.f32 1.0, %v5685
      %v5687 = vrcp.pop %v5491
      %v5688 = vmul.f32 1.0, %v5687
      %v5689 = vrcp.pop %v5492
      %v5690 = vmul.f32 1.0, %v5689
      %v5691 = vrcp.pop %v5493
      %v5692 = vmul.f32 1.0, %v5691
      %v5693 = vrcp.pop %v5494
      %v5694 = vmul.f32 1.0, %v5693
      %v5695 = vrcp.pop %v5495
      %v5696 = vmul.f32 1.0, %v5695
      %v5697 = vrcp.pop %v5496
      %v5698 = vmul.f32 1.0, %v5697
      %v5699 = vrcp.pop %v5497
      %v5700 = vmul.f32 1.0, %v5699
      %v5701 = vrcp.pop %v5498
      %v5702 = vmul.f32 1.0, %v5701
      %v5703 = vrcp.pop %v5499
      %v5704 = vmul.f32 1.0, %v5703
      %v5705 = vrcp.pop %v5500
      %v5706 = vmul.f32 1.0, %v5705
      %v5707 = vrcp.pop %v5501
      %v5708 = vmul.f32 1.0, %v5707
      %v5709 = vrcp.pop %v5502
      %v5710 = vmul.f32 1.0, %v5709
      %v5711 = vrcp.pop %v5503
      %v5712 = vmul.f32 1.0, %v5711
      %v5713 = vrcp.pop %v5504
      %v5714 = vmul.f32 1.0, %v5713
      %v5715 = vrcp.pop %v5505
      %v5716 = vmul.f32 1.0, %v5715
      %v5717 = vrcp.pop %v5506
      %v5718 = vmul.f32 1.0, %v5717
      %v5719 = vrcp.pop %v5507
      %v5720 = vmul.f32 1.0, %v5719
      %v5721 = vrcp.pop %v5508
      %v5722 = vmul.f32 1.0, %v5721
      %v5723 = vrcp.pop %v5509
      %v5724 = vmul.f32 1.0, %v5723
      %v5725 = vrcp.pop %v5510
      %v5726 = vmul.f32 1.0, %v5725
      %v5727 = vrcp.pop %v5511
      %v5728 = vmul.f32 1.0, %v5727
      %v5729 = vrcp.pop %v5512
      %v5730 = vmul.f32 1.0, %v5729
      %v5731 = vrcp.pop %v5513
      %v5732 = vmul.f32 1.0, %v5731
      %v5733 = vrcp.pop %v5514
      %v5734 = vmul.f32 1.0, %v5733
      %v5735 = vrcp.pop %v5515
      %v5736 = vmul.f32 1.0, %v5735
      %v5737 = vrcp.pop %v5516
      %v5738 = vmul.f32 1.0, %v5737
      %v5739 = vrcp.pop %v5517
      %v5740 = vmul.f32 1.0, %v5739
      %v5741 = vrcp.pop %v5518
      %v5742 = vmul.f32 1.0, %v5741
      %v5743 = vrcp.pop %v5519
      %v5744 = vmul.f32 1.0, %v5743
      %v5745 = vrcp.pop %v5520
      %v5746 = vmul.f32 1.0, %v5745
      %v5747 = vrcp.pop %v5521
      %v5748 = vmul.f32 1.0, %v5747
      %v5749 = vrcp.pop %v5522
      %v5750 = vmul.f32 1.0, %v5749
      %v5751 = vrcp.pop %v5523
      %v5752 = vmul.f32 1.0, %v5751
      %v5753 = vrcp.pop %v5524
      %v5754 = vmul.f32 1.0, %v5753
      %v5755 = vrcp.pop %v5525
      %v5756 = vmul.f32 1.0, %v5755
      %v5757 = vrcp.pop %v5526
      %v5758 = vmul.f32 1.0, %v5757
      %v5759 = vrcp.pop %v5527
      %v5760 = vmul.f32 1.0, %v5759
      %v5761 = vrcp.pop %v5528
      %v5762 = vmul.f32 1.0, %v5761
      %v5763 = vrcp.pop %v5529
      %v5764 = vmul.f32 1.0, %v5763
      %v5765 = vrcp.pop %v5530
      %v5766 = vmul.f32 1.0, %v5765
      %v5767 = vrcp.pop %v5531
      %v5768 = vmul.f32 1.0, %v5767
      %v5769 = vrcp.pop %v5532
      %v5770 = vmul.f32 1.0, %v5769
      %v5771 = vrcp.pop %v5533
      %v5772 = vmul.f32 1.0, %v5771
      %v5773 = vrcp.pop %v5534
      %v5774 = vmul.f32 1.0, %v5773
      %v5775 = vrcp.pop %v5535
      %v5776 = vmul.f32 1.0, %v5775
      %v5777 = vrcp.pop %v5536
      %v5778 = vmul.f32 1.0, %v5777
      %v5779 = vrcp.pop %v5537
      %v5780 = vmul.f32 1.0, %v5779
      %v5781 = vrcp.pop %v5538
      %v5782 = vmul.f32 1.0, %v5781
      %v5783 = vrcp.pop %v5539
      %v5784 = vmul.f32 1.0, %v5783
      %v5785 = vrcp.pop %v5540
      %v5786 = vmul.f32 1.0, %v5785
      %v5787 = vrcp.pop %v5541
      %v5788 = vmul.f32 1.0, %v5787
      %v5789 = vrcp.pop %v5542
      %v5790 = vmul.f32 1.0, %v5789
      %v5791 = vrcp.pop %v5543
      %v5792 = vmul.f32 1.0, %v5791
      %v5793 = vrcp.pop %v5544
      %v5794 = vmul.f32 1.0, %v5793
      %v5795 = vrcp.pop %v5545
      %v5796 = vmul.f32 1.0, %v5795
      %v5797 = vrcp.pop %v5546
      %v5798 = vmul.f32 1.0, %v5797
      %v5799 = vrcp.pop %v5547
      %v5800 = vmul.f32 1.0, %v5799
      %v5801 = vrcp.pop %v5548
      %v5802 = vmul.f32 1.0, %v5801
      %v5803 = vrcp.pop %v5549
      %v5804 = vmul.f32 1.0, %v5803
      %v5805 = vrcp.pop %v5550
      %v5806 = vmul.f32 1.0, %v5805
      %vm5807 = vcmask 7168
      %5808 = vst.msk [vmem:[%s336] sm:$0xff] %vm5807, %v5552
      %5809 = vst.msk [vmem:[%s336 + $0x8] sm:$0xff] %vm5807, %v5554
      %5810 = vst.msk [vmem:[%s336 + $0x10] sm:$0xff] %vm5807, %v5556
      %5811 = vst.msk [vmem:[%s336 + $0x18] sm:$0xff] %vm5807, %v5558
      %5812 = vst.msk [vmem:[%s336 + $0x20] sm:$0xff] %vm5807, %v5560
      %5813 = vst.msk [vmem:[%s336 + $0x28] sm:$0xff] %vm5807, %v5562
      %5814 = vst.msk [vmem:[%s336 + $0x30] sm:$0xff] %vm5807, %v5564
      %5815 = vst.msk [vmem:[%s336 + $0x38] sm:$0xff] %vm5807, %v5566
      %5816 = vst.msk [vmem:[%s336 + $0x40] sm:$0xff] %vm5807, %v5568
      %5817 = vst.msk [vmem:[%s336 + $0x48] sm:$0xff] %vm5807, %v5570
      %5818 = vst.msk [vmem:[%s336 + $0x50] sm:$0xff] %vm5807, %v5572
      %5819 = vst.msk [vmem:[%s336 + $0x58] sm:$0xff] %vm5807, %v5574
      %5820 = vst.msk [vmem:[%s336 + $0x60] sm:$0xff] %vm5807, %v5576
      %5821 = vst.msk [vmem:[%s336 + $0x68] sm:$0xff] %vm5807, %v5578
      %5822 = vst.msk [vmem:[%s336 + $0x70] sm:$0xff] %vm5807, %v5580
      %5823 = vst.msk [vmem:[%s336 + $0x78] sm:$0xff] %vm5807, %v5582
      %5824 = vst.msk [vmem:[%s336 + $0x80] sm:$0xff] %vm5807, %v5584
      %5825 = vst.msk [vmem:[%s336 + $0x88] sm:$0xff] %vm5807, %v5586
      %5826 = vst.msk [vmem:[%s336 + $0x90] sm:$0xff] %vm5807, %v5588
      %5827 = vst.msk [vmem:[%s336 + $0x98] sm:$0xff] %vm5807, %v5590
      %5828 = vst.msk [vmem:[%s336 + $0xa0] sm:$0xff] %vm5807, %v5592
      %5829 = vst.msk [vmem:[%s336 + $0xa8] sm:$0xff] %vm5807, %v5594
      %5830 = vst.msk [vmem:[%s336 + $0xb0] sm:$0xff] %vm5807, %v5596
      %5831 = vst.msk [vmem:[%s336 + $0xb8] sm:$0xff] %vm5807, %v5598
      %5832 = vst.msk [vmem:[%s336 + $0xc0] sm:$0xff] %vm5807, %v5600
      %5833 = vst.msk [vmem:[%s336 + $0xc8] sm:$0xff] %vm5807, %v5602
      %5834 = vst.msk [vmem:[%s336 + $0xd0] sm:$0xff] %vm5807, %v5604
      %5835 = vst.msk [vmem:[%s336 + $0xd8] sm:$0xff] %vm5807, %v5606
      %5836 = vst.msk [vmem:[%s336 + $0xe0] sm:$0xff] %vm5807, %v5608
      %5837 = vst.msk [vmem:[%s336 + $0xe8] sm:$0xff] %vm5807, %v5610
      %5838 = vst.msk [vmem:[%s336 + $0xf0] sm:$0xff] %vm5807, %v5612
      %5839 = vst.msk [vmem:[%s336 + $0xf8] sm:$0xff] %vm5807, %v5614
      %5840 = vst.msk [vmem:[%s336 + $0x100] sm:$0xff] %vm5807, %v5616
      %5841 = vst.msk [vmem:[%s336 + $0x108] sm:$0xff] %vm5807, %v5618
      %5842 = vst.msk [vmem:[%s336 + $0x110] sm:$0xff] %vm5807, %v5620
      %5843 = vst.msk [vmem:[%s336 + $0x118] sm:$0xff] %vm5807, %v5622
      %5844 = vst.msk [vmem:[%s336 + $0x120] sm:$0xff] %vm5807, %v5624
      %5845 = vst.msk [vmem:[%s336 + $0x128] sm:$0xff] %vm5807, %v5626
      %5846 = vst.msk [vmem:[%s336 + $0x130] sm:$0xff] %vm5807, %v5628
      %5847 = vst.msk [vmem:[%s336 + $0x138] sm:$0xff] %vm5807, %v5630
      %5848 = vst.msk [vmem:[%s336 + $0x140] sm:$0xff] %vm5807, %v5632
      %5849 = vst.msk [vmem:[%s336 + $0x148] sm:$0xff] %vm5807, %v5634
      %5850 = vst.msk [vmem:[%s336 + $0x150] sm:$0xff] %vm5807, %v5636
      %5851 = vst.msk [vmem:[%s336 + $0x158] sm:$0xff] %vm5807, %v5638
      %5852 = vst.msk [vmem:[%s336 + $0x160] sm:$0xff] %vm5807, %v5640
      %5853 = vst.msk [vmem:[%s336 + $0x168] sm:$0xff] %vm5807, %v5642
      %5854 = vst.msk [vmem:[%s336 + $0x170] sm:$0xff] %vm5807, %v5644
      %5855 = vst.msk [vmem:[%s336 + $0x178] sm:$0xff] %vm5807, %v5646
      %5856 = vst.msk [vmem:[%s336 + $0x180] sm:$0xff] %vm5807, %v5648
      %5857 = vst.msk [vmem:[%s336 + $0x188] sm:$0xff] %vm5807, %v5650
      %5858 = vst.msk [vmem:[%s336 + $0x190] sm:$0xff] %vm5807, %v5652
      %5859 = vst.msk [vmem:[%s336 + $0x198] sm:$0xff] %vm5807, %v5654
      %5860 = vst.msk [vmem:[%s336 + $0x1a0] sm:$0xff] %vm5807, %v5656
      %5861 = vst.msk [vmem:[%s336 + $0x1a8] sm:$0xff] %vm5807, %v5658
      %5862 = vst.msk [vmem:[%s336 + $0x1b0] sm:$0xff] %vm5807, %v5660
      %5863 = vst.msk [vmem:[%s336 + $0x1b8] sm:$0xff] %vm5807, %v5662
      %5864 = vst.msk [vmem:[%s336 + $0x1c0] sm:$0xff] %vm5807, %v5664
      %5865 = vst.msk [vmem:[%s336 + $0x1c8] sm:$0xff] %vm5807, %v5666
      %5866 = vst.msk [vmem:[%s336 + $0x1d0] sm:$0xff] %vm5807, %v5668
      %5867 = vst.msk [vmem:[%s336 + $0x1d8] sm:$0xff] %vm5807, %v5670
      %5868 = vst.msk [vmem:[%s336 + $0x1e0] sm:$0xff] %vm5807, %v5672
      %5869 = vst.msk [vmem:[%s336 + $0x1e8] sm:$0xff] %vm5807, %v5674
      %5870 = vst.msk [vmem:[%s336 + $0x1f0] sm:$0xff] %vm5807, %v5676
      %5871 = vst.msk [vmem:[%s336 + $0x1f8] sm:$0xff] %vm5807, %v5678
      %5872 = vst.msk [vmem:[%s336 + $0x200] sm:$0xff] %vm5807, %v5680
      %5873 = vst.msk [vmem:[%s336 + $0x208] sm:$0xff] %vm5807, %v5682
      %5874 = vst.msk [vmem:[%s336 + $0x210] sm:$0xff] %vm5807, %v5684
      %5875 = vst.msk [vmem:[%s336 + $0x218] sm:$0xff] %vm5807, %v5686
      %5876 = vst.msk [vmem:[%s336 + $0x220] sm:$0xff] %vm5807, %v5688
      %5877 = vst.msk [vmem:[%s336 + $0x228] sm:$0xff] %vm5807, %v5690
      %5878 = vst.msk [vmem:[%s336 + $0x230] sm:$0xff] %vm5807, %v5692
      %5879 = vst.msk [vmem:[%s336 + $0x238] sm:$0xff] %vm5807, %v5694
      %5880 = vst.msk [vmem:[%s336 + $0x240] sm:$0xff] %vm5807, %v5696
      %5881 = vst.msk [vmem:[%s336 + $0x248] sm:$0xff] %vm5807, %v5698
      %5882 = vst.msk [vmem:[%s336 + $0x250] sm:$0xff] %vm5807, %v5700
      %5883 = vst.msk [vmem:[%s336 + $0x258] sm:$0xff] %vm5807, %v5702
      %5884 = vst.msk [vmem:[%s336 + $0x260] sm:$0xff] %vm5807, %v5704
      %5885 = vst.msk [vmem:[%s336 + $0x268] sm:$0xff] %vm5807, %v5706
      %5886 = vst.msk [vmem:[%s336 + $0x270] sm:$0xff] %vm5807, %v5708
      %5887 = vst.msk [vmem:[%s336 + $0x278] sm:$0xff] %vm5807, %v5710
      %5888 = vst.msk [vmem:[%s336 + $0x280] sm:$0xff] %vm5807, %v5712
      %5889 = vst.msk [vmem:[%s336 + $0x288] sm:$0xff] %vm5807, %v5714
      %5890 = vst.msk [vmem:[%s336 + $0x290] sm:$0xff] %vm5807, %v5716
      %5891 = vst.msk [vmem:[%s336 + $0x298] sm:$0xff] %vm5807, %v5718
      %5892 = vst.msk [vmem:[%s336 + $0x2a0] sm:$0xff] %vm5807, %v5720
      %5893 = vst.msk [vmem:[%s336 + $0x2a8] sm:$0xff] %vm5807, %v5722
      %5894 = vst.msk [vmem:[%s336 + $0x2b0] sm:$0xff] %vm5807, %v5724
      %5895 = vst.msk [vmem:[%s336 + $0x2b8] sm:$0xff] %vm5807, %v5726
      %5896 = vst.msk [vmem:[%s336 + $0x2c0] sm:$0xff] %vm5807, %v5728
      %5897 = vst.msk [vmem:[%s336 + $0x2c8] sm:$0xff] %vm5807, %v5730
      %5898 = vst.msk [vmem:[%s336 + $0x2d0] sm:$0xff] %vm5807, %v5732
      %5899 = vst.msk [vmem:[%s336 + $0x2d8] sm:$0xff] %vm5807, %v5734
      %5900 = vst.msk [vmem:[%s336 + $0x2e0] sm:$0xff] %vm5807, %v5736
      %5901 = vst.msk [vmem:[%s336 + $0x2e8] sm:$0xff] %vm5807, %v5738
      %5902 = vst.msk [vmem:[%s336 + $0x2f0] sm:$0xff] %vm5807, %v5740
      %5903 = vst.msk [vmem:[%s336 + $0x2f8] sm:$0xff] %vm5807, %v5742
      %5904 = vst.msk [vmem:[%s336 + $0x300] sm:$0xff] %vm5807, %v5744
      %5905 = vst.msk [vmem:[%s336 + $0x308] sm:$0xff] %vm5807, %v5746
      %5906 = vst.msk [vmem:[%s336 + $0x310] sm:$0xff] %vm5807, %v5748
      %5907 = vst.msk [vmem:[%s336 + $0x318] sm:$0xff] %vm5807, %v5750
      %5908 = vst.msk [vmem:[%s336 + $0x320] sm:$0xff] %vm5807, %v5752
      %5909 = vst.msk [vmem:[%s336 + $0x328] sm:$0xff] %vm5807, %v5754
      %5910 = vst.msk [vmem:[%s336 + $0x330] sm:$0xff] %vm5807, %v5756
      %5911 = vst.msk [vmem:[%s336 + $0x338] sm:$0xff] %vm5807, %v5758
      %5912 = vst.msk [vmem:[%s336 + $0x340] sm:$0xff] %vm5807, %v5760
      %5913 = vst.msk [vmem:[%s336 + $0x348] sm:$0xff] %vm5807, %v5762
      %5914 = vst.msk [vmem:[%s336 + $0x350] sm:$0xff] %vm5807, %v5764
      %5915 = vst.msk [vmem:[%s336 + $0x358] sm:$0xff] %vm5807, %v5766
      %5916 = vst.msk [vmem:[%s336 + $0x360] sm:$0xff] %vm5807, %v5768
      %5917 = vst.msk [vmem:[%s336 + $0x368] sm:$0xff] %vm5807, %v5770
      %5918 = vst.msk [vmem:[%s336 + $0x370] sm:$0xff] %vm5807, %v5772
      %5919 = vst.msk [vmem:[%s336 + $0x378] sm:$0xff] %vm5807, %v5774
      %5920 = vst.msk [vmem:[%s336 + $0x380] sm:$0xff] %vm5807, %v5776
      %5921 = vst.msk [vmem:[%s336 + $0x388] sm:$0xff] %vm5807, %v5778
      %5922 = vst.msk [vmem:[%s336 + $0x390] sm:$0xff] %vm5807, %v5780
      %5923 = vst.msk [vmem:[%s336 + $0x398] sm:$0xff] %vm5807, %v5782
      %5924 = vst.msk [vmem:[%s336 + $0x3a0] sm:$0xff] %vm5807, %v5784
      %5925 = vst.msk [vmem:[%s336 + $0x3a8] sm:$0xff] %vm5807, %v5786
      %5926 = vst.msk [vmem:[%s336 + $0x3b0] sm:$0xff] %vm5807, %v5788
      %5927 = vst.msk [vmem:[%s336 + $0x3b8] sm:$0xff] %vm5807, %v5790
      %5928 = vst.msk [vmem:[%s336 + $0x3c0] sm:$0xff] %vm5807, %v5792
      %5929 = vst.msk [vmem:[%s336 + $0x3c8] sm:$0xff] %vm5807, %v5794
      %5930 = vst.msk [vmem:[%s336 + $0x3d0] sm:$0xff] %vm5807, %v5796
      %5931 = vst.msk [vmem:[%s336 + $0x3d8] sm:$0xff] %vm5807, %v5798
      %5932 = vst.msk [vmem:[%s336 + $0x3e0] sm:$0xff] %vm5807, %v5800
      %5933 = vst.msk [vmem:[%s336 + $0x3e8] sm:$0xff] %vm5807, %v5802
      %5934 = vst.msk [vmem:[%s336 + $0x3f0] sm:$0xff] %vm5807, %v5804
      %5935 = vst.msk [vmem:[%s336 + $0x3f8] sm:$0xff] %vm5807, %v5806
      %s5936 = smul.u32 128, %s22
      %p5937 = scmp.lt.s32.totalorder %s5936, 255
      %s5938 = scalar_select %p5937, %s5936, 255
      %s5939 = smul.addr %s5938, 8
      %s5940 = scalar_lea.vmem %s9, %s5939
      // Predicated region
      $region57: #{discriminator_forward.1} parent=55 // pred_check
        %p5941 = pneg %p234
      $region58: #{discriminator_forward.1} parent=55 // pred_check_branch
        %5943 = sbr.rel (%p5941) target = $region60
      $region59: #{discriminator_forward.1} parent=55 // pred_region
        %s5944 = smul.u32 128, %s22
      $region60: #{discriminator_forward.1} parent=55 // pred_fallthru
        _
    $region56: #{discriminator_forward.1} parent=5 // pred_fallthru
      _
    %p5945 = scmp.le.s32.totalorder 2, %s17
    // Predicated region
    $region61: #{discriminator_forward.1} parent=5 // pred_check
      %p5946 = pneg %p5945
    $region62: #{discriminator_forward.1} parent=5 // pred_check_branch
      %5948 = sbr.rel (%p5946) target = $region64
    $region63: #{discriminator_forward.1} parent=5 // pred_region
      %s5949 = ssub.s32 %s17, 2
      // Predicated region
      $region65: #{discriminator_forward.1} parent=63 // pred_check
        %p5950 = pneg %p240
      $region66: #{discriminator_forward.1} parent=63 // pred_check_branch
        %5952 = sbr.rel (%p5950) target = $region68
      $region67: #{discriminator_forward.1} parent=63 // pred_region
        %s5953 = smul.u32 128, %s23
        %p5954 = scmp.lt.s32.totalorder %s5953, 255
        %s5955 = scalar_select %p5954, %s5953, 255
        %s5956 = smul.addr %s5955, 8
        %s5957 = scalar_lea.vmem %s9, %s5956
      $region68: #{discriminator_forward.1} parent=63 // pred_fallthru
        _
    $region64: #{discriminator_forward.1} parent=5 // pred_fallthru
      _
  $region6: #{discriminator_forward.1} parent=0 // loop_footer
    %s21 = sadd.s32 1, %s17
  $region7: #{discriminator_forward.1} parent=0 // loop_footer_branch
    %16 = sbr.rel target = $region3
  $region8: #{discriminator_forward.1} parent=0 // loop_exit
    _

</llo_original>
